<compile_context>
chip_gen: v5e
topology: v5e:2x2
jax: 0.10.0
libtpu: 0.0.40
codegen_flags: <defaults>
</compile_context>

<pallas_src>
import math

import jax
import jax.numpy as jnp
from jax.experimental import pallas as pl
from jax.experimental.pallas import tpu as pltpu

# bf16 MXU inputs (f32 accumulate).  Set False for bit-closer f32 matmuls.
USE_BF16_MATMUL = True

# Fixed geometry implied by the reference module with input (4, 36, 36):
#   conv1 k8 s4: 36 -> 8 ; conv2 k4 s2: 8 -> 3 ; conv3 k3 s1: 3 -> 1
IN_C, IN_H, IN_W = 4, 36, 36
C1, K1, S1, OH1 = 32, 8, 4, 8       # conv1
C2, K2, S2, OH2 = 64, 4, 2, 3       # conv2
C3, K3 = 64, 3                      # conv3
FEAT = C3                           # conv_out_size = 64 * 1 * 1
HID = 512
PATCH_F = K1 * K1 * IN_C            # 256 features per conv1 patch
NSLOT = OH1 * OH1                   # 64 conv1 output positions
Y1_LANES = NSLOT * C1               # 2048 lanes, ordered (oh1, ow1, c1)


def _head_lanes(n_actions):
    """Lane-compact head width: [value | advantage_0..A-1 | ... | mean(adv)]."""
    return max(8, -(-(n_actions + 2) // 8) * 8)


# ------------------------------ fused kernel --------------------------------

def _fused_dqn_kernel(patches_ref,          # (NSLOT*bp, 256), rows ordered (oh1, ow1, b)
                      w1_ref, b1_ref,       # (256, 32) dense,          (1, 32)
                      w2_ref, b2_ref,       # (1024, 192) stacked band, (1, 192)
                      w3_ref, b3_ref,       # (3, 192, 64),             (1, 64)
                      wh1_ref, bh1_ref,     # (64, 1024) [wv1 | wa1],   (1, 1024)
                      wc_ref, bc_ref,       # (1024, NC) compact L2,    (1, NC)
                      out_ref,              # (bp, NC) f32
                      y1_ref):              # scratch (bp, 2048) f32
    f32 = jnp.float32
    cdt = w1_ref.dtype                      # matmul compute dtype (bf16 or f32)
    bp = out_ref.shape[0]                   # padded batch (multiple of 8)

    # ---- conv1: one dense GEMM with (oh1, ow1, b) folded into M ----
    b1 = b1_ref[...]
    a1 = jnp.dot(patches_ref[...], w1_ref[...], preferred_element_type=f32)
    a1 = jnp.maximum(a1 + b1, 0.0)          # (NSLOT*bp, 32)

    # Relayout rows (slot, b) -> lanes (slot, c1): 4 slots per aligned 128-lane
    # store into the lane-major conv1 scratch (f32, so each store is unmasked).
    for g in range(NSLOT // 4):
        blk = jnp.concatenate(
            [a1[bp * (4 * g + k): bp * (4 * g + k) + bp, :] for k in range(4)],
            axis=1)                          # (bp, 128)
        y1_ref[:, 128 * g:128 * (g + 1)] = blk

    # ---- conv2 (K-stacked band weight) fused with conv3 ----
    b2 = b2_ref[...]
    b3 = b3_ref[...]
    feat_acc = jnp.zeros((bp, FEAT), f32)
    for oh2 in range(OH2):
        # conv1 rows S2*oh2 .. S2*oh2+3  ==  lanes [512*oh2, 512*oh2 + 1024)
        xs = y1_ref[:, 512 * oh2: 512 * oh2 + 1024].astype(cdt)
        slab = jnp.dot(xs, w2_ref[...], preferred_element_type=f32)
        slab = jnp.maximum(slab + b2, 0.0)                 # (bp, 192) = (ow2, c2)
        feat_acc = feat_acc + jnp.dot(slab.astype(cdt), w3_ref[oh2],
                                      preferred_element_type=f32)
    feat = jnp.maximum(feat_acc + b3, 0.0)                 # (bp, 64)

    # ---- dueling head: merged [value|advantage] layer 1, compact layer 2 ----
    h = jnp.dot(feat.astype(cdt), wh1_ref[...], preferred_element_type=f32)
    h = jnp.maximum(h + bh1_ref[...], 0.0)                 # (bp, 1024)
    oc = jnp.dot(h.astype(cdt), wc_ref[...], preferred_element_type=f32) + bc_ref[...]
    nc = oc.shape[1]
    # lanes: [0] = value, [1 : 1+A] = advantage, [nc-1] = mean(advantage)
    v = oc[:, 0:1]
    mean_adv = oc[:, nc - 1:nc]
    # q = v + a - mean(a); wrapper slices lanes [1 : 1+A].
    out_ref[...] = (oc + (v - mean_adv)).astype(out_ref.dtype)


# ----------------------------- wrapper (jitted) ------------------------------

# TODO(synk): conv1 patch extraction (strided, overlapping im2col of the raw
# input) stays in jitted XLA glue — it has no clean rectangular BlockSpec/VMEM
# tile expression; everything downstream runs in the fused kernel.
def _extract_conv1_patches(x_nhwc):
    """(B, 36, 36, 4) -> (OH1, OW1, B, 256) patches, feature order (kh, kw, cin).

    Exploits K1 == 2*S1 and H % S1 == 0: decompose the image into 4x4 blocks;
    every 8x8 patch is a 2x2 group of blocks -> 4 slices instead of 64.  The
    final transpose emits the kernel-facing (oh, ow, b, feat) order directly
    (single relayout; no second transpose in forward()).
    """
    B = x_nhwc.shape[0]
    xb = x_nhwc.reshape(B, IN_H // S1, S1, IN_W // S1, S1, IN_C)  # [b,Hb,hs,Wb,ws,c]
    pieces = jnp.stack(
        [xb[:, dh:dh + OH1, :, dw:dw + OH1, :, :] for dh in (0, 1) for dw in (0, 1)],
        axis=0).reshape(2, 2, B, OH1, S1, OH1, S1, IN_C)          # [dh,dw,b,oh,hs,ow,ws,c]
    patches = jnp.transpose(pieces, (3, 5, 2, 0, 4, 1, 6, 7))     # [oh,ow,b,dh,hs,dw,ws,c]
    return patches.reshape(OH1, OH1, B, PATCH_F)                  # feat = (kh,kw,cin)


def build_forward(n_actions):
    nc = _head_lanes(n_actions)

    @jax.jit
    def forward(x_nchw, p):
        B, C, H, W = x_nchw.shape
        assert (C, H, W) == (IN_C, IN_H, IN_W), "kernel specialized to (4, 36, 36)"
        b_pad = max(8, -(-B // 8) * 8)                            # sublane-aligned M
        x = jnp.transpose(x_nchw, (0, 2, 3, 1)).astype(jnp.float32)
        patches = _extract_conv1_patches(x)                       # (8, 8, B, 256)
        patches = jnp.pad(patches, ((0, 0), (0, 0), (0, b_pad - B), (0, 0)))
        # rows ordered (oh1, ow1, b) -> one (NSLOT*b_pad, 256) GEMM operand;
        # the reshape is contiguous (no extra relayout).
        patches = patches.reshape(NSLOT * b_pad, PATCH_F).astype(p["w1"].dtype)

        vmem = pl.BlockSpec(memory_space=pltpu.MemorySpace.VMEM)
        out = pl.pallas_call(
            _fused_dqn_kernel,
            out_shape=jax.ShapeDtypeStruct((b_pad, nc), jnp.float32),
            in_specs=[vmem] * 11,
            out_specs=vmem,
            scratch_shapes=[pltpu.VMEM((b_pad, Y1_LANES), jnp.float32)],
        )(patches, p["w1"], p["b1"], p["w2"], p["b2"], p["w3"], p["b3"],
          p["wh1"], p["bh1"], p["wc"], p["bc"])
        return out[:B, 1:1 + n_actions]

    return forward


# -------------------- init-time weight restructuring -------------------------

def prepare_params(raw, n_actions):
    """Restructure PyTorch-layout weights into the kernel's matmul operands (once)."""
    f32 = jnp.float32
    wdt = jnp.bfloat16 if USE_BF16_MATMUL else f32
    nc = _head_lanes(n_actions)
    assert nc - 1 >= 1 + n_actions, "head lane layout requires nc >= n_actions + 2"

    # conv1: dense (Cout,Cin,KH,KW) -> (KH*KW*Cin, Cout) = (256, 32)
    w1 = jnp.transpose(raw["conv1_w"], (2, 3, 1, 0)).reshape(PATCH_F, C1)
    b1 = raw["conv1_b"]                                        # (32,)

    # conv2: band matrices w2_band[kh][(ow1, c1), (ow2, c2)], stacked along K
    w2_band = jnp.zeros((K2, OH1 * C1, OH2 * C2), f32)
    for kh in range(K2):
        for ow2 in range(OH2):
            for kw in range(K2):
                blk = jnp.transpose(raw["conv2_w"][:, :, kh, kw], (1, 0))  # (c1, c2)
                r0 = (S2 * ow2 + kw) * C1
                w2_band = w2_band.at[kh, r0:r0 + C1, ow2 * C2:(ow2 + 1) * C2].set(blk)
    w2 = w2_band.reshape(K2 * OH1 * C1, OH2 * C2)              # (1024, 192)
    b2 = jnp.tile(raw["conv2_b"], OH2)                         # (192,)

    # conv3 (3x3 -> 1x1) == dense (576, 64), split per conv2 output row
    w3 = jnp.transpose(raw["conv3_w"], (2, 3, 1, 0)).reshape(K3, K3 * C2, C3)
    b3 = raw["conv3_b"]                                        # (64,)

    # dueling head: merged layer 1 [value | advantage]
    # (NHWC->NCHW flatten is a no-op here since conv3 output is 1x1 spatially.)
    wh1 = jnp.concatenate([raw["wv1"], raw["wa1"]], axis=1)    # (64, 1024)
    bh1 = jnp.concatenate([raw["bv1"], raw["ba1"]])            # (1024,)

    # lane-compact layer 2: col 0 = value, cols 1..A = advantage,
    # col nc-1 = mean(advantage) (mean folded into the GEMM).
    wc = jnp.zeros((2 * HID, nc), f32)
    wc = wc.at[:HID, 0].set(raw["wv2"][:, 0])
    wc = wc.at[HID:, 1:1 + n_actions].set(raw["wa2"])
    wc = wc.at[HID:, nc - 1].set(jnp.mean(raw["wa2"], axis=1))
    bc = jnp.zeros((nc,), f32)
    bc = bc.at[0].set(raw["bv2"][0])
    bc = bc.at[1:1 + n_actions].set(raw["ba2"])
    bc = bc.at[nc - 1].set(jnp.mean(raw["ba2"]))

    def w(a):
        return a.astype(wdt)

    def b(a):
        return a.reshape(1, -1).astype(f32)

    return dict(w1=w(w1), b1=b(b1), w2=w(w2), b2=b(b2), w3=w(w3), b3=b(b3),
                wh1=w(wh1), bh1=b(bh1), wc=w(wc), bc=b(bc))


# ------------------------ deterministic parameter init -----------------------

def _scale_noise(key, size):
    x = jax.random.normal(key, (size,), dtype=jnp.float32)
    return jnp.sign(x) * jnp.sqrt(jnp.abs(x))


def init_noisy_linear(key, in_f, out_f, sigma_init=0.5):
    """Effective (weight.T, bias) of NoisyLinear (noise sampled once, as one reset_noise())."""
    k1, k2, k3, k4 = jax.random.split(key, 4)
    mu_range = 1.0 / math.sqrt(in_f)
    weight_mu = jax.random.uniform(k1, (out_f, in_f), jnp.float32, -mu_range, mu_range)
    weight_sigma = jnp.full((out_f, in_f), sigma_init / math.sqrt(in_f), jnp.float32)
    bias_mu = jax.random.uniform(k2, (out_f,), jnp.float32, -mu_range, mu_range)
    bias_sigma = jnp.full((out_f,), sigma_init / math.sqrt(out_f), jnp.float32)
    eps_in = _scale_noise(k3, in_f)
    eps_out = _scale_noise(k4, out_f)
    weight = weight_mu + weight_sigma * jnp.outer(eps_out, eps_in)
    bias = bias_mu + bias_sigma * eps_out
    return weight.T, bias                                      # (in, out), (out,)


def init_conv(key, cout, cin, k):
    k1, k2 = jax.random.split(key)
    bound = 1.0 / math.sqrt(cin * k * k)
    w = jax.random.uniform(k1, (cout, cin, k, k), jnp.float32, -bound, bound)
    b = jax.random.uniform(k2, (cout,), jnp.float32, -bound, bound)
    return w, b


# ---------------------------- pure-JAX reference ------------------------------

def reference_forward(x_nchw, raw):
    def conv(x, w, b, s):
        y = jax.lax.conv_general_dilated(
            x, w, window_strides=(s, s), padding="VALID",
            dimension_numbers=("NCHW", "OIHW", "NCHW"))
        return jax.nn.relu(y + b[None, :, None, None])

    x = conv(x_nchw.astype(jnp.float32), raw["conv1_w"], raw["conv1_b"], S1)
    x = conv(x, raw["conv2_w"], raw["conv2_b"], S2)
    x = conv(x, raw["conv3_w"], raw["conv3_b"], 1)
    feat = x.reshape(x.shape[0], -1)
    v = jax.nn.relu(feat @ raw["wv1"] + raw["bv1"]) @ raw["wv2"] + raw["bv2"]
    a = jax.nn.relu(feat @ raw["wa1"] + raw["ba1"]) @ raw["wa2"] + raw["ba2"]
    return v + a - jnp.mean(a, axis=1, keepdims=True)


# ----------------------------------- main -------------------------------------

if __name__ == "__main__":
    key = jax.random.PRNGKey(0)
    ks = jax.random.split(key, 8)

    n_actions = 6
    batch = 2

    raw = {}
    raw["conv1_w"], raw["conv1_b"] = init_conv(ks[0], C1, IN_C, K1)
    raw["conv2_w"], raw["conv2_b"] = init_conv(ks[1], C2, C1, K2)
    raw["conv3_w"], raw["conv3_b"] = init_conv(ks[2], C3, C2, K3)
    raw["wv1"], raw["bv1"] = init_noisy_linear(ks[3], FEAT, HID)
    raw["wv2"], raw["bv2"] = init_noisy_linear(ks[4], HID, 1)
    raw["wa1"], raw["ba1"] = init_noisy_linear(ks[5], FEAT, HID)
    raw["wa2"], raw["ba2"] = init_noisy_linear(ks[6], HID, n_actions)

    params = prepare_params(raw, n_actions)
    forward = build_forward(n_actions)

    x = jax.random.normal(ks[7], (batch, IN_C, IN_H, IN_W), dtype=jnp.float32)

    out = jax.block_until_ready(forward(x, params))
    assert out.shape == (batch, n_actions), out.shape
    assert out.dtype == jnp.float32

    ref = jax.block_until_ready(reference_forward(x, raw))
    err = float(jnp.max(jnp.abs(out - ref)))
    # bf16 MXU inputs with f32 accumulation: expected error ~1e-2 absolute; a
    # structural bug in the weight restructuring would show up as O(0.3+).
    # (Set USE_BF16_MATMUL=False for an exact-precision check in CI.)
    assert err < 1e-1, f"mismatch vs reference: max abs err {err}"

    print("KERNEL_OK")
</pallas_src>

<mosaic_0001>
module attributes {stable_mosaic.version = 11 : i64} {
  func.func @_fused_dqn_kernel(%arg0: memref<512x256xbf16, #tpu.memory_space<vmem>>, %arg1: memref<256x32xbf16, #tpu.memory_space<vmem>>, %arg2: memref<1x32xf32, #tpu.memory_space<vmem>>, %arg3: memref<1024x192xbf16, #tpu.memory_space<vmem>>, %arg4: memref<1x192xf32, #tpu.memory_space<vmem>>, %arg5: memref<3x192x64xbf16, #tpu.memory_space<vmem>>, %arg6: memref<1x64xf32, #tpu.memory_space<vmem>>, %arg7: memref<64x1024xbf16, #tpu.memory_space<vmem>>, %arg8: memref<1x1024xf32, #tpu.memory_space<vmem>>, %arg9: memref<1024x8xbf16, #tpu.memory_space<vmem>>, %arg10: memref<1x8xf32, #tpu.memory_space<vmem>>, %arg11: memref<8x8xf32, #tpu.memory_space<vmem>>, %arg12: memref<8x2048xf32, #tpu.memory_space<vmem>>) attributes {dimension_semantics = [], scalar_prefetch = 0 : i64, scratch_operands = 1 : i64, tpu.core_type = #tpu.core_type<tc>} {
    %c0 = arith.constant 0 : index
    %c0_0 = arith.constant 0 : index
    %0 = vector.load %arg2[%c0, %c0_0] : memref<1x32xf32, #tpu.memory_space<vmem>>, vector<1x32xf32>
    %c0_1 = arith.constant 0 : index
    %c0_2 = arith.constant 0 : index
    %1 = vector.load %arg0[%c0_1, %c0_2] : memref<512x256xbf16, #tpu.memory_space<vmem>>, vector<512x256xbf16>
    %c0_3 = arith.constant 0 : index
    %c0_4 = arith.constant 0 : index
    %2 = vector.load %arg1[%c0_3, %c0_4] : memref<256x32xbf16, #tpu.memory_space<vmem>>, vector<256x32xbf16>
    %cst = arith.constant dense<0.000000e+00> : vector<512x32xf32>
    %3 = tpu.matmul %1, %2, %cst {dimension_numbers = #tpu.dot_dimension_numbers<[1], [0], [0], [1], [0, 0, 1, 1], [], []>} : vector<512x256xbf16>, vector<256x32xbf16>, vector<512x32xf32> -> vector<512x32xf32>
    %4 = vector.broadcast %0 : vector<1x32xf32> to vector<512x32xf32>
    %5 = arith.addf %3, %4 : vector<512x32xf32>
    %cst_5 = arith.constant 0.000000e+00 : f32
    %6 = vector.broadcast %cst_5 : f32 to vector<512x32xf32>
    %7 = arith.maximumf %5, %6 : vector<512x32xf32>
    %8 = vector.extract_strided_slice %7 {offsets = [0, 0], sizes = [8, 32], strides = [1, 1]} : vector<512x32xf32> to vector<8x32xf32>
    %9 = vector.extract_strided_slice %7 {offsets = [8, 0], sizes = [8, 32], strides = [1, 1]} : vector<512x32xf32> to vector<8x32xf32>
    %10 = vector.extract_strided_slice %7 {offsets = [16, 0], sizes = [8, 32], strides = [1, 1]} : vector<512x32xf32> to vector<8x32xf32>
    %11 = vector.extract_strided_slice %7 {offsets = [24, 0], sizes = [8, 32], strides = [1, 1]} : vector<512x32xf32> to vector<8x32xf32>
    %12 = tpu.concatenate %8, %9, %10, %11 in 1 : vector<8x32xf32>, vector<8x32xf32>, vector<8x32xf32>, vector<8x32xf32> -> vector<8x128xf32>
    %c0_6 = arith.constant 0 : index
    %c0_7 = arith.constant 0 : index
    %13 = vector.load %arg12[%c0_6, %c0_7] : memref<8x2048xf32, #tpu.memory_space<vmem>>, vector<8x128xf32>
    tpu.vector_store %arg12[%c0_6, %c0_7], %12 {strides = array<i32>} : memref<8x2048xf32, #tpu.memory_space<vmem>>, vector<8x128xf32>,
    %14 = vector.extract_strided_slice %7 {offsets = [32, 0], sizes = [8, 32], strides = [1, 1]} : vector<512x32xf32> to vector<8x32xf32>
    %15 = vector.extract_strided_slice %7 {offsets = [40, 0], sizes = [8, 32], strides = [1, 1]} : vector<512x32xf32> to vector<8x32xf32>
    %16 = vector.extract_strided_slice %7 {offsets = [48, 0], sizes = [8, 32], strides = [1, 1]} : vector<512x32xf32> to vector<8x32xf32>
    %17 = vector.extract_strided_slice %7 {offsets = [56, 0], sizes = [8, 32], strides = [1, 1]} : vector<512x32xf32> to vector<8x32xf32>
    %18 = tpu.concatenate %14, %15, %16, %17 in 1 : vector<8x32xf32>, vector<8x32xf32>, vector<8x32xf32>, vector<8x32xf32> -> vector<8x128xf32>
    %c0_8 = arith.constant 0 : index
    %c128 = arith.constant 128 : index
    %19 = vector.load %arg12[%c0_8, %c128] : memref<8x2048xf32, #tpu.memory_space<vmem>>, vector<8x128xf32>
    tpu.vector_store %arg12[%c0_8, %c128], %18 {strides = array<i32>} : memref<8x2048xf32, #tpu.memory_space<vmem>>, vector<8x128xf32>,
    %20 = vector.extract_strided_slice %7 {offsets = [64, 0], sizes = [8, 32], strides = [1, 1]} : vector<512x32xf32> to vector<8x32xf32>
    %21 = vector.extract_strided_slice %7 {offsets = [72, 0], sizes = [8, 32], strides = [1, 1]} : vector<512x32xf32> to vector<8x32xf32>
    %22 = vector.extract_strided_slice %7 {offsets = [80, 0], sizes = [8, 32], strides = [1, 1]} : vector<512x32xf32> to vector<8x32xf32>
    %23 = vector.extract_strided_slice %7 {offsets = [88, 0], sizes = [8, 32], strides = [1, 1]} : vector<512x32xf32> to vector<8x32xf32>
    %24 = tpu.concatenate %20, %21, %22, %23 in 1 : vector<8x32xf32>, vector<8x32xf32>, vector<8x32xf32>, vector<8x32xf32> -> vector<8x128xf32>
    %c0_9 = arith.constant 0 : index
    %c256 = arith.constant 256 : index
    %25 = vector.load %arg12[%c0_9, %c256] : memref<8x2048xf32, #tpu.memory_space<vmem>>, vector<8x128xf32>
    tpu.vector_store %arg12[%c0_9, %c256], %24 {strides = array<i32>} : memref<8x2048xf32, #tpu.memory_space<vmem>>, vector<8x128xf32>,
    %26 = vector.extract_strided_slice %7 {offsets = [96, 0], sizes = [8, 32], strides = [1, 1]} : vector<512x32xf32> to vector<8x32xf32>
    %27 = vector.extract_strided_slice %7 {offsets = [104, 0], sizes = [8, 32], strides = [1, 1]} : vector<512x32xf32> to vector<8x32xf32>
    %28 = vector.extract_strided_slice %7 {offsets = [112, 0], sizes = [8, 32], strides = [1, 1]} : vector<512x32xf32> to vector<8x32xf32>
    %29 = vector.extract_strided_slice %7 {offsets = [120, 0], sizes = [8, 32], strides = [1, 1]} : vector<512x32xf32> to vector<8x32xf32>
    %30 = tpu.concatenate %26, %27, %28, %29 in 1 : vector<8x32xf32>, vector<8x32xf32>, vector<8x32xf32>, vector<8x32xf32> -> vector<8x128xf32>
    %c0_10 = arith.constant 0 : index
    %c384 = arith.constant 384 : index
    %31 = vector.load %arg12[%c0_10, %c384] : memref<8x2048xf32, #tpu.memory_space<vmem>>, vector<8x128xf32>
    tpu.vector_store %arg12[%c0_10, %c384], %30 {strides = array<i32>} : memref<8x2048xf32, #tpu.memory_space<vmem>>, vector<8x128xf32>,
    %32 = vector.extract_strided_slice %7 {offsets = [128, 0], sizes = [8, 32], strides = [1, 1]} : vector<512x32xf32> to vector<8x32xf32>
    %33 = vector.extract_strided_slice %7 {offsets = [136, 0], sizes = [8, 32], strides = [1, 1]} : vector<512x32xf32> to vector<8x32xf32>
    %34 = vector.extract_strided_slice %7 {offsets = [144, 0], sizes = [8, 32], strides = [1, 1]} : vector<512x32xf32> to vector<8x32xf32>
    %35 = vector.extract_strided_slice %7 {offsets = [152, 0], sizes = [8, 32], strides = [1, 1]} : vector<512x32xf32> to vector<8x32xf32>
    %36 = tpu.concatenate %32, %33, %34, %35 in 1 : vector<8x32xf32>, vector<8x32xf32>, vector<8x32xf32>, vector<8x32xf32> -> vector<8x128xf32>
    %c0_11 = arith.constant 0 : index
    %c512 = arith.constant 512 : index
    %37 = vector.load %arg12[%c0_11, %c512] : memref<8x2048xf32, #tpu.memory_space<vmem>>, vector<8x128xf32>
    tpu.vector_store %arg12[%c0_11, %c512], %36 {strides = array<i32>} : memref<8x2048xf32, #tpu.memory_space<vmem>>, vector<8x128xf32>,
    %38 = vector.extract_strided_slice %7 {offsets = [160, 0], sizes = [8, 32], strides = [1, 1]} : vector<512x32xf32> to vector<8x32xf32>
    %39 = vector.extract_strided_slice %7 {offsets = [168, 0], sizes = [8, 32], strides = [1, 1]} : vector<512x32xf32> to vector<8x32xf32>
    %40 = vector.extract_strided_slice %7 {offsets = [176, 0], sizes = [8, 32], strides = [1, 1]} : vector<512x32xf32> to vector<8x32xf32>
    %41 = vector.extract_strided_slice %7 {offsets = [184, 0], sizes = [8, 32], strides = [1, 1]} : vector<512x32xf32> to vector<8x32xf32>
    %42 = tpu.concatenate %38, %39, %40, %41 in 1 : vector<8x32xf32>, vector<8x32xf32>, vector<8x32xf32>, vector<8x32xf32> -> vector<8x128xf32>
    %c0_12 = arith.constant 0 : index
    %c640 = arith.constant 640 : index
    %43 = vector.load %arg12[%c0_12, %c640] : memref<8x2048xf32, #tpu.memory_space<vmem>>, vector<8x128xf32>
    tpu.vector_store %arg12[%c0_12, %c640], %42 {strides = array<i32>} : memref<8x2048xf32, #tpu.memory_space<vmem>>, vector<8x128xf32>,
    %44 = vector.extract_strided_slice %7 {offsets = [192, 0], sizes = [8, 32], strides = [1, 1]} : vector<512x32xf32> to vector<8x32xf32>
    %45 = vector.extract_strided_slice %7 {offsets = [200, 0], sizes = [8, 32], strides = [1, 1]} : vector<512x32xf32> to vector<8x32xf32>
    %46 = vector.extract_strided_slice %7 {offsets = [208, 0], sizes = [8, 32], strides = [1, 1]} : vector<512x32xf32> to vector<8x32xf32>
    %47 = vector.extract_strided_slice %7 {offsets = [216, 0], sizes = [8, 32], strides = [1, 1]} : vector<512x32xf32> to vector<8x32xf32>
    %48 = tpu.concatenate %44, %45, %46, %47 in 1 : vector<8x32xf32>, vector<8x32xf32>, vector<8x32xf32>, vector<8x32xf32> -> vector<8x128xf32>
    %c0_13 = arith.constant 0 : index
    %c768 = arith.constant 768 : index
    %49 = vector.load %arg12[%c0_13, %c768] : memref<8x2048xf32, #tpu.memory_space<vmem>>, vector<8x128xf32>
    tpu.vector_store %arg12[%c0_13, %c768], %48 {strides = array<i32>} : memref<8x2048xf32, #tpu.memory_space<vmem>>, vector<8x128xf32>,
    %50 = vector.extract_strided_slice %7 {offsets = [224, 0], sizes = [8, 32], strides = [1, 1]} : vector<512x32xf32> to vector<8x32xf32>
    %51 = vector.extract_strided_slice %7 {offsets = [232, 0], sizes = [8, 32], strides = [1, 1]} : vector<512x32xf32> to vector<8x32xf32>
    %52 = vector.extract_strided_slice %7 {offsets = [240, 0], sizes = [8, 32], strides = [1, 1]} : vector<512x32xf32> to vector<8x32xf32>
    %53 = vector.extract_strided_slice %7 {offsets = [248, 0], sizes = [8, 32], strides = [1, 1]} : vector<512x32xf32> to vector<8x32xf32>
    %54 = tpu.concatenate %50, %51, %52, %53 in 1 : vector<8x32xf32>, vector<8x32xf32>, vector<8x32xf32>, vector<8x32xf32> -> vector<8x128xf32>
    %c0_14 = arith.constant 0 : index
    %c896 = arith.constant 896 : index
    %55 = vector.load %arg12[%c0_14, %c896] : memref<8x2048xf32, #tpu.memory_space<vmem>>, vector<8x128xf32>
    tpu.vector_store %arg12[%c0_14, %c896], %54 {strides = array<i32>} : memref<8x2048xf32, #tpu.memory_space<vmem>>, vector<8x128xf32>,
    %56 = vector.extract_strided_slice %7 {offsets = [256, 0], sizes = [8, 32], strides = [1, 1]} : vector<512x32xf32> to vector<8x32xf32>
    %57 = vector.extract_strided_slice %7 {offsets = [264, 0], sizes = [8, 32], strides = [1, 1]} : vector<512x32xf32> to vector<8x32xf32>
    %58 = vector.extract_strided_slice %7 {offsets = [272, 0], sizes = [8, 32], strides = [1, 1]} : vector<512x32xf32> to vector<8x32xf32>
    %59 = vector.extract_strided_slice %7 {offsets = [280, 0], sizes = [8, 32], strides = [1, 1]} : vector<512x32xf32> to vector<8x32xf32>
    %60 = tpu.concatenate %56, %57, %58, %59 in 1 : vector<8x32xf32>, vector<8x32xf32>, vector<8x32xf32>, vector<8x32xf32> -> vector<8x128xf32>
    %c0_15 = arith.constant 0 : index
    %c1024 = arith.constant 1024 : index
    %61 = vector.load %arg12[%c0_15, %c1024] : memref<8x2048xf32, #tpu.memory_space<vmem>>, vector<8x128xf32>
    tpu.vector_store %arg12[%c0_15, %c1024], %60 {strides = array<i32>} : memref<8x2048xf32, #tpu.memory_space<vmem>>, vector<8x128xf32>,
    %62 = vector.extract_strided_slice %7 {offsets = [288, 0], sizes = [8, 32], strides = [1, 1]} : vector<512x32xf32> to vector<8x32xf32>
    %63 = vector.extract_strided_slice %7 {offsets = [296, 0], sizes = [8, 32], strides = [1, 1]} : vector<512x32xf32> to vector<8x32xf32>
    %64 = vector.extract_strided_slice %7 {offsets = [304, 0], sizes = [8, 32], strides = [1, 1]} : vector<512x32xf32> to vector<8x32xf32>
    %65 = vector.extract_strided_slice %7 {offsets = [312, 0], sizes = [8, 32], strides = [1, 1]} : vector<512x32xf32> to vector<8x32xf32>
    %66 = tpu.concatenate %62, %63, %64, %65 in 1 : vector<8x32xf32>, vector<8x32xf32>, vector<8x32xf32>, vector<8x32xf32> -> vector<8x128xf32>
    %c0_16 = arith.constant 0 : index
    %c1152 = arith.constant 1152 : index
    %67 = vector.load %arg12[%c0_16, %c1152] : memref<8x2048xf32, #tpu.memory_space<vmem>>, vector<8x128xf32>
    tpu.vector_store %arg12[%c0_16, %c1152], %66 {strides = array<i32>} : memref<8x2048xf32, #tpu.memory_space<vmem>>, vector<8x128xf32>,
    %68 = vector.extract_strided_slice %7 {offsets = [320, 0], sizes = [8, 32], strides = [1, 1]} : vector<512x32xf32> to vector<8x32xf32>
    %69 = vector.extract_strided_slice %7 {offsets = [328, 0], sizes = [8, 32], strides = [1, 1]} : vector<512x32xf32> to vector<8x32xf32>
    %70 = vector.extract_strided_slice %7 {offsets = [336, 0], sizes = [8, 32], strides = [1, 1]} : vector<512x32xf32> to vector<8x32xf32>
    %71 = vector.extract_strided_slice %7 {offsets = [344, 0], sizes = [8, 32], strides = [1, 1]} : vector<512x32xf32> to vector<8x32xf32>
    %72 = tpu.concatenate %68, %69, %70, %71 in 1 : vector<8x32xf32>, vector<8x32xf32>, vector<8x32xf32>, vector<8x32xf32> -> vector<8x128xf32>
    %c0_17 = arith.constant 0 : index
    %c1280 = arith.constant 1280 : index
    %73 = vector.load %arg12[%c0_17, %c1280] : memref<8x2048xf32, #tpu.memory_space<vmem>>, vector<8x128xf32>
    tpu.vector_store %arg12[%c0_17, %c1280], %72 {strides = array<i32>} : memref<8x2048xf32, #tpu.memory_space<vmem>>, vector<8x128xf32>,
    %74 = vector.extract_strided_slice %7 {offsets = [352, 0], sizes = [8, 32], strides = [1, 1]} : vector<512x32xf32> to vector<8x32xf32>
    %75 = vector.extract_strided_slice %7 {offsets = [360, 0], sizes = [8, 32], strides = [1, 1]} : vector<512x32xf32> to vector<8x32xf32>
    %76 = vector.extract_strided_slice %7 {offsets = [368, 0], sizes = [8, 32], strides = [1, 1]} : vector<512x32xf32> to vector<8x32xf32>
    %77 = vector.extract_strided_slice %7 {offsets = [376, 0], sizes = [8, 32], strides = [1, 1]} : vector<512x32xf32> to vector<8x32xf32>
    %78 = tpu.concatenate %74, %75, %76, %77 in 1 : vector<8x32xf32>, vector<8x32xf32>, vector<8x32xf32>, vector<8x32xf32> -> vector<8x128xf32>
    %c0_18 = arith.constant 0 : index
    %c1408 = arith.constant 1408 : index
    %79 = vector.load %arg12[%c0_18, %c1408] : memref<8x2048xf32, #tpu.memory_space<vmem>>, vector<8x128xf32>
    tpu.vector_store %arg12[%c0_18, %c1408], %78 {strides = array<i32>} : memref<8x2048xf32, #tpu.memory_space<vmem>>, vector<8x128xf32>,
    %80 = vector.extract_strided_slice %7 {offsets = [384, 0], sizes = [8, 32], strides = [1, 1]} : vector<512x32xf32> to vector<8x32xf32>
    %81 = vector.extract_strided_slice %7 {offsets = [392, 0], sizes = [8, 32], strides = [1, 1]} : vector<512x32xf32> to vector<8x32xf32>
    %82 = vector.extract_strided_slice %7 {offsets = [400, 0], sizes = [8, 32], strides = [1, 1]} : vector<512x32xf32> to vector<8x32xf32>
    %83 = vector.extract_strided_slice %7 {offsets = [408, 0], sizes = [8, 32], strides = [1, 1]} : vector<512x32xf32> to vector<8x32xf32>
    %84 = tpu.concatenate %80, %81, %82, %83 in 1 : vector<8x32xf32>, vector<8x32xf32>, vector<8x32xf32>, vector<8x32xf32> -> vector<8x128xf32>
    %c0_19 = arith.constant 0 : index
    %c1536 = arith.constant 1536 : index
    %85 = vector.load %arg12[%c0_19, %c1536] : memref<8x2048xf32, #tpu.memory_space<vmem>>, vector<8x128xf32>
    tpu.vector_store %arg12[%c0_19, %c1536], %84 {strides = array<i32>} : memref<8x2048xf32, #tpu.memory_space<vmem>>, vector<8x128xf32>,
    %86 = vector.extract_strided_slice %7 {offsets = [416, 0], sizes = [8, 32], strides = [1, 1]} : vector<512x32xf32> to vector<8x32xf32>
    %87 = vector.extract_strided_slice %7 {offsets = [424, 0], sizes = [8, 32], strides = [1, 1]} : vector<512x32xf32> to vector<8x32xf32>
    %88 = vector.extract_strided_slice %7 {offsets = [432, 0], sizes = [8, 32], strides = [1, 1]} : vector<512x32xf32> to vector<8x32xf32>
    %89 = vector.extract_strided_slice %7 {offsets = [440, 0], sizes = [8, 32], strides = [1, 1]} : vector<512x32xf32> to vector<8x32xf32>
    %90 = tpu.concatenate %86, %87, %88, %89 in 1 : vector<8x32xf32>, vector<8x32xf32>, vector<8x32xf32>, vector<8x32xf32> -> vector<8x128xf32>
    %c0_20 = arith.constant 0 : index
    %c1664 = arith.constant 1664 : index
    %91 = vector.load %arg12[%c0_20, %c1664] : memref<8x2048xf32, #tpu.memory_space<vmem>>, vector<8x128xf32>
    tpu.vector_store %arg12[%c0_20, %c1664], %90 {strides = array<i32>} : memref<8x2048xf32, #tpu.memory_space<vmem>>, vector<8x128xf32>,
    %92 = vector.extract_strided_slice %7 {offsets = [448, 0], sizes = [8, 32], strides = [1, 1]} : vector<512x32xf32> to vector<8x32xf32>
    %93 = vector.extract_strided_slice %7 {offsets = [456, 0], sizes = [8, 32], strides = [1, 1]} : vector<512x32xf32> to vector<8x32xf32>
    %94 = vector.extract_strided_slice %7 {offsets = [464, 0], sizes = [8, 32], strides = [1, 1]} : vector<512x32xf32> to vector<8x32xf32>
    %95 = vector.extract_strided_slice %7 {offsets = [472, 0], sizes = [8, 32], strides = [1, 1]} : vector<512x32xf32> to vector<8x32xf32>
    %96 = tpu.concatenate %92, %93, %94, %95 in 1 : vector<8x32xf32>, vector<8x32xf32>, vector<8x32xf32>, vector<8x32xf32> -> vector<8x128xf32>
    %c0_21 = arith.constant 0 : index
    %c1792 = arith.constant 1792 : index
    %97 = vector.load %arg12[%c0_21, %c1792] : memref<8x2048xf32, #tpu.memory_space<vmem>>, vector<8x128xf32>
    tpu.vector_store %arg12[%c0_21, %c1792], %96 {strides = array<i32>} : memref<8x2048xf32, #tpu.memory_space<vmem>>, vector<8x128xf32>,
    %98 = vector.extract_strided_slice %7 {offsets = [480, 0], sizes = [8, 32], strides = [1, 1]} : vector<512x32xf32> to vector<8x32xf32>
    %99 = vector.extract_strided_slice %7 {offsets = [488, 0], sizes = [8, 32], strides = [1, 1]} : vector<512x32xf32> to vector<8x32xf32>
    %100 = vector.extract_strided_slice %7 {offsets = [496, 0], sizes = [8, 32], strides = [1, 1]} : vector<512x32xf32> to vector<8x32xf32>
    %101 = vector.extract_strided_slice %7 {offsets = [504, 0], sizes = [8, 32], strides = [1, 1]} : vector<512x32xf32> to vector<8x32xf32>
    %102 = tpu.concatenate %98, %99, %100, %101 in 1 : vector<8x32xf32>, vector<8x32xf32>, vector<8x32xf32>, vector<8x32xf32> -> vector<8x128xf32>
    %c0_22 = arith.constant 0 : index
    %c1920 = arith.constant 1920 : index
    %103 = vector.load %arg12[%c0_22, %c1920] : memref<8x2048xf32, #tpu.memory_space<vmem>>, vector<8x128xf32>
    tpu.vector_store %arg12[%c0_22, %c1920], %102 {strides = array<i32>} : memref<8x2048xf32, #tpu.memory_space<vmem>>, vector<8x128xf32>,
    %c0_23 = arith.constant 0 : index
    %c0_24 = arith.constant 0 : index
    %104 = vector.load %arg4[%c0_23, %c0_24] : memref<1x192xf32, #tpu.memory_space<vmem>>, vector<1x192xf32>
    %c0_25 = arith.constant 0 : index
    %c0_26 = arith.constant 0 : index
    %105 = vector.load %arg6[%c0_25, %c0_26] : memref<1x64xf32, #tpu.memory_space<vmem>>, vector<1x64xf32>
    %cst_27 = arith.constant 0.000000e+00 : f32
    %106 = vector.broadcast %cst_27 : f32 to vector<8x64xf32>
    %c0_28 = arith.constant 0 : index
    %c0_29 = arith.constant 0 : index
    %107 = vector.load %arg12[%c0_28, %c0_29] : memref<8x2048xf32, #tpu.memory_space<vmem>>, vector<8x1024xf32>
    %108 = arith.truncf %107 : vector<8x1024xf32> to vector<8x1024xbf16>
    %c0_30 = arith.constant 0 : index
    %c0_31 = arith.constant 0 : index
    %109 = vector.load %arg3[%c0_30, %c0_31] : memref<1024x192xbf16, #tpu.memory_space<vmem>>, vector<1024x192xbf16>
    %cst_32 = arith.constant dense<0.000000e+00> : vector<8x192xf32>
    %110 = tpu.matmul %108, %109, %cst_32 {dimension_numbers = #tpu.dot_dimension_numbers<[1], [0], [0], [1], [0, 0, 1, 1], [], []>} : vector<8x1024xbf16>, vector<1024x192xbf16>, vector<8x192xf32> -> vector<8x192xf32>
    %111 = vector.broadcast %104 : vector<1x192xf32> to vector<8x192xf32>
    %112 = arith.addf %110, %111 : vector<8x192xf32>
    %cst_33 = arith.constant 0.000000e+00 : f32
    %113 = vector.broadcast %cst_33 : f32 to vector<8x192xf32>
    %114 = arith.maximumf %112, %113 : vector<8x192xf32>
    %115 = arith.truncf %114 : vector<8x192xf32> to vector<8x192xbf16>
    %c0_34 = arith.constant 0 : index
    %c0_35 = arith.constant 0 : index
    %c0_36 = arith.constant 0 : index
    %116 = vector.load %arg5[%c0_34, %c0_35, %c0_36] : memref<3x192x64xbf16, #tpu.memory_space<vmem>>, vector<1x192x64xbf16>
    %117 = vector.shape_cast %116 : vector<1x192x64xbf16> to vector<192x64xbf16>
    %cst_37 = arith.constant dense<0.000000e+00> : vector<8x64xf32>
    %118 = tpu.matmul %115, %117, %cst_37 {dimension_numbers = #tpu.dot_dimension_numbers<[1], [0], [0], [1], [0, 0, 1, 1], [], []>} : vector<8x192xbf16>, vector<192x64xbf16>, vector<8x64xf32> -> vector<8x64xf32>
    %119 = arith.addf %106, %118 : vector<8x64xf32>
    %c0_38 = arith.constant 0 : index
    %c512_39 = arith.constant 512 : index
    %120 = vector.load %arg12[%c0_38, %c512_39] : memref<8x2048xf32, #tpu.memory_space<vmem>>, vector<8x1024xf32>
    %121 = arith.truncf %120 : vector<8x1024xf32> to vector<8x1024xbf16>
    %c0_40 = arith.constant 0 : index
    %c0_41 = arith.constant 0 : index
    %122 = vector.load %arg3[%c0_40, %c0_41] : memref<1024x192xbf16, #tpu.memory_space<vmem>>, vector<1024x192xbf16>
    %cst_42 = arith.constant dense<0.000000e+00> : vector<8x192xf32>
    %123 = tpu.matmul %121, %122, %cst_42 {dimension_numbers = #tpu.dot_dimension_numbers<[1], [0], [0], [1], [0, 0, 1, 1], [], []>} : vector<8x1024xbf16>, vector<1024x192xbf16>, vector<8x192xf32> -> vector<8x192xf32>
    %124 = vector.broadcast %104 : vector<1x192xf32> to vector<8x192xf32>
    %125 = arith.addf %123, %124 : vector<8x192xf32>
    %cst_43 = arith.constant 0.000000e+00 : f32
    %126 = vector.broadcast %cst_43 : f32 to vector<8x192xf32>
    %127 = arith.maximumf %125, %126 : vector<8x192xf32>
    %128 = arith.truncf %127 : vector<8x192xf32> to vector<8x192xbf16>
    %c1 = arith.constant 1 : index
    %c0_44 = arith.constant 0 : index
    %c0_45 = arith.constant 0 : index
    %129 = vector.load %arg5[%c1, %c0_44, %c0_45] : memref<3x192x64xbf16, #tpu.memory_space<vmem>>, vector<1x192x64xbf16>
    %130 = vector.shape_cast %129 : vector<1x192x64xbf16> to vector<192x64xbf16>
    %cst_46 = arith.constant dense<0.000000e+00> : vector<8x64xf32>
    %131 = tpu.matmul %128, %130, %cst_46 {dimension_numbers = #tpu.dot_dimension_numbers<[1], [0], [0], [1], [0, 0, 1, 1], [], []>} : vector<8x192xbf16>, vector<192x64xbf16>, vector<8x64xf32> -> vector<8x64xf32>
    %132 = arith.addf %119, %131 : vector<8x64xf32>
    %c0_47 = arith.constant 0 : index
    %c1024_48 = arith.constant 1024 : index
    %133 = vector.load %arg12[%c0_47, %c1024_48] : memref<8x2048xf32, #tpu.memory_space<vmem>>, vector<8x1024xf32>
    %134 = arith.truncf %133 : vector<8x1024xf32> to vector<8x1024xbf16>
    %c0_49 = arith.constant 0 : index
    %c0_50 = arith.constant 0 : index
    %135 = vector.load %arg3[%c0_49, %c0_50] : memref<1024x192xbf16, #tpu.memory_space<vmem>>, vector<1024x192xbf16>
    %cst_51 = arith.constant dense<0.000000e+00> : vector<8x192xf32>
    %136 = tpu.matmul %134, %135, %cst_51 {dimension_numbers = #tpu.dot_dimension_numbers<[1], [0], [0], [1], [0, 0, 1, 1], [], []>} : vector<8x1024xbf16>, vector<1024x192xbf16>, vector<8x192xf32> -> vector<8x192xf32>
    %137 = vector.broadcast %104 : vector<1x192xf32> to vector<8x192xf32>
    %138 = arith.addf %136, %137 : vector<8x192xf32>
    %cst_52 = arith.constant 0.000000e+00 : f32
    %139 = vector.broadcast %cst_52 : f32 to vector<8x192xf32>
    %140 = arith.maximumf %138, %139 : vector<8x192xf32>
    %141 = arith.truncf %140 : vector<8x192xf32> to vector<8x192xbf16>
    %c2 = arith.constant 2 : index
    %c0_53 = arith.constant 0 : index
    %c0_54 = arith.constant 0 : index
    %142 = vector.load %arg5[%c2, %c0_53, %c0_54] : memref<3x192x64xbf16, #tpu.memory_space<vmem>>, vector<1x192x64xbf16>
    %143 = vector.shape_cast %142 : vector<1x192x64xbf16> to vector<192x64xbf16>
    %cst_55 = arith.constant dense<0.000000e+00> : vector<8x64xf32>
    %144 = tpu.matmul %141, %143, %cst_55 {dimension_numbers = #tpu.dot_dimension_numbers<[1], [0], [0], [1], [0, 0, 1, 1], [], []>} : vector<8x192xbf16>, vector<192x64xbf16>, vector<8x64xf32> -> vector<8x64xf32>
    %145 = arith.addf %132, %144 : vector<8x64xf32>
    %146 = vector.broadcast %105 : vector<1x64xf32> to vector<8x64xf32>
    %147 = arith.addf %145, %146 : vector<8x64xf32>
    %cst_56 = arith.constant 0.000000e+00 : f32
    %148 = vector.broadcast %cst_56 : f32 to vector<8x64xf32>
    %149 = arith.maximumf %147, %148 : vector<8x64xf32>
    %150 = arith.truncf %149 : vector<8x64xf32> to vector<8x64xbf16>
    %c0_57 = arith.constant 0 : index
    %c0_58 = arith.constant 0 : index
    %151 = vector.load %arg7[%c0_57, %c0_58] : memref<64x1024xbf16, #tpu.memory_space<vmem>>, vector<64x1024xbf16>
    %cst_59 = arith.constant dense<0.000000e+00> : vector<8x1024xf32>
    %152 = tpu.matmul %150, %151, %cst_59 {dimension_numbers = #tpu.dot_dimension_numbers<[1], [0], [0], [1], [0, 0, 1, 1], [], []>} : vector<8x64xbf16>, vector<64x1024xbf16>, vector<8x1024xf32> -> vector<8x1024xf32>
    %c0_60 = arith.constant 0 : index
    %c0_61 = arith.constant 0 : index
    %153 = vector.load %arg8[%c0_60, %c0_61] : memref<1x1024xf32, #tpu.memory_space<vmem>>, vector<1x1024xf32>
    %154 = vector.broadcast %153 : vector<1x1024xf32> to vector<8x1024xf32>
    %155 = arith.addf %152, %154 : vector<8x1024xf32>
    %cst_62 = arith.constant 0.000000e+00 : f32
    %156 = vector.broadcast %cst_62 : f32 to vector<8x1024xf32>
    %157 = arith.maximumf %155, %156 : vector<8x1024xf32>
    %158 = arith.truncf %157 : vector<8x1024xf32> to vector<8x1024xbf16>
    %c0_63 = arith.constant 0 : index
    %c0_64 = arith.constant 0 : index
    %159 = vector.load %arg9[%c0_63, %c0_64] : memref<1024x8xbf16, #tpu.memory_space<vmem>>, vector<1024x8xbf16>
    %cst_65 = arith.constant dense<0.000000e+00> : vector<8x8xf32>
    %160 = tpu.matmul %158, %159, %cst_65 {dimension_numbers = #tpu.dot_dimension_numbers<[1], [0], [0], [1], [0, 0, 1, 1], [], []>} : vector<8x1024xbf16>, vector<1024x8xbf16>, vector<8x8xf32> -> vector<8x8xf32>
    %c0_66 = arith.constant 0 : index
    %c0_67 = arith.constant 0 : index
    %161 = vector.load %arg10[%c0_66, %c0_67] : memref<1x8xf32, #tpu.memory_space<vmem>>, vector<1x8xf32>
    %162 = vector.broadcast %161 : vector<1x8xf32> to vector<8x8xf32>
    %163 = arith.addf %160, %162 : vector<8x8xf32>
    %164 = vector.extract_strided_slice %163 {offsets = [0, 0], sizes = [8, 1], strides = [1, 1]} : vector<8x8xf32> to vector<8x1xf32>
    %165 = vector.extract_strided_slice %163 {offsets = [0, 7], sizes = [8, 1], strides = [1, 1]} : vector<8x8xf32> to vector<8x1xf32>
    %166 = arith.subf %164, %165 : vector<8x1xf32>
    %167 = vector.broadcast %166 : vector<8x1xf32> to vector<8x8xf32>
    %168 = arith.addf %163, %167 : vector<8x8xf32>
    %c0_68 = arith.constant 0 : index
    %c0_69 = arith.constant 0 : index
    %169 = vector.load %arg11[%c0_68, %c0_69] : memref<8x8xf32, #tpu.memory_space<vmem>>, vector<8x8xf32>
    tpu.vector_store %arg11[%c0_68, %c0_69], %168 {strides = array<i32>} : memref<8x8xf32, #tpu.memory_space<vmem>>, vector<8x8xf32>,
    return
  }
}

</mosaic_0001>

<llo_original>
// kernel: forward.1
$region0: #{forward.1}
  #allocation0 [shape = 'u32[]', space=smem, size = 0x4, offset = 0x4, fixed_abs, tag = 'smem constant byte address 0x4 - core index']
  #allocation1 [shape = 'u32[72,128]{1,0:T(1,128)}', space=vmem, size = 0x9000, scoped, tag = 'internal scratch']
  #allocation2 [shape = 'f32[8,2048]{1,0:T(8,128)}', space=vmem, size = 0x10000, scoped, tag = 'scratch operand']
  %s0 = inlined_call_operand.vmem [shape: bf16[512,256], index: 0, kind: input, shape index: {}]
  %s1 = inlined_call_operand.vmem [shape: bf16[256,32], index: 1, kind: input, shape index: {}]
  %s2 = inlined_call_operand.vmem [shape: f32[1,32], index: 2, kind: input, shape index: {}]
  %s3 = inlined_call_operand.vmem [shape: bf16[1024,192], index: 3, kind: input, shape index: {}]
  %s4 = inlined_call_operand.vmem [shape: f32[1,192], index: 4, kind: input, shape index: {}]
  %s5 = inlined_call_operand.vmem [shape: bf16[3,192,64], index: 5, kind: input, shape index: {}]
  %s6 = inlined_call_operand.vmem [shape: f32[1,64], index: 6, kind: input, shape index: {}]
  %s7 = inlined_call_operand.vmem [shape: bf16[64,1024], index: 7, kind: input, shape index: {}]
  %s8 = inlined_call_operand.vmem [shape: f32[1,1024], index: 8, kind: input, shape index: {}]
  %s9 = inlined_call_operand.vmem [shape: bf16[1024,8], index: 9, kind: input, shape index: {}]
  %s10 = inlined_call_operand.vmem [shape: f32[1,8], index: 10, kind: input, shape index: {}]
  %s11 = inlined_call_operand.vmem [shape: f32[8,8], index: 11, kind: output, shape index: {}]
  %s12 = sld [smem:[#allocation0]]
  $region54: #{forward.1} parent=0
    _
  %s14 = ssub.s32 1, %s12
  %s15 = scalar_select 0, %s14, %s12
  // Predicated region
  $region2: #{forward.1} parent=0 // pred_check
    _
  $region3: #{forward.1} parent=0 // pred_check_branch
    %17 = sbr.rel (0) target = $region5
  $region4: #{forward.1} parent=0 // pred_region
    _
  $region5: #{forward.1} parent=0 // pred_fallthru
    _
  // Predicated region
  $region6: #{forward.1} parent=0 // pred_check
    _
  $region7: #{forward.1} parent=0 // pred_check_branch
    %19 = sbr.rel (0) target = $region9
  $region8: #{forward.1} parent=0 // pred_region
    _
  $region9: #{forward.1} parent=0 // pred_fallthru
    _
  // Predicated region
  $region10: #{forward.1} parent=0 // pred_check
    _
  $region11: #{forward.1} parent=0 // pred_check_branch
    %21 = sbr.rel (0) target = $region13
  $region12: #{forward.1} parent=0 // pred_region
    _
  $region13: #{forward.1} parent=0 // pred_fallthru
    _
  // Predicated region
  $region14: #{forward.1} parent=0 // pred_check
    _
  $region15: #{forward.1} parent=0 // pred_check_branch
    %23 = sbr.rel (0) target = $region17
  $region16: #{forward.1} parent=0 // pred_region
    _
  $region17: #{forward.1} parent=0 // pred_fallthru
    _
  // Predicated region
  $region18: #{forward.1} parent=0 // pred_check
    _
  $region19: #{forward.1} parent=0 // pred_check_branch
    %25 = sbr.rel (0) target = $region21
  $region20: #{forward.1} parent=0 // pred_region
    _
  $region21: #{forward.1} parent=0 // pred_fallthru
    _
  // Predicated region
  $region22: #{forward.1} parent=0 // pred_check
    _
  $region23: #{forward.1} parent=0 // pred_check_branch
    %27 = sbr.rel (0) target = $region25
  $region24: #{forward.1} parent=0 // pred_region
    _
  $region25: #{forward.1} parent=0 // pred_fallthru
    _
  // Predicated region
  $region26: #{forward.1} parent=0 // pred_check
    _
  $region27: #{forward.1} parent=0 // pred_check_branch
    %29 = sbr.rel (0) target = $region29
  $region28: #{forward.1} parent=0 // pred_region
    _
  $region29: #{forward.1} parent=0 // pred_fallthru
    _
  // Predicated region
  $region30: #{forward.1} parent=0 // pred_check
    _
  $region31: #{forward.1} parent=0 // pred_check_branch
    %31 = sbr.rel (0) target = $region33
  $region32: #{forward.1} parent=0 // pred_region
    _
  $region33: #{forward.1} parent=0 // pred_fallthru
    _
  // Predicated region
  $region34: #{forward.1} parent=0 // pred_check
    _
  $region35: #{forward.1} parent=0 // pred_check_branch
    %33 = sbr.rel (0) target = $region37
  $region36: #{forward.1} parent=0 // pred_region
    _
  $region37: #{forward.1} parent=0 // pred_fallthru
    _
  // Predicated region
  $region38: #{forward.1} parent=0 // pred_check
    _
  $region39: #{forward.1} parent=0 // pred_check_branch
    %35 = sbr.rel (0) target = $region41
  $region40: #{forward.1} parent=0 // pred_region
    _
  $region41: #{forward.1} parent=0 // pred_fallthru
    _
  // Predicated region
  $region42: #{forward.1} parent=0 // pred_check
    _
  $region43: #{forward.1} parent=0 // pred_check_branch
    %37 = sbr.rel (0) target = $region45
  $region44: #{forward.1} parent=0 // pred_region
    _
  $region45: #{forward.1} parent=0 // pred_fallthru
    _
  %v39 = vld [vmem:[%s2] sm:$0x1]
  %v40 = vld [vmem:[%s0] sm:$0xff]
  %v41 = vld [vmem:[%s0 + $0x8] sm:$0xff]
  %v42 = vld [vmem:[%s0 + $0x10] sm:$0xff]
  %v43 = vld [vmem:[%s0 + $0x18] sm:$0xff]
  %v44 = vld [vmem:[%s0 + $0x20] sm:$0xff]
  %v45 = vld [vmem:[%s0 + $0x28] sm:$0xff]
  %v46 = vld [vmem:[%s0 + $0x30] sm:$0xff]
  %v47 = vld [vmem:[%s0 + $0x38] sm:$0xff]
  %v48 = vld [vmem:[%s0 + $0x40] sm:$0xff]
  %v49 = vld [vmem:[%s0 + $0x48] sm:$0xff]
  %v50 = vld [vmem:[%s0 + $0x50] sm:$0xff]
  %v51 = vld [vmem:[%s0 + $0x58] sm:$0xff]
  %v52 = vld [vmem:[%s0 + $0x60] sm:$0xff]
  %v53 = vld [vmem:[%s0 + $0x68] sm:$0xff]
  %v54 = vld [vmem:[%s0 + $0x70] sm:$0xff]
  %v55 = vld [vmem:[%s0 + $0x78] sm:$0xff]
  %v56 = vld [vmem:[%s0 + $0x80] sm:$0xff]
  %v57 = vld [vmem:[%s0 + $0x88] sm:$0xff]
  %v58 = vld [vmem:[%s0 + $0x90] sm:$0xff]
  %v59 = vld [vmem:[%s0 + $0x98] sm:$0xff]
  %v60 = vld [vmem:[%s0 + $0xa0] sm:$0xff]
  %v61 = vld [vmem:[%s0 + $0xa8] sm:$0xff]
  %v62 = vld [vmem:[%s0 + $0xb0] sm:$0xff]
  %v63 = vld [vmem:[%s0 + $0xb8] sm:$0xff]
  %v64 = vld [vmem:[%s0 + $0xc0] sm:$0xff]
  %v65 = vld [vmem:[%s0 + $0xc8] sm:$0xff]
  %v66 = vld [vmem:[%s0 + $0xd0] sm:$0xff]
  %v67 = vld [vmem:[%s0 + $0xd8] sm:$0xff]
  %v68 = vld [vmem:[%s0 + $0xe0] sm:$0xff]
  %v69 = vld [vmem:[%s0 + $0xe8] sm:$0xff]
  %v70 = vld [vmem:[%s0 + $0xf0] sm:$0xff]
  %v71 = vld [vmem:[%s0 + $0xf8] sm:$0xff]
  %v72 = vld [vmem:[%s0 + $0x100] sm:$0xff]
  %v73 = vld [vmem:[%s0 + $0x108] sm:$0xff]
  %v74 = vld [vmem:[%s0 + $0x110] sm:$0xff]
  %v75 = vld [vmem:[%s0 + $0x118] sm:$0xff]
  %v76 = vld [vmem:[%s0 + $0x120] sm:$0xff]
  %v77 = vld [vmem:[%s0 + $0x128] sm:$0xff]
  %v78 = vld [vmem:[%s0 + $0x130] sm:$0xff]
  %v79 = vld [vmem:[%s0 + $0x138] sm:$0xff]
  %v80 = vld [vmem:[%s0 + $0x140] sm:$0xff]
  %v81 = vld [vmem:[%s0 + $0x148] sm:$0xff]
  %v82 = vld [vmem:[%s0 + $0x150] sm:$0xff]
  %v83 = vld [vmem:[%s0 + $0x158] sm:$0xff]
  %v84 = vld [vmem:[%s0 + $0x160] sm:$0xff]
  %v85 = vld [vmem:[%s0 + $0x168] sm:$0xff]
  %v86 = vld [vmem:[%s0 + $0x170] sm:$0xff]
  %v87 = vld [vmem:[%s0 + $0x178] sm:$0xff]
  %v88 = vld [vmem:[%s0 + $0x180] sm:$0xff]
  %v89 = vld [vmem:[%s0 + $0x188] sm:$0xff]
  %v90 = vld [vmem:[%s0 + $0x190] sm:$0xff]
  %v91 = vld [vmem:[%s0 + $0x198] sm:$0xff]
  %v92 = vld [vmem:[%s0 + $0x1a0] sm:$0xff]
  %v93 = vld [vmem:[%s0 + $0x1a8] sm:$0xff]
  %v94 = vld [vmem:[%s0 + $0x1b0] sm:$0xff]
  %v95 = vld [vmem:[%s0 + $0x1b8] sm:$0xff]
  %v96 = vld [vmem:[%s0 + $0x1c0] sm:$0xff]
  %v97 = vld [vmem:[%s0 + $0x1c8] sm:$0xff]
  %v98 = vld [vmem:[%s0 + $0x1d0] sm:$0xff]
  %v99 = vld [vmem:[%s0 + $0x1d8] sm:$0xff]
  %v100 = vld [vmem:[%s0 + $0x1e0] sm:$0xff]
  %v101 = vld [vmem:[%s0 + $0x1e8] sm:$0xff]
  %v102 = vld [vmem:[%s0 + $0x1f0] sm:$0xff]
  %v103 = vld [vmem:[%s0 + $0x1f8] sm:$0xff]
  %v104 = vld [vmem:[%s1] sm:$0xf]
  %v105 = vld [vmem:[%s1 + $0x4] sm:$0xf]
  %v106 = vld [vmem:[%s1 + $0x8] sm:$0xf]
  %v107 = vld [vmem:[%s1 + $0xc] sm:$0xf]
  %v108 = vld [vmem:[%s1 + $0x10] sm:$0xf]
  %v109 = vld [vmem:[%s1 + $0x14] sm:$0xf]
  %v110 = vld [vmem:[%s1 + $0x18] sm:$0xf]
  %v111 = vld [vmem:[%s1 + $0x1c] sm:$0xf]
  %v112 = vld [vmem:[%s1 + $0x20] sm:$0xf]
  %v113 = vld [vmem:[%s1 + $0x24] sm:$0xf]
  %v114 = vld [vmem:[%s1 + $0x28] sm:$0xf]
  %v115 = vld [vmem:[%s1 + $0x2c] sm:$0xf]
  %v116 = vld [vmem:[%s1 + $0x30] sm:$0xf]
  %v117 = vld [vmem:[%s1 + $0x34] sm:$0xf]
  %v118 = vld [vmem:[%s1 + $0x38] sm:$0xf]
  %v119 = vld [vmem:[%s1 + $0x3c] sm:$0xf]
  %v120 = vld [vmem:[%s1 + $0x40] sm:$0xf]
  %v121 = vld [vmem:[%s1 + $0x44] sm:$0xf]
  %v122 = vld [vmem:[%s1 + $0x48] sm:$0xf]
  %v123 = vld [vmem:[%s1 + $0x4c] sm:$0xf]
  %v124 = vld [vmem:[%s1 + $0x50] sm:$0xf]
  %v125 = vld [vmem:[%s1 + $0x54] sm:$0xf]
  %v126 = vld [vmem:[%s1 + $0x58] sm:$0xf]
  %v127 = vld [vmem:[%s1 + $0x5c] sm:$0xf]
  %v128 = vld [vmem:[%s1 + $0x60] sm:$0xf]
  %v129 = vld [vmem:[%s1 + $0x64] sm:$0xf]
  %v130 = vld [vmem:[%s1 + $0x68] sm:$0xf]
  %v131 = vld [vmem:[%s1 + $0x6c] sm:$0xf]
  %v132 = vld [vmem:[%s1 + $0x70] sm:$0xf]
  %v133 = vld [vmem:[%s1 + $0x74] sm:$0xf]
  %v134 = vld [vmem:[%s1 + $0x78] sm:$0xf]
  %v135 = vld [vmem:[%s1 + $0x7c] sm:$0xf]
  %v137 = vperm.slane %v39, 0
  %v203 = vunpack.c.l.b16 %v40
  %v204 = vunpack.c.h.b16 %v40
  %v205 = vunpack.c.l.b16 %v41
  %v206 = vunpack.c.h.b16 %v41
  %v207 = vunpack.c.l.b16 %v42
  %v208 = vunpack.c.h.b16 %v42
  %v209 = vunpack.c.l.b16 %v43
  %v210 = vunpack.c.h.b16 %v43
  %v211 = vunpack.c.l.b16 %v44
  %v212 = vunpack.c.h.b16 %v44
  %v213 = vunpack.c.l.b16 %v45
  %v214 = vunpack.c.h.b16 %v45
  %v215 = vunpack.c.l.b16 %v46
  %v216 = vunpack.c.h.b16 %v46
  %v217 = vunpack.c.l.b16 %v47
  %v218 = vunpack.c.h.b16 %v47
  %v219 = vunpack.c.l.b16 %v48
  %v220 = vunpack.c.h.b16 %v48
  %v221 = vunpack.c.l.b16 %v49
  %v222 = vunpack.c.h.b16 %v49
  %v223 = vunpack.c.l.b16 %v50
  %v224 = vunpack.c.h.b16 %v50
  %v225 = vunpack.c.l.b16 %v51
  %v226 = vunpack.c.h.b16 %v51
  %v227 = vunpack.c.l.b16 %v52
  %v228 = vunpack.c.h.b16 %v52
  %v229 = vunpack.c.l.b16 %v53
  %v230 = vunpack.c.h.b16 %v53
  %v231 = vunpack.c.l.b16 %v54
  %v232 = vunpack.c.h.b16 %v54
  %v233 = vunpack.c.l.b16 %v55
  %v234 = vunpack.c.h.b16 %v55
  %v235 = vunpack.c.l.b16 %v56
  %v236 = vunpack.c.h.b16 %v56
  %v237 = vunpack.c.l.b16 %v57
  %v238 = vunpack.c.h.b16 %v57
  %v239 = vunpack.c.l.b16 %v58
  %v240 = vunpack.c.h.b16 %v58
  %v241 = vunpack.c.l.b16 %v59
  %v242 = vunpack.c.h.b16 %v59
  %v243 = vunpack.c.l.b16 %v60
  %v244 = vunpack.c.h.b16 %v60
  %v245 = vunpack.c.l.b16 %v61
  %v246 = vunpack.c.h.b16 %v61
  %v247 = vunpack.c.l.b16 %v62
  %v248 = vunpack.c.h.b16 %v62
  %v249 = vunpack.c.l.b16 %v63
  %v250 = vunpack.c.h.b16 %v63
  %v251 = vunpack.c.l.b16 %v64
  %v252 = vunpack.c.h.b16 %v64
  %v253 = vunpack.c.l.b16 %v65
  %v254 = vunpack.c.h.b16 %v65
  %v255 = vunpack.c.l.b16 %v66
  %v256 = vunpack.c.h.b16 %v66
  %v257 = vunpack.c.l.b16 %v67
  %v258 = vunpack.c.h.b16 %v67
  %v259 = vunpack.c.l.b16 %v68
  %v260 = vunpack.c.h.b16 %v68
  %v261 = vunpack.c.l.b16 %v69
  %v262 = vunpack.c.h.b16 %v69
  %v263 = vunpack.c.l.b16 %v70
  %v264 = vunpack.c.h.b16 %v70
  %v265 = vunpack.c.l.b16 %v71
  %v266 = vunpack.c.h.b16 %v71
  %v267 = vunpack.c.l.b16 %v72
  %v268 = vunpack.c.h.b16 %v72
  %v269 = vunpack.c.l.b16 %v73
  %v270 = vunpack.c.h.b16 %v73
  %v271 = vunpack.c.l.b16 %v74
  %v272 = vunpack.c.h.b16 %v74
  %v273 = vunpack.c.l.b16 %v75
  %v274 = vunpack.c.h.b16 %v75
  %v275 = vunpack.c.l.b16 %v76
  %v276 = vunpack.c.h.b16 %v76
  %v277 = vunpack.c.l.b16 %v77
  %v278 = vunpack.c.h.b16 %v77
  %v279 = vunpack.c.l.b16 %v78
  %v280 = vunpack.c.h.b16 %v78
  %v281 = vunpack.c.l.b16 %v79
  %v282 = vunpack.c.h.b16 %v79
  %v283 = vunpack.c.l.b16 %v80
  %v284 = vunpack.c.h.b16 %v80
  %v285 = vunpack.c.l.b16 %v81
  %v286 = vunpack.c.h.b16 %v81
  %v287 = vunpack.c.l.b16 %v82
  %v288 = vunpack.c.h.b16 %v82
  %v289 = vunpack.c.l.b16 %v83
  %v290 = vunpack.c.h.b16 %v83
  %v291 = vunpack.c.l.b16 %v84
  %v292 = vunpack.c.h.b16 %v84
  %v293 = vunpack.c.l.b16 %v85
  %v294 = vunpack.c.h.b16 %v85
  %v295 = vunpack.c.l.b16 %v86
  %v296 = vunpack.c.h.b16 %v86
  %v297 = vunpack.c.l.b16 %v87
  %v298 = vunpack.c.h.b16 %v87
  %v299 = vunpack.c.l.b16 %v88
  %v300 = vunpack.c.h.b16 %v88
  %v301 = vunpack.c.l.b16 %v89
  %v302 = vunpack.c.h.b16 %v89
  %v303 = vunpack.c.l.b16 %v90
  %v304 = vunpack.c.h.b16 %v90
  %v305 = vunpack.c.l.b16 %v91
  %v306 = vunpack.c.h.b16 %v91
  %v307 = vunpack.c.l.b16 %v92
  %v308 = vunpack.c.h.b16 %v92
  %v309 = vunpack.c.l.b16 %v93
  %v310 = vunpack.c.h.b16 %v93
  %v311 = vunpack.c.l.b16 %v94
  %v312 = vunpack.c.h.b16 %v94
  %v313 = vunpack.c.l.b16 %v95
  %v314 = vunpack.c.h.b16 %v95
  %v315 = vunpack.c.l.b16 %v96
  %v316 = vunpack.c.h.b16 %v96
  %v317 = vunpack.c.l.b16 %v97
  %v318 = vunpack.c.h.b16 %v97
  %v319 = vunpack.c.l.b16 %v98
  %v320 = vunpack.c.h.b16 %v98
  %v321 = vunpack.c.l.b16 %v99
  %v322 = vunpack.c.h.b16 %v99
  %v323 = vunpack.c.l.b16 %v100
  %v324 = vunpack.c.h.b16 %v100
  %v325 = vunpack.c.l.b16 %v101
  %v326 = vunpack.c.h.b16 %v101
  %v327 = vunpack.c.l.b16 %v102
  %v328 = vunpack.c.h.b16 %v102
  %v329 = vunpack.c.l.b16 %v103
  %v330 = vunpack.c.h.b16 %v103
  %v331 = vpack.c.b16 %v205, %v203
  %v332 = vpack.c.b16 %v206, %v204
  %v333 = vpack.c.b16 %v209, %v207
  %v334 = vpack.c.b16 %v210, %v208
  %v335 = vpack.c.b16 %v213, %v211
  %v336 = vpack.c.b16 %v214, %v212
  %v337 = vpack.c.b16 %v217, %v215
  %v338 = vpack.c.b16 %v218, %v216
  %v339 = vpack.c.b16 %v221, %v219
  %v340 = vpack.c.b16 %v222, %v220
  %v341 = vpack.c.b16 %v225, %v223
  %v342 = vpack.c.b16 %v226, %v224
  %v343 = vpack.c.b16 %v229, %v227
  %v344 = vpack.c.b16 %v230, %v228
  %v345 = vpack.c.b16 %v233, %v231
  %v346 = vpack.c.b16 %v234, %v232
  %v347 = vpack.c.b16 %v237, %v235
  %v348 = vpack.c.b16 %v238, %v236
  %v349 = vpack.c.b16 %v241, %v239
  %v350 = vpack.c.b16 %v242, %v240
  %v351 = vpack.c.b16 %v245, %v243
  %v352 = vpack.c.b16 %v246, %v244
  %v353 = vpack.c.b16 %v249, %v247
  %v354 = vpack.c.b16 %v250, %v248
  %v355 = vpack.c.b16 %v253, %v251
  %v356 = vpack.c.b16 %v254, %v252
  %v357 = vpack.c.b16 %v257, %v255
  %v358 = vpack.c.b16 %v258, %v256
  %v359 = vpack.c.b16 %v261, %v259
  %v360 = vpack.c.b16 %v262, %v260
  %v361 = vpack.c.b16 %v265, %v263
  %v362 = vpack.c.b16 %v266, %v264
  %v363 = vpack.c.b16 %v269, %v267
  %v364 = vpack.c.b16 %v270, %v268
  %v365 = vpack.c.b16 %v273, %v271
  %v366 = vpack.c.b16 %v274, %v272
  %v367 = vpack.c.b16 %v277, %v275
  %v368 = vpack.c.b16 %v278, %v276
  %v369 = vpack.c.b16 %v281, %v279
  %v370 = vpack.c.b16 %v282, %v280
  %v371 = vpack.c.b16 %v285, %v283
  %v372 = vpack.c.b16 %v286, %v284
  %v373 = vpack.c.b16 %v289, %v287
  %v374 = vpack.c.b16 %v290, %v288
  %v375 = vpack.c.b16 %v293, %v291
  %v376 = vpack.c.b16 %v294, %v292
  %v377 = vpack.c.b16 %v297, %v295
  %v378 = vpack.c.b16 %v298, %v296
  %v379 = vpack.c.b16 %v301, %v299
  %v380 = vpack.c.b16 %v302, %v300
  %v381 = vpack.c.b16 %v305, %v303
  %v382 = vpack.c.b16 %v306, %v304
  %v383 = vpack.c.b16 %v309, %v307
  %v384 = vpack.c.b16 %v310, %v308
  %v385 = vpack.c.b16 %v313, %v311
  %v386 = vpack.c.b16 %v314, %v312
  %v387 = vpack.c.b16 %v317, %v315
  %v388 = vpack.c.b16 %v318, %v316
  %v389 = vpack.c.b16 %v321, %v319
  %v390 = vpack.c.b16 %v322, %v320
  %v391 = vpack.c.b16 %v325, %v323
  %v392 = vpack.c.b16 %v326, %v324
  %v393 = vpack.c.b16 %v329, %v327
  %v394 = vpack.c.b16 %v330, %v328
  %v491 = vunpack.c.l.b16 %v104
  %v492 = vunpack.c.l.b16 %v105
  %v493 = vunpack.c.l.b16 %v106
  %v494 = vunpack.c.l.b16 %v107
  %v495 = vunpack.c.l.b16 %v108
  %v496 = vunpack.c.l.b16 %v109
  %v497 = vunpack.c.l.b16 %v110
  %v498 = vunpack.c.l.b16 %v111
  %v499 = vunpack.c.l.b16 %v112
  %v500 = vunpack.c.l.b16 %v113
  %v501 = vunpack.c.l.b16 %v114
  %v502 = vunpack.c.l.b16 %v115
  %v503 = vunpack.c.l.b16 %v116
  %v504 = vunpack.c.l.b16 %v117
  %v505 = vunpack.c.l.b16 %v118
  %v506 = vunpack.c.l.b16 %v119
  %v507 = vunpack.c.l.b16 %v120
  %v508 = vunpack.c.l.b16 %v121
  %v509 = vunpack.c.l.b16 %v122
  %v510 = vunpack.c.l.b16 %v123
  %v511 = vunpack.c.l.b16 %v124
  %v512 = vunpack.c.l.b16 %v125
  %v513 = vunpack.c.l.b16 %v126
  %v514 = vunpack.c.l.b16 %v127
  %v515 = vunpack.c.l.b16 %v128
  %v516 = vunpack.c.l.b16 %v129
  %v517 = vunpack.c.l.b16 %v130
  %v518 = vunpack.c.l.b16 %v131
  %v519 = vunpack.c.l.b16 %v132
  %v520 = vunpack.c.l.b16 %v133
  %v521 = vunpack.c.l.b16 %v134
  %v522 = vunpack.c.l.b16 %v135
  %v523 = vpack.c.b16 %v492, %v491
  %v524 = vpack.c.b16 %v494, %v493
  %v525 = vpack.c.b16 %v496, %v495
  %v526 = vpack.c.b16 %v498, %v497
  %v527 = vpack.c.b16 %v500, %v499
  %v528 = vpack.c.b16 %v502, %v501
  %v529 = vpack.c.b16 %v504, %v503
  %v530 = vpack.c.b16 %v506, %v505
  %v531 = vpack.c.b16 %v508, %v507
  %v532 = vpack.c.b16 %v510, %v509
  %v533 = vpack.c.b16 %v512, %v511
  %v534 = vpack.c.b16 %v514, %v513
  %v535 = vpack.c.b16 %v516, %v515
  %v536 = vpack.c.b16 %v518, %v517
  %v537 = vpack.c.b16 %v520, %v519
  %v538 = vpack.c.b16 %v522, %v521
  %555 = vmatpush.bf16.msra.mxu0 %v530
  %556 = vmatpush.bf16.msra.mxu0 %v529
  %557 = vmatpush.bf16.msra.mxu0 %v528
  %558 = vmatpush.bf16.msra.mxu0 %v527
  %559 = vmatpush.bf16.msra.mxu0 %v526
  %560 = vmatpush.bf16.msra.mxu0 %v525
  %561 = vmatpush.bf16.msra.mxu0 %v524
  %562 = vmatpush.bf16.msra.mxu0 %v523
  %563 = vmatmul.bf16.gmra.mxu0 %v331
  %v564 = vpop.f32.mrf.mxu0
  %v565 = vadd.f32 %v137, %v564
  %v566 = vpop.f32.mrf.mxu0
  %v567 = vadd.f32 %v137, %v566
  %568 = vmatmul.bf16.gmra.mxu0 %v333
  %v569 = vpop.f32.mrf.mxu0
  %v570 = vadd.f32 %v137, %v569
  %v571 = vpop.f32.mrf.mxu0
  %v572 = vadd.f32 %v137, %v571
  %573 = vmatmul.bf16.gmra.mxu0 %v335
  %v574 = vpop.f32.mrf.mxu0
  %v575 = vadd.f32 %v137, %v574
  %v576 = vpop.f32.mrf.mxu0
  %v577 = vadd.f32 %v137, %v576
  %578 = vmatmul.bf16.gmra.mxu0 %v337
  %v579 = vpop.f32.mrf.mxu0
  %v580 = vadd.f32 %v137, %v579
  %v581 = vpop.f32.mrf.mxu0
  %v582 = vadd.f32 %v137, %v581
  %583 = vmatmul.bf16.gmra.mxu0 %v339
  %v584 = vpop.f32.mrf.mxu0
  %v585 = vadd.f32 %v137, %v584
  %v586 = vpop.f32.mrf.mxu0
  %v587 = vadd.f32 %v137, %v586
  %588 = vmatmul.bf16.gmra.mxu0 %v341
  %v589 = vpop.f32.mrf.mxu0
  %v590 = vadd.f32 %v137, %v589
  %v591 = vpop.f32.mrf.mxu0
  %v592 = vadd.f32 %v137, %v591
  %593 = vmatmul.bf16.gmra.mxu0 %v343
  %v594 = vpop.f32.mrf.mxu0
  %v595 = vadd.f32 %v137, %v594
  %v596 = vpop.f32.mrf.mxu0
  %v597 = vadd.f32 %v137, %v596
  %598 = vmatmul.bf16.gmra.mxu0 %v345
  %v599 = vpop.f32.mrf.mxu0
  %v600 = vadd.f32 %v137, %v599
  %v601 = vpop.f32.mrf.mxu0
  %v602 = vadd.f32 %v137, %v601
  %603 = vmatmul.bf16.gmra.mxu0 %v347
  %v604 = vpop.f32.mrf.mxu0
  %v605 = vadd.f32 %v137, %v604
  %v606 = vpop.f32.mrf.mxu0
  %v607 = vadd.f32 %v137, %v606
  %608 = vmatmul.bf16.gmra.mxu0 %v349
  %v609 = vpop.f32.mrf.mxu0
  %v610 = vadd.f32 %v137, %v609
  %v611 = vpop.f32.mrf.mxu0
  %v612 = vadd.f32 %v137, %v611
  %613 = vmatmul.bf16.gmra.mxu0 %v351
  %v614 = vpop.f32.mrf.mxu0
  %v615 = vadd.f32 %v137, %v614
  %v616 = vpop.f32.mrf.mxu0
  %v617 = vadd.f32 %v137, %v616
  %618 = vmatmul.bf16.gmra.mxu0 %v353
  %v619 = vpop.f32.mrf.mxu0
  %v620 = vadd.f32 %v137, %v619
  %v621 = vpop.f32.mrf.mxu0
  %v622 = vadd.f32 %v137, %v621
  %623 = vmatmul.bf16.gmra.mxu0 %v355
  %v624 = vpop.f32.mrf.mxu0
  %v625 = vadd.f32 %v137, %v624
  %v626 = vpop.f32.mrf.mxu0
  %v627 = vadd.f32 %v137, %v626
  %628 = vmatmul.bf16.gmra.mxu0 %v357
  %v629 = vpop.f32.mrf.mxu0
  %v630 = vadd.f32 %v137, %v629
  %v631 = vpop.f32.mrf.mxu0
  %v632 = vadd.f32 %v137, %v631
  %633 = vmatmul.bf16.gmra.mxu0 %v359
  %v634 = vpop.f32.mrf.mxu0
  %v635 = vadd.f32 %v137, %v634
  %v636 = vpop.f32.mrf.mxu0
  %v637 = vadd.f32 %v137, %v636
  %638 = vmatmul.bf16.gmra.mxu0 %v361
  %v639 = vpop.f32.mrf.mxu0
  %v640 = vadd.f32 %v137, %v639
  %v641 = vpop.f32.mrf.mxu0
  %v642 = vadd.f32 %v137, %v641
  %643 = vmatmul.bf16.gmra.mxu0 %v363
  %v644 = vpop.f32.mrf.mxu0
  %v645 = vadd.f32 %v137, %v644
  %v646 = vpop.f32.mrf.mxu0
  %v647 = vadd.f32 %v137, %v646
  %648 = vmatmul.bf16.gmra.mxu0 %v365
  %v649 = vpop.f32.mrf.mxu0
  %v650 = vadd.f32 %v137, %v649
  %v651 = vpop.f32.mrf.mxu0
  %v652 = vadd.f32 %v137, %v651
  %653 = vmatmul.bf16.gmra.mxu0 %v367
  %v654 = vpop.f32.mrf.mxu0
  %v655 = vadd.f32 %v137, %v654
  %v656 = vpop.f32.mrf.mxu0
  %v657 = vadd.f32 %v137, %v656
  %658 = vmatmul.bf16.gmra.mxu0 %v369
  %v659 = vpop.f32.mrf.mxu0
  %v660 = vadd.f32 %v137, %v659
  %v661 = vpop.f32.mrf.mxu0
  %v662 = vadd.f32 %v137, %v661
  %663 = vmatmul.bf16.gmra.mxu0 %v371
  %v664 = vpop.f32.mrf.mxu0
  %v665 = vadd.f32 %v137, %v664
  %v666 = vpop.f32.mrf.mxu0
  %v667 = vadd.f32 %v137, %v666
  %668 = vmatmul.bf16.gmra.mxu0 %v373
  %v669 = vpop.f32.mrf.mxu0
  %v670 = vadd.f32 %v137, %v669
  %v671 = vpop.f32.mrf.mxu0
  %v672 = vadd.f32 %v137, %v671
  %673 = vmatmul.bf16.gmra.mxu0 %v375
  %v674 = vpop.f32.mrf.mxu0
  %v675 = vadd.f32 %v137, %v674
  %v676 = vpop.f32.mrf.mxu0
  %v677 = vadd.f32 %v137, %v676
  %678 = vmatmul.bf16.gmra.mxu0 %v377
  %v679 = vpop.f32.mrf.mxu0
  %v680 = vadd.f32 %v137, %v679
  %v681 = vpop.f32.mrf.mxu0
  %v682 = vadd.f32 %v137, %v681
  %683 = vmatmul.bf16.gmra.mxu0 %v379
  %v684 = vpop.f32.mrf.mxu0
  %v685 = vadd.f32 %v137, %v684
  %v686 = vpop.f32.mrf.mxu0
  %v687 = vadd.f32 %v137, %v686
  %688 = vmatmul.bf16.gmra.mxu0 %v381
  %v689 = vpop.f32.mrf.mxu0
  %v690 = vadd.f32 %v137, %v689
  %v691 = vpop.f32.mrf.mxu0
  %v692 = vadd.f32 %v137, %v691
  %693 = vmatmul.bf16.gmra.mxu0 %v383
  %v694 = vpop.f32.mrf.mxu0
  %v695 = vadd.f32 %v137, %v694
  %v696 = vpop.f32.mrf.mxu0
  %v697 = vadd.f32 %v137, %v696
  %698 = vmatmul.bf16.gmra.mxu0 %v385
  %v699 = vpop.f32.mrf.mxu0
  %v700 = vadd.f32 %v137, %v699
  %v701 = vpop.f32.mrf.mxu0
  %v702 = vadd.f32 %v137, %v701
  %703 = vmatmul.bf16.gmra.mxu0 %v387
  %v704 = vpop.f32.mrf.mxu0
  %v705 = vadd.f32 %v137, %v704
  %v706 = vpop.f32.mrf.mxu0
  %v707 = vadd.f32 %v137, %v706
  %708 = vmatmul.bf16.gmra.mxu0 %v389
  %v709 = vpop.f32.mrf.mxu0
  %v710 = vadd.f32 %v137, %v709
  %v711 = vpop.f32.mrf.mxu0
  %v712 = vadd.f32 %v137, %v711
  %713 = vmatmul.bf16.gmra.mxu0 %v391
  %v714 = vpop.f32.mrf.mxu0
  %v715 = vadd.f32 %v137, %v714
  %v716 = vpop.f32.mrf.mxu0
  %v717 = vadd.f32 %v137, %v716
  %718 = vmatmul.bf16.gmra.mxu0 %v393
  %v719 = vpop.f32.mrf.mxu0
  %v720 = vadd.f32 %v137, %v719
  %v721 = vpop.f32.mrf.mxu0
  %v722 = vadd.f32 %v137, %v721
  %723 = vdwg.mxu0
  %724 = vmatpush.bf16.msra.mxu0 %v538
  %725 = vmatpush.bf16.msra.mxu0 %v537
  %726 = vmatpush.bf16.msra.mxu0 %v536
  %727 = vmatpush.bf16.msra.mxu0 %v535
  %728 = vmatpush.bf16.msra.mxu0 %v534
  %729 = vmatpush.bf16.msra.mxu0 %v533
  %730 = vmatpush.bf16.msra.mxu0 %v532
  %731 = vmatpush.bf16.msra.mxu0 %v531
  %732 = vmatmul.bf16.gmra.mxu0 %v332
  %v733 = vpop.f32.mrf.mxu0
  %v734 = vadd.f32 %v565, %v733
  %v735 = vpop.f32.mrf.mxu0
  %v736 = vadd.f32 %v567, %v735
  %737 = vmatmul.bf16.gmra.mxu0 %v334
  %v738 = vpop.f32.mrf.mxu0
  %v739 = vadd.f32 %v570, %v738
  %v740 = vpop.f32.mrf.mxu0
  %v741 = vadd.f32 %v572, %v740
  %742 = vmatmul.bf16.gmra.mxu0 %v336
  %v743 = vpop.f32.mrf.mxu0
  %v744 = vadd.f32 %v575, %v743
  %v745 = vpop.f32.mrf.mxu0
  %v746 = vadd.f32 %v577, %v745
  %747 = vmatmul.bf16.gmra.mxu0 %v338
  %v748 = vpop.f32.mrf.mxu0
  %v749 = vadd.f32 %v580, %v748
  %v750 = vpop.f32.mrf.mxu0
  %v751 = vadd.f32 %v582, %v750
  %752 = vmatmul.bf16.gmra.mxu0 %v340
  %v753 = vpop.f32.mrf.mxu0
  %v754 = vadd.f32 %v585, %v753
  %v755 = vpop.f32.mrf.mxu0
  %v756 = vadd.f32 %v587, %v755
  %757 = vmatmul.bf16.gmra.mxu0 %v342
  %v758 = vpop.f32.mrf.mxu0
  %v759 = vadd.f32 %v590, %v758
  %v760 = vpop.f32.mrf.mxu0
  %v761 = vadd.f32 %v592, %v760
  %762 = vmatmul.bf16.gmra.mxu0 %v344
  %v763 = vpop.f32.mrf.mxu0
  %v764 = vadd.f32 %v595, %v763
  %v765 = vpop.f32.mrf.mxu0
  %v766 = vadd.f32 %v597, %v765
  %767 = vmatmul.bf16.gmra.mxu0 %v346
  %v768 = vpop.f32.mrf.mxu0
  %v769 = vadd.f32 %v600, %v768
  %v770 = vpop.f32.mrf.mxu0
  %v771 = vadd.f32 %v602, %v770
  %772 = vmatmul.bf16.gmra.mxu0 %v348
  %v773 = vpop.f32.mrf.mxu0
  %v774 = vadd.f32 %v605, %v773
  %v775 = vpop.f32.mrf.mxu0
  %v776 = vadd.f32 %v607, %v775
  %777 = vmatmul.bf16.gmra.mxu0 %v350
  %v778 = vpop.f32.mrf.mxu0
  %v779 = vadd.f32 %v610, %v778
  %v780 = vpop.f32.mrf.mxu0
  %v781 = vadd.f32 %v612, %v780
  %782 = vmatmul.bf16.gmra.mxu0 %v352
  %v783 = vpop.f32.mrf.mxu0
  %v784 = vadd.f32 %v615, %v783
  %v785 = vpop.f32.mrf.mxu0
  %v786 = vadd.f32 %v617, %v785
  %787 = vmatmul.bf16.gmra.mxu0 %v354
  %v788 = vpop.f32.mrf.mxu0
  %v789 = vadd.f32 %v620, %v788
  %v790 = vpop.f32.mrf.mxu0
  %v791 = vadd.f32 %v622, %v790
  %792 = vmatmul.bf16.gmra.mxu0 %v356
  %v793 = vpop.f32.mrf.mxu0
  %v794 = vadd.f32 %v625, %v793
  %v795 = vpop.f32.mrf.mxu0
  %v796 = vadd.f32 %v627, %v795
  %797 = vmatmul.bf16.gmra.mxu0 %v358
  %v798 = vpop.f32.mrf.mxu0
  %v799 = vadd.f32 %v630, %v798
  %v800 = vpop.f32.mrf.mxu0
  %v801 = vadd.f32 %v632, %v800
  %802 = vmatmul.bf16.gmra.mxu0 %v360
  %v803 = vpop.f32.mrf.mxu0
  %v804 = vadd.f32 %v635, %v803
  %v805 = vpop.f32.mrf.mxu0
  %v806 = vadd.f32 %v637, %v805
  %807 = vmatmul.bf16.gmra.mxu0 %v362
  %v808 = vpop.f32.mrf.mxu0
  %v809 = vadd.f32 %v640, %v808
  %v810 = vpop.f32.mrf.mxu0
  %v811 = vadd.f32 %v642, %v810
  %812 = vmatmul.bf16.gmra.mxu0 %v364
  %v813 = vpop.f32.mrf.mxu0
  %v814 = vadd.f32 %v645, %v813
  %v815 = vpop.f32.mrf.mxu0
  %v816 = vadd.f32 %v647, %v815
  %817 = vmatmul.bf16.gmra.mxu0 %v366
  %v818 = vpop.f32.mrf.mxu0
  %v819 = vadd.f32 %v650, %v818
  %v820 = vpop.f32.mrf.mxu0
  %v821 = vadd.f32 %v652, %v820
  %822 = vmatmul.bf16.gmra.mxu0 %v368
  %v823 = vpop.f32.mrf.mxu0
  %v824 = vadd.f32 %v655, %v823
  %v825 = vpop.f32.mrf.mxu0
  %v826 = vadd.f32 %v657, %v825
  %827 = vmatmul.bf16.gmra.mxu0 %v370
  %v828 = vpop.f32.mrf.mxu0
  %v829 = vadd.f32 %v660, %v828
  %v830 = vpop.f32.mrf.mxu0
  %v831 = vadd.f32 %v662, %v830
  %832 = vmatmul.bf16.gmra.mxu0 %v372
  %v833 = vpop.f32.mrf.mxu0
  %v834 = vadd.f32 %v665, %v833
  %v835 = vpop.f32.mrf.mxu0
  %v836 = vadd.f32 %v667, %v835
  %837 = vmatmul.bf16.gmra.mxu0 %v374
  %v838 = vpop.f32.mrf.mxu0
  %v839 = vadd.f32 %v670, %v838
  %v840 = vpop.f32.mrf.mxu0
  %v841 = vadd.f32 %v672, %v840
  %842 = vmatmul.bf16.gmra.mxu0 %v376
  %v843 = vpop.f32.mrf.mxu0
  %v844 = vadd.f32 %v675, %v843
  %v845 = vpop.f32.mrf.mxu0
  %v846 = vadd.f32 %v677, %v845
  %847 = vmatmul.bf16.gmra.mxu0 %v378
  %v848 = vpop.f32.mrf.mxu0
  %v849 = vadd.f32 %v680, %v848
  %v850 = vpop.f32.mrf.mxu0
  %v851 = vadd.f32 %v682, %v850
  %852 = vmatmul.bf16.gmra.mxu0 %v380
  %v853 = vpop.f32.mrf.mxu0
  %v854 = vadd.f32 %v685, %v853
  %v855 = vpop.f32.mrf.mxu0
  %v856 = vadd.f32 %v687, %v855
  %857 = vmatmul.bf16.gmra.mxu0 %v382
  %v858 = vpop.f32.mrf.mxu0
  %v859 = vadd.f32 %v690, %v858
  %v860 = vpop.f32.mrf.mxu0
  %v861 = vadd.f32 %v692, %v860
  %862 = vmatmul.bf16.gmra.mxu0 %v384
  %v863 = vpop.f32.mrf.mxu0
  %v864 = vadd.f32 %v695, %v863
  %v865 = vpop.f32.mrf.mxu0
  %v866 = vadd.f32 %v697, %v865
  %867 = vmatmul.bf16.gmra.mxu0 %v386
  %v868 = vpop.f32.mrf.mxu0
  %v869 = vadd.f32 %v700, %v868
  %v870 = vpop.f32.mrf.mxu0
  %v871 = vadd.f32 %v702, %v870
  %872 = vmatmul.bf16.gmra.mxu0 %v388
  %v873 = vpop.f32.mrf.mxu0
  %v874 = vadd.f32 %v705, %v873
  %v875 = vpop.f32.mrf.mxu0
  %v876 = vadd.f32 %v707, %v875
  %877 = vmatmul.bf16.gmra.mxu0 %v390
  %v878 = vpop.f32.mrf.mxu0
  %v879 = vadd.f32 %v710, %v878
  %v880 = vpop.f32.mrf.mxu0
  %v881 = vadd.f32 %v712, %v880
  %882 = vmatmul.bf16.gmra.mxu0 %v392
  %v883 = vpop.f32.mrf.mxu0
  %v884 = vadd.f32 %v715, %v883
  %v885 = vpop.f32.mrf.mxu0
  %v886 = vadd.f32 %v717, %v885
  %887 = vmatmul.bf16.gmra.mxu0 %v394
  %v888 = vpop.f32.mrf.mxu0
  %v889 = vadd.f32 %v720, %v888
  %v890 = vpop.f32.mrf.mxu0
  %v891 = vadd.f32 %v722, %v890
  %892 = vdwg.mxu0
  %v893 = vmax.f32 %v734, 0.0
  %v894 = vmax.f32 %v736, 0.0
  %v895 = vmax.f32 %v739, 0.0
  %v896 = vmax.f32 %v741, 0.0
  %v897 = vmax.f32 %v744, 0.0
  %v898 = vmax.f32 %v746, 0.0
  %v899 = vmax.f32 %v749, 0.0
  %v900 = vmax.f32 %v751, 0.0
  %v901 = vmax.f32 %v754, 0.0
  %v902 = vmax.f32 %v756, 0.0
  %v903 = vmax.f32 %v759, 0.0
  %v904 = vmax.f32 %v761, 0.0
  %v905 = vmax.f32 %v764, 0.0
  %v906 = vmax.f32 %v766, 0.0
  %v907 = vmax.f32 %v769, 0.0
  %v908 = vmax.f32 %v771, 0.0
  %v909 = vmax.f32 %v774, 0.0
  %v910 = vmax.f32 %v776, 0.0
  %v911 = vmax.f32 %v779, 0.0
  %v912 = vmax.f32 %v781, 0.0
  %v913 = vmax.f32 %v784, 0.0
  %v914 = vmax.f32 %v786, 0.0
  %v915 = vmax.f32 %v789, 0.0
  %v916 = vmax.f32 %v791, 0.0
  %v917 = vmax.f32 %v794, 0.0
  %v918 = vmax.f32 %v796, 0.0
  %v919 = vmax.f32 %v799, 0.0
  %v920 = vmax.f32 %v801, 0.0
  %v921 = vmax.f32 %v804, 0.0
  %v922 = vmax.f32 %v806, 0.0
  %v923 = vmax.f32 %v809, 0.0
  %v924 = vmax.f32 %v811, 0.0
  %v925 = vmax.f32 %v814, 0.0
  %v926 = vmax.f32 %v816, 0.0
  %v927 = vmax.f32 %v819, 0.0
  %v928 = vmax.f32 %v821, 0.0
  %v929 = vmax.f32 %v824, 0.0
  %v930 = vmax.f32 %v826, 0.0
  %v931 = vmax.f32 %v829, 0.0
  %v932 = vmax.f32 %v831, 0.0
  %v933 = vmax.f32 %v834, 0.0
  %v934 = vmax.f32 %v836, 0.0
  %v935 = vmax.f32 %v839, 0.0
  %v936 = vmax.f32 %v841, 0.0
  %v937 = vmax.f32 %v844, 0.0
  %v938 = vmax.f32 %v846, 0.0
  %v939 = vmax.f32 %v849, 0.0
  %v940 = vmax.f32 %v851, 0.0
  %v941 = vmax.f32 %v854, 0.0
  %v942 = vmax.f32 %v856, 0.0
  %v943 = vmax.f32 %v859, 0.0
  %v944 = vmax.f32 %v861, 0.0
  %v945 = vmax.f32 %v864, 0.0
  %v946 = vmax.f32 %v866, 0.0
  %v947 = vmax.f32 %v869, 0.0
  %v948 = vmax.f32 %v871, 0.0
  %v949 = vmax.f32 %v874, 0.0
  %v950 = vmax.f32 %v876, 0.0
  %v951 = vmax.f32 %v879, 0.0
  %v952 = vmax.f32 %v881, 0.0
  %v953 = vmax.f32 %v884, 0.0
  %v954 = vmax.f32 %v886, 0.0
  %v955 = vmax.f32 %v889, 0.0
  %v956 = vmax.f32 %v891, 0.0
  %958 = vrot.lane.b32.xlu0 %v894, 32
  %v959 = vpop.permute.xlu0 %958
  %962 = vrot.lane.b32.xlu0 %v895, 64
  %v963 = vpop.permute.xlu0 %962
  %966 = vrot.lane.b32.xlu0 %v896, 96
  %v967 = vpop.permute.xlu0 %966
  %vm969 = vcmask 261120
  %v970 = vsel %vm969, %v893, %v959
  %vm971 = vcmask 523264
  %v972 = vsel %vm971, %v970, %v963
  %vm973 = vcmask 785408
  %v974 = vsel %vm973, %v972, %v967
  %975 = vst [vmem:[#allocation2] sm:$0xff] %v974
  %977 = vrot.lane.b32.xlu0 %v898, 32
  %v978 = vpop.permute.xlu0 %977
  %981 = vrot.lane.b32.xlu0 %v899, 64
  %v982 = vpop.permute.xlu0 %981
  %985 = vrot.lane.b32.xlu0 %v900, 96
  %v986 = vpop.permute.xlu0 %985
  %v988 = vsel %vm969, %v897, %v978
  %v989 = vsel %vm971, %v988, %v982
  %v990 = vsel %vm973, %v989, %v986
  %991 = vst [vmem:[#allocation2 + $0x8] sm:$0xff] %v990
  %993 = vrot.lane.b32.xlu0 %v902, 32
  %v994 = vpop.permute.xlu0 %993
  %997 = vrot.lane.b32.xlu0 %v903, 64
  %v998 = vpop.permute.xlu0 %997
  %1001 = vrot.lane.b32.xlu0 %v904, 96
  %v1002 = vpop.permute.xlu0 %1001
  %v1004 = vsel %vm969, %v901, %v994
  %v1005 = vsel %vm971, %v1004, %v998
  %v1006 = vsel %vm973, %v1005, %v1002
  %1007 = vst [vmem:[#allocation2 + $0x10] sm:$0xff] %v1006
  %1009 = vrot.lane.b32.xlu0 %v906, 32
  %v1010 = vpop.permute.xlu0 %1009
  %1013 = vrot.lane.b32.xlu0 %v907, 64
  %v1014 = vpop.permute.xlu0 %1013
  %1017 = vrot.lane.b32.xlu0 %v908, 96
  %v1018 = vpop.permute.xlu0 %1017
  %v1020 = vsel %vm969, %v905, %v1010
  %v1021 = vsel %vm971, %v1020, %v1014
  %v1022 = vsel %vm973, %v1021, %v1018
  %1023 = vst [vmem:[#allocation2 + $0x18] sm:$0xff] %v1022
  %1025 = vrot.lane.b32.xlu0 %v910, 32
  %v1026 = vpop.permute.xlu0 %1025
  %1029 = vrot.lane.b32.xlu0 %v911, 64
  %v1030 = vpop.permute.xlu0 %1029
  %1033 = vrot.lane.b32.xlu0 %v912, 96
  %v1034 = vpop.permute.xlu0 %1033
  %v1036 = vsel %vm969, %v909, %v1026
  %v1037 = vsel %vm971, %v1036, %v1030
  %v1038 = vsel %vm973, %v1037, %v1034
  %1039 = vst [vmem:[#allocation2 + $0x20] sm:$0xff] %v1038
  %1041 = vrot.lane.b32.xlu0 %v914, 32
  %v1042 = vpop.permute.xlu0 %1041
  %1045 = vrot.lane.b32.xlu0 %v915, 64
  %v1046 = vpop.permute.xlu0 %1045
  %1049 = vrot.lane.b32.xlu0 %v916, 96
  %v1050 = vpop.permute.xlu0 %1049
  %v1052 = vsel %vm969, %v913, %v1042
  %v1053 = vsel %vm971, %v1052, %v1046
  %v1054 = vsel %vm973, %v1053, %v1050
  %1055 = vst [vmem:[#allocation2 + $0x28] sm:$0xff] %v1054
  %1057 = vrot.lane.b32.xlu0 %v918, 32
  %v1058 = vpop.permute.xlu0 %1057
  %1061 = vrot.lane.b32.xlu0 %v919, 64
  %v1062 = vpop.permute.xlu0 %1061
  %1065 = vrot.lane.b32.xlu0 %v920, 96
  %v1066 = vpop.permute.xlu0 %1065
  %v1068 = vsel %vm969, %v917, %v1058
  %v1069 = vsel %vm971, %v1068, %v1062
  %v1070 = vsel %vm973, %v1069, %v1066
  %1071 = vst [vmem:[#allocation2 + $0x30] sm:$0xff] %v1070
  %1073 = vrot.lane.b32.xlu0 %v922, 32
  %v1074 = vpop.permute.xlu0 %1073
  %1077 = vrot.lane.b32.xlu0 %v923, 64
  %v1078 = vpop.permute.xlu0 %1077
  %1081 = vrot.lane.b32.xlu0 %v924, 96
  %v1082 = vpop.permute.xlu0 %1081
  %v1084 = vsel %vm969, %v921, %v1074
  %v1085 = vsel %vm971, %v1084, %v1078
  %v1086 = vsel %vm973, %v1085, %v1082
  %1087 = vst [vmem:[#allocation2 + $0x38] sm:$0xff] %v1086
  %1089 = vrot.lane.b32.xlu0 %v926, 32
  %v1090 = vpop.permute.xlu0 %1089
  %1093 = vrot.lane.b32.xlu0 %v927, 64
  %v1094 = vpop.permute.xlu0 %1093
  %1097 = vrot.lane.b32.xlu0 %v928, 96
  %v1098 = vpop.permute.xlu0 %1097
  %v1100 = vsel %vm969, %v925, %v1090
  %v1101 = vsel %vm971, %v1100, %v1094
  %v1102 = vsel %vm973, %v1101, %v1098
  %1103 = vst [vmem:[#allocation2 + $0x40] sm:$0xff] %v1102
  %1105 = vrot.lane.b32.xlu0 %v930, 32
  %v1106 = vpop.permute.xlu0 %1105
  %1109 = vrot.lane.b32.xlu0 %v931, 64
  %v1110 = vpop.permute.xlu0 %1109
  %1113 = vrot.lane.b32.xlu0 %v932, 96
  %v1114 = vpop.permute.xlu0 %1113
  %v1116 = vsel %vm969, %v929, %v1106
  %v1117 = vsel %vm971, %v1116, %v1110
  %v1118 = vsel %vm973, %v1117, %v1114
  %1119 = vst [vmem:[#allocation2 + $0x48] sm:$0xff] %v1118
  %1121 = vrot.lane.b32.xlu0 %v934, 32
  %v1122 = vpop.permute.xlu0 %1121
  %1125 = vrot.lane.b32.xlu0 %v935, 64
  %v1126 = vpop.permute.xlu0 %1125
  %1129 = vrot.lane.b32.xlu0 %v936, 96
  %v1130 = vpop.permute.xlu0 %1129
  %v1132 = vsel %vm969, %v933, %v1122
  %v1133 = vsel %vm971, %v1132, %v1126
  %v1134 = vsel %vm973, %v1133, %v1130
  %1135 = vst [vmem:[#allocation2 + $0x50] sm:$0xff] %v1134
  %1137 = vrot.lane.b32.xlu0 %v938, 32
  %v1138 = vpop.permute.xlu0 %1137
  %1141 = vrot.lane.b32.xlu0 %v939, 64
  %v1142 = vpop.permute.xlu0 %1141
  %1145 = vrot.lane.b32.xlu0 %v940, 96
  %v1146 = vpop.permute.xlu0 %1145
  %v1148 = vsel %vm969, %v937, %v1138
  %v1149 = vsel %vm971, %v1148, %v1142
  %v1150 = vsel %vm973, %v1149, %v1146
  %1151 = vst [vmem:[#allocation2 + $0x58] sm:$0xff] %v1150
  %1153 = vrot.lane.b32.xlu0 %v942, 32
  %v1154 = vpop.permute.xlu0 %1153
  %1157 = vrot.lane.b32.xlu0 %v943, 64
  %v1158 = vpop.permute.xlu0 %1157
  %1161 = vrot.lane.b32.xlu0 %v944, 96
  %v1162 = vpop.permute.xlu0 %1161
  %v1164 = vsel %vm969, %v941, %v1154
  %v1165 = vsel %vm971, %v1164, %v1158
  %v1166 = vsel %vm973, %v1165, %v1162
  %1167 = vst [vmem:[#allocation2 + $0x60] sm:$0xff] %v1166
  %1169 = vrot.lane.b32.xlu0 %v946, 32
  %v1170 = vpop.permute.xlu0 %1169
  %1173 = vrot.lane.b32.xlu0 %v947, 64
  %v1174 = vpop.permute.xlu0 %1173
  %1177 = vrot.lane.b32.xlu0 %v948, 96
  %v1178 = vpop.permute.xlu0 %1177
  %v1180 = vsel %vm969, %v945, %v1170
  %v1181 = vsel %vm971, %v1180, %v1174
  %v1182 = vsel %vm973, %v1181, %v1178
  %1183 = vst [vmem:[#allocation2 + $0x68] sm:$0xff] %v1182
  %1185 = vrot.lane.b32.xlu0 %v950, 32
  %v1186 = vpop.permute.xlu0 %1185
  %1189 = vrot.lane.b32.xlu0 %v951, 64
  %v1190 = vpop.permute.xlu0 %1189
  %1193 = vrot.lane.b32.xlu0 %v952, 96
  %v1194 = vpop.permute.xlu0 %1193
  %v1196 = vsel %vm969, %v949, %v1186
  %v1197 = vsel %vm971, %v1196, %v1190
  %v1198 = vsel %vm973, %v1197, %v1194
  %1199 = vst [vmem:[#allocation2 + $0x70] sm:$0xff] %v1198
  %1201 = vrot.lane.b32.xlu0 %v954, 32
  %v1202 = vpop.permute.xlu0 %1201
  %1205 = vrot.lane.b32.xlu0 %v955, 64
  %v1206 = vpop.permute.xlu0 %1205
  %1209 = vrot.lane.b32.xlu0 %v956, 96
  %v1210 = vpop.permute.xlu0 %1209
  %v1212 = vsel %vm969, %v953, %v1202
  %v1213 = vsel %vm971, %v1212, %v1206
  %v1214 = vsel %vm973, %v1213, %v1210
  %1215 = vst [vmem:[#allocation2 + $0x78] sm:$0xff] %v1214
  %v1216 = vld [vmem:[%s4] sm:$0x3]
  %v1217 = vld [vmem:[%s6] sm:$0x1]
  %v1218 = vld [vmem:[#allocation2] sm:$0xff]
  %v1219 = vld [vmem:[#allocation2 + $0x8] sm:$0xff]
  %v1220 = vld [vmem:[#allocation2 + $0x10] sm:$0xff]
  %v1221 = vld [vmem:[#allocation2 + $0x18] sm:$0xff]
  %v1222 = vld [vmem:[#allocation2 + $0x20] sm:$0xff]
  %v1223 = vld [vmem:[#allocation2 + $0x28] sm:$0xff]
  %v1224 = vld [vmem:[#allocation2 + $0x30] sm:$0xff]
  %v1225 = vld [vmem:[#allocation2 + $0x38] sm:$0xff]
  %v1226 = vpack.c.bf16 %v1218, %v1218
  %v1227 = vpack.c.bf16 %v1219, %v1219
  %v1228 = vpack.c.bf16 %v1220, %v1220
  %v1229 = vpack.c.bf16 %v1221, %v1221
  %v1230 = vpack.c.bf16 %v1222, %v1222
  %v1231 = vpack.c.bf16 %v1223, %v1223
  %v1232 = vpack.c.bf16 %v1224, %v1224
  %v1233 = vpack.c.bf16 %v1225, %v1225
  %v1234 = vld [vmem:[%s3] sm:$0xff]
  %v1235 = vld [vmem:[%s3 + $0x8] sm:$0xff]
  %v1236 = vld [vmem:[%s3 + $0x10] sm:$0xff]
  %v1237 = vld [vmem:[%s3 + $0x18] sm:$0xff]
  %v1238 = vld [vmem:[%s3 + $0x20] sm:$0xff]
  %v1239 = vld [vmem:[%s3 + $0x28] sm:$0xff]
  %v1240 = vld [vmem:[%s3 + $0x30] sm:$0xff]
  %v1241 = vld [vmem:[%s3 + $0x38] sm:$0xff]
  %v1242 = vld [vmem:[%s3 + $0x40] sm:$0xff]
  %v1243 = vld [vmem:[%s3 + $0x48] sm:$0xff]
  %v1244 = vld [vmem:[%s3 + $0x50] sm:$0xff]
  %v1245 = vld [vmem:[%s3 + $0x58] sm:$0xff]
  %v1246 = vld [vmem:[%s3 + $0x60] sm:$0xff]
  %v1247 = vld [vmem:[%s3 + $0x68] sm:$0xff]
  %v1248 = vld [vmem:[%s3 + $0x70] sm:$0xff]
  %v1249 = vld [vmem:[%s3 + $0x78] sm:$0xff]
  %v1250 = vld [vmem:[%s3 + $0x80] sm:$0xff]
  %v1251 = vld [vmem:[%s3 + $0x88] sm:$0xff]
  %v1252 = vld [vmem:[%s3 + $0x90] sm:$0xff]
  %v1253 = vld [vmem:[%s3 + $0x98] sm:$0xff]
  %v1254 = vld [vmem:[%s3 + $0xa0] sm:$0xff]
  %v1255 = vld [vmem:[%s3 + $0xa8] sm:$0xff]
  %v1256 = vld [vmem:[%s3 + $0xb0] sm:$0xff]
  %v1257 = vld [vmem:[%s3 + $0xb8] sm:$0xff]
  %v1258 = vld [vmem:[%s3 + $0xc0] sm:$0xff]
  %v1259 = vld [vmem:[%s3 + $0xc8] sm:$0xff]
  %v1260 = vld [vmem:[%s3 + $0xd0] sm:$0xff]
  %v1261 = vld [vmem:[%s3 + $0xd8] sm:$0xff]
  %v1262 = vld [vmem:[%s3 + $0xe0] sm:$0xff]
  %v1263 = vld [vmem:[%s3 + $0xe8] sm:$0xff]
  %v1264 = vld [vmem:[%s3 + $0xf0] sm:$0xff]
  %v1265 = vld [vmem:[%s3 + $0xf8] sm:$0xff]
  %v1266 = vld [vmem:[%s3 + $0x100] sm:$0xff]
  %v1267 = vld [vmem:[%s3 + $0x108] sm:$0xff]
  %v1268 = vld [vmem:[%s3 + $0x110] sm:$0xff]
  %v1269 = vld [vmem:[%s3 + $0x118] sm:$0xff]
  %v1270 = vld [vmem:[%s3 + $0x120] sm:$0xff]
  %v1271 = vld [vmem:[%s3 + $0x128] sm:$0xff]
  %v1272 = vld [vmem:[%s3 + $0x130] sm:$0xff]
  %v1273 = vld [vmem:[%s3 + $0x138] sm:$0xff]
  %v1274 = vld [vmem:[%s3 + $0x140] sm:$0xff]
  %v1275 = vld [vmem:[%s3 + $0x148] sm:$0xff]
  %v1276 = vld [vmem:[%s3 + $0x150] sm:$0xff]
  %v1277 = vld [vmem:[%s3 + $0x158] sm:$0xff]
  %v1278 = vld [vmem:[%s3 + $0x160] sm:$0xff]
  %v1279 = vld [vmem:[%s3 + $0x168] sm:$0xff]
  %v1280 = vld [vmem:[%s3 + $0x170] sm:$0xff]
  %v1281 = vld [vmem:[%s3 + $0x178] sm:$0xff]
  %v1282 = vld [vmem:[%s3 + $0x180] sm:$0xff]
  %v1283 = vld [vmem:[%s3 + $0x188] sm:$0xff]
  %v1284 = vld [vmem:[%s3 + $0x190] sm:$0xff]
  %v1285 = vld [vmem:[%s3 + $0x198] sm:$0xff]
  %v1286 = vld [vmem:[%s3 + $0x1a0] sm:$0xff]
  %v1287 = vld [vmem:[%s3 + $0x1a8] sm:$0xff]
  %v1288 = vld [vmem:[%s3 + $0x1b0] sm:$0xff]
  %v1289 = vld [vmem:[%s3 + $0x1b8] sm:$0xff]
  %v1290 = vld [vmem:[%s3 + $0x1c0] sm:$0xff]
  %v1291 = vld [vmem:[%s3 + $0x1c8] sm:$0xff]
  %v1292 = vld [vmem:[%s3 + $0x1d0] sm:$0xff]
  %v1293 = vld [vmem:[%s3 + $0x1d8] sm:$0xff]
  %v1294 = vld [vmem:[%s3 + $0x1e0] sm:$0xff]
  %v1295 = vld [vmem:[%s3 + $0x1e8] sm:$0xff]
  %v1296 = vld [vmem:[%s3 + $0x1f0] sm:$0xff]
  %v1297 = vld [vmem:[%s3 + $0x1f8] sm:$0xff]
  %v1298 = vld [vmem:[%s3 + $0x200] sm:$0xff]
  %v1299 = vld [vmem:[%s3 + $0x208] sm:$0xff]
  %v1300 = vld [vmem:[%s3 + $0x210] sm:$0xff]
  %v1301 = vld [vmem:[%s3 + $0x218] sm:$0xff]
  %v1302 = vld [vmem:[%s3 + $0x220] sm:$0xff]
  %v1303 = vld [vmem:[%s3 + $0x228] sm:$0xff]
  %v1304 = vld [vmem:[%s3 + $0x230] sm:$0xff]
  %v1305 = vld [vmem:[%s3 + $0x238] sm:$0xff]
  %v1306 = vld [vmem:[%s3 + $0x240] sm:$0xff]
  %v1307 = vld [vmem:[%s3 + $0x248] sm:$0xff]
  %v1308 = vld [vmem:[%s3 + $0x250] sm:$0xff]
  %v1309 = vld [vmem:[%s3 + $0x258] sm:$0xff]
  %v1310 = vld [vmem:[%s3 + $0x260] sm:$0xff]
  %v1311 = vld [vmem:[%s3 + $0x268] sm:$0xff]
  %v1312 = vld [vmem:[%s3 + $0x270] sm:$0xff]
  %v1313 = vld [vmem:[%s3 + $0x278] sm:$0xff]
  %v1314 = vld [vmem:[%s3 + $0x280] sm:$0xff]
  %v1315 = vld [vmem:[%s3 + $0x288] sm:$0xff]
  %v1316 = vld [vmem:[%s3 + $0x290] sm:$0xff]
  %v1317 = vld [vmem:[%s3 + $0x298] sm:$0xff]
  %v1318 = vld [vmem:[%s3 + $0x2a0] sm:$0xff]
  %v1319 = vld [vmem:[%s3 + $0x2a8] sm:$0xff]
  %v1320 = vld [vmem:[%s3 + $0x2b0] sm:$0xff]
  %v1321 = vld [vmem:[%s3 + $0x2b8] sm:$0xff]
  %v1322 = vld [vmem:[%s3 + $0x2c0] sm:$0xff]
  %v1323 = vld [vmem:[%s3 + $0x2c8] sm:$0xff]
  %v1324 = vld [vmem:[%s3 + $0x2d0] sm:$0xff]
  %v1325 = vld [vmem:[%s3 + $0x2d8] sm:$0xff]
  %v1326 = vld [vmem:[%s3 + $0x2e0] sm:$0xff]
  %v1327 = vld [vmem:[%s3 + $0x2e8] sm:$0xff]
  %v1328 = vld [vmem:[%s3 + $0x2f0] sm:$0xff]
  %v1329 = vld [vmem:[%s3 + $0x2f8] sm:$0xff]
  %v1330 = vld [vmem:[%s3 + $0x300] sm:$0xff]
  %v1331 = vld [vmem:[%s3 + $0x308] sm:$0xff]
  %v1332 = vld [vmem:[%s3 + $0x310] sm:$0xff]
  %v1333 = vld [vmem:[%s3 + $0x318] sm:$0xff]
  %v1334 = vld [vmem:[%s3 + $0x320] sm:$0xff]
  %v1335 = vld [vmem:[%s3 + $0x328] sm:$0xff]
  %v1336 = vld [vmem:[%s3 + $0x330] sm:$0xff]
  %v1337 = vld [vmem:[%s3 + $0x338] sm:$0xff]
  %v1338 = vld [vmem:[%s3 + $0x340] sm:$0xff]
  %v1339 = vld [vmem:[%s3 + $0x348] sm:$0xff]
  %v1340 = vld [vmem:[%s3 + $0x350] sm:$0xff]
  %v1341 = vld [vmem:[%s3 + $0x358] sm:$0xff]
  %v1342 = vld [vmem:[%s3 + $0x360] sm:$0xff]
  %v1343 = vld [vmem:[%s3 + $0x368] sm:$0xff]
  %v1344 = vld [vmem:[%s3 + $0x370] sm:$0xff]
  %v1345 = vld [vmem:[%s3 + $0x378] sm:$0xff]
  %v1346 = vld [vmem:[%s3 + $0x380] sm:$0xff]
  %v1347 = vld [vmem:[%s3 + $0x388] sm:$0xff]
  %v1348 = vld [vmem:[%s3 + $0x390] sm:$0xff]
  %v1349 = vld [vmem:[%s3 + $0x398] sm:$0xff]
  %v1350 = vld [vmem:[%s3 + $0x3a0] sm:$0xff]
  %v1351 = vld [vmem:[%s3 + $0x3a8] sm:$0xff]
  %v1352 = vld [vmem:[%s3 + $0x3b0] sm:$0xff]
  %v1353 = vld [vmem:[%s3 + $0x3b8] sm:$0xff]
  %v1354 = vld [vmem:[%s3 + $0x3c0] sm:$0xff]
  %v1355 = vld [vmem:[%s3 + $0x3c8] sm:$0xff]
  %v1356 = vld [vmem:[%s3 + $0x3d0] sm:$0xff]
  %v1357 = vld [vmem:[%s3 + $0x3d8] sm:$0xff]
  %v1358 = vld [vmem:[%s3 + $0x3e0] sm:$0xff]
  %v1359 = vld [vmem:[%s3 + $0x3e8] sm:$0xff]
  %v1360 = vld [vmem:[%s3 + $0x3f0] sm:$0xff]
  %v1361 = vld [vmem:[%s3 + $0x3f8] sm:$0xff]
  %v1363 = vperm.slane %v1216, 0
  %v1364 = vperm.slane %v1216, 1
  %v1495 = vunpack.c.l.b16 %v1234
  %v1496 = vunpack.c.h.b16 %v1234
  %v1497 = vunpack.c.l.b16 %v1235
  %v1498 = vunpack.c.h.b16 %v1235
  %v1499 = vunpack.c.l.b16 %v1236
  %v1500 = vunpack.c.h.b16 %v1236
  %v1501 = vunpack.c.l.b16 %v1237
  %v1502 = vunpack.c.h.b16 %v1237
  %v1503 = vunpack.c.l.b16 %v1238
  %v1504 = vunpack.c.h.b16 %v1238
  %v1505 = vunpack.c.l.b16 %v1239
  %v1506 = vunpack.c.h.b16 %v1239
  %v1507 = vunpack.c.l.b16 %v1240
  %v1508 = vunpack.c.h.b16 %v1240
  %v1509 = vunpack.c.l.b16 %v1241
  %v1510 = vunpack.c.h.b16 %v1241
  %v1511 = vunpack.c.l.b16 %v1242
  %v1512 = vunpack.c.h.b16 %v1242
  %v1513 = vunpack.c.l.b16 %v1243
  %v1514 = vunpack.c.h.b16 %v1243
  %v1515 = vunpack.c.l.b16 %v1244
  %v1516 = vunpack.c.h.b16 %v1244
  %v1517 = vunpack.c.l.b16 %v1245
  %v1518 = vunpack.c.h.b16 %v1245
  %v1519 = vunpack.c.l.b16 %v1246
  %v1520 = vunpack.c.h.b16 %v1246
  %v1521 = vunpack.c.l.b16 %v1247
  %v1522 = vunpack.c.h.b16 %v1247
  %v1523 = vunpack.c.l.b16 %v1248
  %v1524 = vunpack.c.h.b16 %v1248
  %v1525 = vunpack.c.l.b16 %v1249
  %v1526 = vunpack.c.h.b16 %v1249
  %v1527 = vunpack.c.l.b16 %v1250
  %v1528 = vunpack.c.h.b16 %v1250
  %v1529 = vunpack.c.l.b16 %v1251
  %v1530 = vunpack.c.h.b16 %v1251
  %v1531 = vunpack.c.l.b16 %v1252
  %v1532 = vunpack.c.h.b16 %v1252
  %v1533 = vunpack.c.l.b16 %v1253
  %v1534 = vunpack.c.h.b16 %v1253
  %v1535 = vunpack.c.l.b16 %v1254
  %v1536 = vunpack.c.h.b16 %v1254
  %v1537 = vunpack.c.l.b16 %v1255
  %v1538 = vunpack.c.h.b16 %v1255
  %v1539 = vunpack.c.l.b16 %v1256
  %v1540 = vunpack.c.h.b16 %v1256
  %v1541 = vunpack.c.l.b16 %v1257
  %v1542 = vunpack.c.h.b16 %v1257
  %v1543 = vunpack.c.l.b16 %v1258
  %v1544 = vunpack.c.h.b16 %v1258
  %v1545 = vunpack.c.l.b16 %v1259
  %v1546 = vunpack.c.h.b16 %v1259
  %v1547 = vunpack.c.l.b16 %v1260
  %v1548 = vunpack.c.h.b16 %v1260
  %v1549 = vunpack.c.l.b16 %v1261
  %v1550 = vunpack.c.h.b16 %v1261
  %v1551 = vunpack.c.l.b16 %v1262
  %v1552 = vunpack.c.h.b16 %v1262
  %v1553 = vunpack.c.l.b16 %v1263
  %v1554 = vunpack.c.h.b16 %v1263
  %v1555 = vunpack.c.l.b16 %v1264
  %v1556 = vunpack.c.h.b16 %v1264
  %v1557 = vunpack.c.l.b16 %v1265
  %v1558 = vunpack.c.h.b16 %v1265
  %v1559 = vunpack.c.l.b16 %v1266
  %v1560 = vunpack.c.h.b16 %v1266
  %v1561 = vunpack.c.l.b16 %v1267
  %v1562 = vunpack.c.h.b16 %v1267
  %v1563 = vunpack.c.l.b16 %v1268
  %v1564 = vunpack.c.h.b16 %v1268
  %v1565 = vunpack.c.l.b16 %v1269
  %v1566 = vunpack.c.h.b16 %v1269
  %v1567 = vunpack.c.l.b16 %v1270
  %v1568 = vunpack.c.h.b16 %v1270
  %v1569 = vunpack.c.l.b16 %v1271
  %v1570 = vunpack.c.h.b16 %v1271
  %v1571 = vunpack.c.l.b16 %v1272
  %v1572 = vunpack.c.h.b16 %v1272
  %v1573 = vunpack.c.l.b16 %v1273
  %v1574 = vunpack.c.h.b16 %v1273
  %v1575 = vunpack.c.l.b16 %v1274
  %v1576 = vunpack.c.h.b16 %v1274
  %v1577 = vunpack.c.l.b16 %v1275
  %v1578 = vunpack.c.h.b16 %v1275
  %v1579 = vunpack.c.l.b16 %v1276
  %v1580 = vunpack.c.h.b16 %v1276
  %v1581 = vunpack.c.l.b16 %v1277
  %v1582 = vunpack.c.h.b16 %v1277
  %v1583 = vunpack.c.l.b16 %v1278
  %v1584 = vunpack.c.h.b16 %v1278
  %v1585 = vunpack.c.l.b16 %v1279
  %v1586 = vunpack.c.h.b16 %v1279
  %v1587 = vunpack.c.l.b16 %v1280
  %v1588 = vunpack.c.h.b16 %v1280
  %v1589 = vunpack.c.l.b16 %v1281
  %v1590 = vunpack.c.h.b16 %v1281
  %v1591 = vunpack.c.l.b16 %v1282
  %v1592 = vunpack.c.h.b16 %v1282
  %v1593 = vunpack.c.l.b16 %v1283
  %v1594 = vunpack.c.h.b16 %v1283
  %v1595 = vunpack.c.l.b16 %v1284
  %v1596 = vunpack.c.h.b16 %v1284
  %v1597 = vunpack.c.l.b16 %v1285
  %v1598 = vunpack.c.h.b16 %v1285
  %v1599 = vunpack.c.l.b16 %v1286
  %v1600 = vunpack.c.h.b16 %v1286
  %v1601 = vunpack.c.l.b16 %v1287
  %v1602 = vunpack.c.h.b16 %v1287
  %v1603 = vunpack.c.l.b16 %v1288
  %v1604 = vunpack.c.h.b16 %v1288
  %v1605 = vunpack.c.l.b16 %v1289
  %v1606 = vunpack.c.h.b16 %v1289
  %v1607 = vunpack.c.l.b16 %v1290
  %v1608 = vunpack.c.h.b16 %v1290
  %v1609 = vunpack.c.l.b16 %v1291
  %v1610 = vunpack.c.h.b16 %v1291
  %v1611 = vunpack.c.l.b16 %v1292
  %v1612 = vunpack.c.h.b16 %v1292
  %v1613 = vunpack.c.l.b16 %v1293
  %v1614 = vunpack.c.h.b16 %v1293
  %v1615 = vunpack.c.l.b16 %v1294
  %v1616 = vunpack.c.h.b16 %v1294
  %v1617 = vunpack.c.l.b16 %v1295
  %v1618 = vunpack.c.h.b16 %v1295
  %v1619 = vunpack.c.l.b16 %v1296
  %v1620 = vunpack.c.h.b16 %v1296
  %v1621 = vunpack.c.l.b16 %v1297
  %v1622 = vunpack.c.h.b16 %v1297
  %v1623 = vunpack.c.l.b16 %v1298
  %v1624 = vunpack.c.h.b16 %v1298
  %v1625 = vunpack.c.l.b16 %v1299
  %v1626 = vunpack.c.h.b16 %v1299
  %v1627 = vunpack.c.l.b16 %v1300
  %v1628 = vunpack.c.h.b16 %v1300
  %v1629 = vunpack.c.l.b16 %v1301
  %v1630 = vunpack.c.h.b16 %v1301
  %v1631 = vunpack.c.l.b16 %v1302
  %v1632 = vunpack.c.h.b16 %v1302
  %v1633 = vunpack.c.l.b16 %v1303
  %v1634 = vunpack.c.h.b16 %v1303
  %v1635 = vunpack.c.l.b16 %v1304
  %v1636 = vunpack.c.h.b16 %v1304
  %v1637 = vunpack.c.l.b16 %v1305
  %v1638 = vunpack.c.h.b16 %v1305
  %v1639 = vunpack.c.l.b16 %v1306
  %v1640 = vunpack.c.h.b16 %v1306
  %v1641 = vunpack.c.l.b16 %v1307
  %v1642 = vunpack.c.h.b16 %v1307
  %v1643 = vunpack.c.l.b16 %v1308
  %v1644 = vunpack.c.h.b16 %v1308
  %v1645 = vunpack.c.l.b16 %v1309
  %v1646 = vunpack.c.h.b16 %v1309
  %v1647 = vunpack.c.l.b16 %v1310
  %v1648 = vunpack.c.h.b16 %v1310
  %v1649 = vunpack.c.l.b16 %v1311
  %v1650 = vunpack.c.h.b16 %v1311
  %v1651 = vunpack.c.l.b16 %v1312
  %v1652 = vunpack.c.h.b16 %v1312
  %v1653 = vunpack.c.l.b16 %v1313
  %v1654 = vunpack.c.h.b16 %v1313
  %v1655 = vunpack.c.l.b16 %v1314
  %v1656 = vunpack.c.h.b16 %v1314
  %v1657 = vunpack.c.l.b16 %v1315
  %v1658 = vunpack.c.h.b16 %v1315
  %v1659 = vunpack.c.l.b16 %v1316
  %v1660 = vunpack.c.h.b16 %v1316
  %v1661 = vunpack.c.l.b16 %v1317
  %v1662 = vunpack.c.h.b16 %v1317
  %v1663 = vunpack.c.l.b16 %v1318
  %v1664 = vunpack.c.h.b16 %v1318
  %v1665 = vunpack.c.l.b16 %v1319
  %v1666 = vunpack.c.h.b16 %v1319
  %v1667 = vunpack.c.l.b16 %v1320
  %v1668 = vunpack.c.h.b16 %v1320
  %v1669 = vunpack.c.l.b16 %v1321
  %v1670 = vunpack.c.h.b16 %v1321
  %v1671 = vunpack.c.l.b16 %v1322
  %v1672 = vunpack.c.h.b16 %v1322
  %v1673 = vunpack.c.l.b16 %v1323
  %v1674 = vunpack.c.h.b16 %v1323
  %v1675 = vunpack.c.l.b16 %v1324
  %v1676 = vunpack.c.h.b16 %v1324
  %v1677 = vunpack.c.l.b16 %v1325
  %v1678 = vunpack.c.h.b16 %v1325
  %v1679 = vunpack.c.l.b16 %v1326
  %v1680 = vunpack.c.h.b16 %v1326
  %v1681 = vunpack.c.l.b16 %v1327
  %v1682 = vunpack.c.h.b16 %v1327
  %v1683 = vunpack.c.l.b16 %v1328
  %v1684 = vunpack.c.h.b16 %v1328
  %v1685 = vunpack.c.l.b16 %v1329
  %v1686 = vunpack.c.h.b16 %v1329
  %v1687 = vunpack.c.l.b16 %v1330
  %v1688 = vunpack.c.h.b16 %v1330
  %v1689 = vunpack.c.l.b16 %v1331
  %v1690 = vunpack.c.h.b16 %v1331
  %v1691 = vunpack.c.l.b16 %v1332
  %v1692 = vunpack.c.h.b16 %v1332
  %v1693 = vunpack.c.l.b16 %v1333
  %v1694 = vunpack.c.h.b16 %v1333
  %v1695 = vunpack.c.l.b16 %v1334
  %v1696 = vunpack.c.h.b16 %v1334
  %v1697 = vunpack.c.l.b16 %v1335
  %v1698 = vunpack.c.h.b16 %v1335
  %v1699 = vunpack.c.l.b16 %v1336
  %v1700 = vunpack.c.h.b16 %v1336
  %v1701 = vunpack.c.l.b16 %v1337
  %v1702 = vunpack.c.h.b16 %v1337
  %v1703 = vunpack.c.l.b16 %v1338
  %v1704 = vunpack.c.h.b16 %v1338
  %v1705 = vunpack.c.l.b16 %v1339
  %v1706 = vunpack.c.h.b16 %v1339
  %v1707 = vunpack.c.l.b16 %v1340
  %v1708 = vunpack.c.h.b16 %v1340
  %v1709 = vunpack.c.l.b16 %v1341
  %v1710 = vunpack.c.h.b16 %v1341
  %v1711 = vunpack.c.l.b16 %v1342
  %v1712 = vunpack.c.h.b16 %v1342
  %v1713 = vunpack.c.l.b16 %v1343
  %v1714 = vunpack.c.h.b16 %v1343
  %v1715 = vunpack.c.l.b16 %v1344
  %v1716 = vunpack.c.h.b16 %v1344
  %v1717 = vunpack.c.l.b16 %v1345
  %v1718 = vunpack.c.h.b16 %v1345
  %v1719 = vunpack.c.l.b16 %v1346
  %v1720 = vunpack.c.h.b16 %v1346
  %v1721 = vunpack.c.l.b16 %v1347
  %v1722 = vunpack.c.h.b16 %v1347
  %v1723 = vunpack.c.l.b16 %v1348
  %v1724 = vunpack.c.h.b16 %v1348
  %v1725 = vunpack.c.l.b16 %v1349
  %v1726 = vunpack.c.h.b16 %v1349
  %v1727 = vunpack.c.l.b16 %v1350
  %v1728 = vunpack.c.h.b16 %v1350
  %v1729 = vunpack.c.l.b16 %v1351
  %v1730 = vunpack.c.h.b16 %v1351
  %v1731 = vunpack.c.l.b16 %v1352
  %v1732 = vunpack.c.h.b16 %v1352
  %v1733 = vunpack.c.l.b16 %v1353
  %v1734 = vunpack.c.h.b16 %v1353
  %v1735 = vunpack.c.l.b16 %v1354
  %v1736 = vunpack.c.h.b16 %v1354
  %v1737 = vunpack.c.l.b16 %v1355
  %v1738 = vunpack.c.h.b16 %v1355
  %v1739 = vunpack.c.l.b16 %v1356
  %v1740 = vunpack.c.h.b16 %v1356
  %v1741 = vunpack.c.l.b16 %v1357
  %v1742 = vunpack.c.h.b16 %v1357
  %v1743 = vunpack.c.l.b16 %v1358
  %v1744 = vunpack.c.h.b16 %v1358
  %v1745 = vunpack.c.l.b16 %v1359
  %v1746 = vunpack.c.h.b16 %v1359
  %v1747 = vunpack.c.l.b16 %v1360
  %v1748 = vunpack.c.h.b16 %v1360
  %v1749 = vunpack.c.l.b16 %v1361
  %v1750 = vunpack.c.h.b16 %v1361
  %v1751 = vpack.c.b16 %v1497, %v1495
  %v1752 = vpack.c.b16 %v1498, %v1496
  %v1753 = vpack.c.b16 %v1501, %v1499
  %v1754 = vpack.c.b16 %v1502, %v1500
  %v1755 = vpack.c.b16 %v1505, %v1503
  %v1756 = vpack.c.b16 %v1506, %v1504
  %v1757 = vpack.c.b16 %v1509, %v1507
  %v1758 = vpack.c.b16 %v1510, %v1508
  %v1759 = vpack.c.b16 %v1513, %v1511
  %v1760 = vpack.c.b16 %v1514, %v1512
  %v1761 = vpack.c.b16 %v1517, %v1515
  %v1762 = vpack.c.b16 %v1518, %v1516
  %v1763 = vpack.c.b16 %v1521, %v1519
  %v1764 = vpack.c.b16 %v1522, %v1520
  %v1765 = vpack.c.b16 %v1525, %v1523
  %v1766 = vpack.c.b16 %v1526, %v1524
  %v1767 = vpack.c.b16 %v1529, %v1527
  %v1768 = vpack.c.b16 %v1530, %v1528
  %v1769 = vpack.c.b16 %v1533, %v1531
  %v1770 = vpack.c.b16 %v1534, %v1532
  %v1771 = vpack.c.b16 %v1537, %v1535
  %v1772 = vpack.c.b16 %v1538, %v1536
  %v1773 = vpack.c.b16 %v1541, %v1539
  %v1774 = vpack.c.b16 %v1542, %v1540
  %v1775 = vpack.c.b16 %v1545, %v1543
  %v1776 = vpack.c.b16 %v1546, %v1544
  %v1777 = vpack.c.b16 %v1549, %v1547
  %v1778 = vpack.c.b16 %v1550, %v1548
  %v1779 = vpack.c.b16 %v1553, %v1551
  %v1780 = vpack.c.b16 %v1554, %v1552
  %v1781 = vpack.c.b16 %v1557, %v1555
  %v1782 = vpack.c.b16 %v1558, %v1556
  %v1783 = vpack.c.b16 %v1561, %v1559
  %v1784 = vpack.c.b16 %v1562, %v1560
  %v1785 = vpack.c.b16 %v1565, %v1563
  %v1786 = vpack.c.b16 %v1566, %v1564
  %v1787 = vpack.c.b16 %v1569, %v1567
  %v1788 = vpack.c.b16 %v1570, %v1568
  %v1789 = vpack.c.b16 %v1573, %v1571
  %v1790 = vpack.c.b16 %v1574, %v1572
  %v1791 = vpack.c.b16 %v1577, %v1575
  %v1792 = vpack.c.b16 %v1578, %v1576
  %v1793 = vpack.c.b16 %v1581, %v1579
  %v1794 = vpack.c.b16 %v1582, %v1580
  %v1795 = vpack.c.b16 %v1585, %v1583
  %v1796 = vpack.c.b16 %v1586, %v1584
  %v1797 = vpack.c.b16 %v1589, %v1587
  %v1798 = vpack.c.b16 %v1590, %v1588
  %v1799 = vpack.c.b16 %v1593, %v1591
  %v1800 = vpack.c.b16 %v1594, %v1592
  %v1801 = vpack.c.b16 %v1597, %v1595
  %v1802 = vpack.c.b16 %v1598, %v1596
  %v1803 = vpack.c.b16 %v1601, %v1599
  %v1804 = vpack.c.b16 %v1602, %v1600
  %v1805 = vpack.c.b16 %v1605, %v1603
  %v1806 = vpack.c.b16 %v1606, %v1604
  %v1807 = vpack.c.b16 %v1609, %v1607
  %v1808 = vpack.c.b16 %v1610, %v1608
  %v1809 = vpack.c.b16 %v1613, %v1611
  %v1810 = vpack.c.b16 %v1614, %v1612
  %v1811 = vpack.c.b16 %v1617, %v1615
  %v1812 = vpack.c.b16 %v1618, %v1616
  %v1813 = vpack.c.b16 %v1621, %v1619
  %v1814 = vpack.c.b16 %v1622, %v1620
  %v1815 = vpack.c.b16 %v1625, %v1623
  %v1816 = vpack.c.b16 %v1626, %v1624
  %v1817 = vpack.c.b16 %v1629, %v1627
  %v1818 = vpack.c.b16 %v1630, %v1628
  %v1819 = vpack.c.b16 %v1633, %v1631
  %v1820 = vpack.c.b16 %v1634, %v1632
  %v1821 = vpack.c.b16 %v1637, %v1635
  %v1822 = vpack.c.b16 %v1638, %v1636
  %v1823 = vpack.c.b16 %v1641, %v1639
  %v1824 = vpack.c.b16 %v1642, %v1640
  %v1825 = vpack.c.b16 %v1645, %v1643
  %v1826 = vpack.c.b16 %v1646, %v1644
  %v1827 = vpack.c.b16 %v1649, %v1647
  %v1828 = vpack.c.b16 %v1650, %v1648
  %v1829 = vpack.c.b16 %v1653, %v1651
  %v1830 = vpack.c.b16 %v1654, %v1652
  %v1831 = vpack.c.b16 %v1657, %v1655
  %v1832 = vpack.c.b16 %v1658, %v1656
  %v1833 = vpack.c.b16 %v1661, %v1659
  %v1834 = vpack.c.b16 %v1662, %v1660
  %v1835 = vpack.c.b16 %v1665, %v1663
  %v1836 = vpack.c.b16 %v1666, %v1664
  %v1837 = vpack.c.b16 %v1669, %v1667
  %v1838 = vpack.c.b16 %v1670, %v1668
  %v1839 = vpack.c.b16 %v1673, %v1671
  %v1840 = vpack.c.b16 %v1674, %v1672
  %v1841 = vpack.c.b16 %v1677, %v1675
  %v1842 = vpack.c.b16 %v1678, %v1676
  %v1843 = vpack.c.b16 %v1681, %v1679
  %v1844 = vpack.c.b16 %v1682, %v1680
  %v1845 = vpack.c.b16 %v1685, %v1683
  %v1846 = vpack.c.b16 %v1686, %v1684
  %v1847 = vpack.c.b16 %v1689, %v1687
  %v1848 = vpack.c.b16 %v1690, %v1688
  %v1849 = vpack.c.b16 %v1693, %v1691
  %v1850 = vpack.c.b16 %v1694, %v1692
  %v1851 = vpack.c.b16 %v1697, %v1695
  %v1852 = vpack.c.b16 %v1698, %v1696
  %v1853 = vpack.c.b16 %v1701, %v1699
  %v1854 = vpack.c.b16 %v1702, %v1700
  %v1855 = vpack.c.b16 %v1705, %v1703
  %v1856 = vpack.c.b16 %v1706, %v1704
  %v1857 = vpack.c.b16 %v1709, %v1707
  %v1858 = vpack.c.b16 %v1710, %v1708
  %v1859 = vpack.c.b16 %v1713, %v1711
  %v1860 = vpack.c.b16 %v1714, %v1712
  %v1861 = vpack.c.b16 %v1717, %v1715
  %v1862 = vpack.c.b16 %v1718, %v1716
  %v1863 = vpack.c.b16 %v1721, %v1719
  %v1864 = vpack.c.b16 %v1722, %v1720
  %v1865 = vpack.c.b16 %v1725, %v1723
  %v1866 = vpack.c.b16 %v1726, %v1724
  %v1867 = vpack.c.b16 %v1729, %v1727
  %v1868 = vpack.c.b16 %v1730, %v1728
  %v1869 = vpack.c.b16 %v1733, %v1731
  %v1870 = vpack.c.b16 %v1734, %v1732
  %v1871 = vpack.c.b16 %v1737, %v1735
  %v1872 = vpack.c.b16 %v1738, %v1736
  %v1873 = vpack.c.b16 %v1741, %v1739
  %v1874 = vpack.c.b16 %v1742, %v1740
  %v1875 = vpack.c.b16 %v1745, %v1743
  %v1876 = vpack.c.b16 %v1746, %v1744
  %v1877 = vpack.c.b16 %v1749, %v1747
  %v1878 = vpack.c.b16 %v1750, %v1748
  %2007 = vmatpush.bf16.msra.mxu0 %v1765
  %2008 = vmatpush.bf16.msra.mxu0 %v1763
  %2009 = vmatpush.bf16.msra.mxu0 %v1761
  %2010 = vmatpush.bf16.msra.mxu0 %v1759
  %2011 = vmatpush.bf16.msra.mxu0 %v1757
  %2012 = vmatpush.bf16.msra.mxu0 %v1755
  %2013 = vmatpush.bf16.msra.mxu0 %v1753
  %2014 = vmatpush.bf16.msra.mxu0 %v1751
  %2015 = vmatmul.bf16.gmra.mxu0 %v1226
  %v2016 = vpop.f32.mrf.mxu0
  %v2017 = vadd.f32 %v1363, %v2016
  %v2018 = vpop.f32.mrf.mxu0
  %2019 = vdwg.mxu0
  %2020 = vmatpush.bf16.msra.mxu0 %v1781
  %2021 = vmatpush.bf16.msra.mxu0 %v1779
  %2022 = vmatpush.bf16.msra.mxu0 %v1777
  %2023 = vmatpush.bf16.msra.mxu0 %v1775
  %2024 = vmatpush.bf16.msra.mxu0 %v1773
  %2025 = vmatpush.bf16.msra.mxu0 %v1771
  %2026 = vmatpush.bf16.msra.mxu0 %v1769
  %2027 = vmatpush.bf16.msra.mxu0 %v1767
  %2028 = vmatmul.bf16.gmra.mxu0 %v1227
  %v2029 = vpop.f32.mrf.mxu0
  %v2030 = vadd.f32 %v2017, %v2029
  %v2031 = vpop.f32.mrf.mxu0
  %2032 = vdwg.mxu0
  %2033 = vmatpush.bf16.msra.mxu0 %v1797
  %2034 = vmatpush.bf16.msra.mxu0 %v1795
  %2035 = vmatpush.bf16.msra.mxu0 %v1793
  %2036 = vmatpush.bf16.msra.mxu0 %v1791
  %2037 = vmatpush.bf16.msra.mxu0 %v1789
  %2038 = vmatpush.bf16.msra.mxu0 %v1787
  %2039 = vmatpush.bf16.msra.mxu0 %v1785
  %2040 = vmatpush.bf16.msra.mxu0 %v1783
  %2041 = vmatmul.bf16.gmra.mxu0 %v1228
  %v2042 = vpop.f32.mrf.mxu0
  %v2043 = vadd.f32 %v2030, %v2042
  %v2044 = vpop.f32.mrf.mxu0
  %2045 = vdwg.mxu0
  %2046 = vmatpush.bf16.msra.mxu0 %v1813
  %2047 = vmatpush.bf16.msra.mxu0 %v1811
  %2048 = vmatpush.bf16.msra.mxu0 %v1809
  %2049 = vmatpush.bf16.msra.mxu0 %v1807
  %2050 = vmatpush.bf16.msra.mxu0 %v1805
  %2051 = vmatpush.bf16.msra.mxu0 %v1803
  %2052 = vmatpush.bf16.msra.mxu0 %v1801
  %2053 = vmatpush.bf16.msra.mxu0 %v1799
  %2054 = vmatmul.bf16.gmra.mxu0 %v1229
  %v2055 = vpop.f32.mrf.mxu0
  %v2056 = vadd.f32 %v2043, %v2055
  %v2057 = vpop.f32.mrf.mxu0
  %2058 = vdwg.mxu0
  %2059 = vmatpush.bf16.msra.mxu0 %v1829
  %2060 = vmatpush.bf16.msra.mxu0 %v1827
  %2061 = vmatpush.bf16.msra.mxu0 %v1825
  %2062 = vmatpush.bf16.msra.mxu0 %v1823
  %2063 = vmatpush.bf16.msra.mxu0 %v1821
  %2064 = vmatpush.bf16.msra.mxu0 %v1819
  %2065 = vmatpush.bf16.msra.mxu0 %v1817
  %2066 = vmatpush.bf16.msra.mxu0 %v1815
  %2067 = vmatmul.bf16.gmra.mxu0 %v1230
  %v2068 = vpop.f32.mrf.mxu0
  %v2069 = vadd.f32 %v2056, %v2068
  %v2070 = vpop.f32.mrf.mxu0
  %2071 = vdwg.mxu0
  %2072 = vmatpush.bf16.msra.mxu0 %v1845
  %2073 = vmatpush.bf16.msra.mxu0 %v1843
  %2074 = vmatpush.bf16.msra.mxu0 %v1841
  %2075 = vmatpush.bf16.msra.mxu0 %v1839
  %2076 = vmatpush.bf16.msra.mxu0 %v1837
  %2077 = vmatpush.bf16.msra.mxu0 %v1835
  %2078 = vmatpush.bf16.msra.mxu0 %v1833
  %2079 = vmatpush.bf16.msra.mxu0 %v1831
  %2080 = vmatmul.bf16.gmra.mxu0 %v1231
  %v2081 = vpop.f32.mrf.mxu0
  %v2082 = vadd.f32 %v2069, %v2081
  %v2083 = vpop.f32.mrf.mxu0
  %2084 = vdwg.mxu0
  %2085 = vmatpush.bf16.msra.mxu0 %v1861
  %2086 = vmatpush.bf16.msra.mxu0 %v1859
  %2087 = vmatpush.bf16.msra.mxu0 %v1857
  %2088 = vmatpush.bf16.msra.mxu0 %v1855
  %2089 = vmatpush.bf16.msra.mxu0 %v1853
  %2090 = vmatpush.bf16.msra.mxu0 %v1851
  %2091 = vmatpush.bf16.msra.mxu0 %v1849
  %2092 = vmatpush.bf16.msra.mxu0 %v1847
  %2093 = vmatmul.bf16.gmra.mxu0 %v1232
  %v2094 = vpop.f32.mrf.mxu0
  %v2095 = vadd.f32 %v2082, %v2094
  %v2096 = vpop.f32.mrf.mxu0
  %2097 = vdwg.mxu0
  %2098 = vmatpush.bf16.msra.mxu0 %v1877
  %2099 = vmatpush.bf16.msra.mxu0 %v1875
  %2100 = vmatpush.bf16.msra.mxu0 %v1873
  %2101 = vmatpush.bf16.msra.mxu0 %v1871
  %2102 = vmatpush.bf16.msra.mxu0 %v1869
  %2103 = vmatpush.bf16.msra.mxu0 %v1867
  %2104 = vmatpush.bf16.msra.mxu0 %v1865
  %2105 = vmatpush.bf16.msra.mxu0 %v1863
  %2106 = vmatmul.bf16.gmra.mxu0 %v1233
  %v2107 = vpop.f32.mrf.mxu0
  %v2108 = vadd.f32 %v2095, %v2107
  %v2109 = vpop.f32.mrf.mxu0
  %2110 = vdwg.mxu0
  %2111 = vmatpush.bf16.msra.mxu0 %v1766
  %2112 = vmatpush.bf16.msra.mxu0 %v1764
  %2113 = vmatpush.bf16.msra.mxu0 %v1762
  %2114 = vmatpush.bf16.msra.mxu0 %v1760
  %2115 = vmatpush.bf16.msra.mxu0 %v1758
  %2116 = vmatpush.bf16.msra.mxu0 %v1756
  %2117 = vmatpush.bf16.msra.mxu0 %v1754
  %2118 = vmatpush.bf16.msra.mxu0 %v1752
  %2119 = vmatmul.bf16.gmra.mxu0 %v1226
  %v2120 = vpop.f32.mrf.mxu0
  %v2121 = vadd.f32 %v1364, %v2120
  %v2122 = vpop.f32.mrf.mxu0
  %2123 = vdwg.mxu0
  %2124 = vmatpush.bf16.msra.mxu0 %v1782
  %2125 = vmatpush.bf16.msra.mxu0 %v1780
  %2126 = vmatpush.bf16.msra.mxu0 %v1778
  %2127 = vmatpush.bf16.msra.mxu0 %v1776
  %2128 = vmatpush.bf16.msra.mxu0 %v1774
  %2129 = vmatpush.bf16.msra.mxu0 %v1772
  %2130 = vmatpush.bf16.msra.mxu0 %v1770
  %2131 = vmatpush.bf16.msra.mxu0 %v1768
  %2132 = vmatmul.bf16.gmra.mxu0 %v1227
  %v2133 = vpop.f32.mrf.mxu0
  %v2134 = vadd.f32 %v2121, %v2133
  %v2135 = vpop.f32.mrf.mxu0
  %2136 = vdwg.mxu0
  %2137 = vmatpush.bf16.msra.mxu0 %v1798
  %2138 = vmatpush.bf16.msra.mxu0 %v1796
  %2139 = vmatpush.bf16.msra.mxu0 %v1794
  %2140 = vmatpush.bf16.msra.mxu0 %v1792
  %2141 = vmatpush.bf16.msra.mxu0 %v1790
  %2142 = vmatpush.bf16.msra.mxu0 %v1788
  %2143 = vmatpush.bf16.msra.mxu0 %v1786
  %2144 = vmatpush.bf16.msra.mxu0 %v1784
  %2145 = vmatmul.bf16.gmra.mxu0 %v1228
  %v2146 = vpop.f32.mrf.mxu0
  %v2147 = vadd.f32 %v2134, %v2146
  %v2148 = vpop.f32.mrf.mxu0
  %2149 = vdwg.mxu0
  %2150 = vmatpush.bf16.msra.mxu0 %v1814
  %2151 = vmatpush.bf16.msra.mxu0 %v1812
  %2152 = vmatpush.bf16.msra.mxu0 %v1810
  %2153 = vmatpush.bf16.msra.mxu0 %v1808
  %2154 = vmatpush.bf16.msra.mxu0 %v1806
  %2155 = vmatpush.bf16.msra.mxu0 %v1804
  %2156 = vmatpush.bf16.msra.mxu0 %v1802
  %2157 = vmatpush.bf16.msra.mxu0 %v1800
  %2158 = vmatmul.bf16.gmra.mxu0 %v1229
  %v2159 = vpop.f32.mrf.mxu0
  %v2160 = vadd.f32 %v2147, %v2159
  %v2161 = vpop.f32.mrf.mxu0
  %2162 = vdwg.mxu0
  %2163 = vmatpush.bf16.msra.mxu0 %v1830
  %2164 = vmatpush.bf16.msra.mxu0 %v1828
  %2165 = vmatpush.bf16.msra.mxu0 %v1826
  %2166 = vmatpush.bf16.msra.mxu0 %v1824
  %2167 = vmatpush.bf16.msra.mxu0 %v1822
  %2168 = vmatpush.bf16.msra.mxu0 %v1820
  %2169 = vmatpush.bf16.msra.mxu0 %v1818
  %2170 = vmatpush.bf16.msra.mxu0 %v1816
  %2171 = vmatmul.bf16.gmra.mxu0 %v1230
  %v2172 = vpop.f32.mrf.mxu0
  %v2173 = vadd.f32 %v2160, %v2172
  %v2174 = vpop.f32.mrf.mxu0
  %2175 = vdwg.mxu0
  %2176 = vmatpush.bf16.msra.mxu0 %v1846
  %2177 = vmatpush.bf16.msra.mxu0 %v1844
  %2178 = vmatpush.bf16.msra.mxu0 %v1842
  %2179 = vmatpush.bf16.msra.mxu0 %v1840
  %2180 = vmatpush.bf16.msra.mxu0 %v1838
  %2181 = vmatpush.bf16.msra.mxu0 %v1836
  %2182 = vmatpush.bf16.msra.mxu0 %v1834
  %2183 = vmatpush.bf16.msra.mxu0 %v1832
  %2184 = vmatmul.bf16.gmra.mxu0 %v1231
  %v2185 = vpop.f32.mrf.mxu0
  %v2186 = vadd.f32 %v2173, %v2185
  %v2187 = vpop.f32.mrf.mxu0
  %2188 = vdwg.mxu0
  %2189 = vmatpush.bf16.msra.mxu0 %v1862
  %2190 = vmatpush.bf16.msra.mxu0 %v1860
  %2191 = vmatpush.bf16.msra.mxu0 %v1858
  %2192 = vmatpush.bf16.msra.mxu0 %v1856
  %2193 = vmatpush.bf16.msra.mxu0 %v1854
  %2194 = vmatpush.bf16.msra.mxu0 %v1852
  %2195 = vmatpush.bf16.msra.mxu0 %v1850
  %2196 = vmatpush.bf16.msra.mxu0 %v1848
  %2197 = vmatmul.bf16.gmra.mxu0 %v1232
  %v2198 = vpop.f32.mrf.mxu0
  %v2199 = vadd.f32 %v2186, %v2198
  %v2200 = vpop.f32.mrf.mxu0
  %2201 = vdwg.mxu0
  %2202 = vmatpush.bf16.msra.mxu0 %v1878
  %2203 = vmatpush.bf16.msra.mxu0 %v1876
  %2204 = vmatpush.bf16.msra.mxu0 %v1874
  %2205 = vmatpush.bf16.msra.mxu0 %v1872
  %2206 = vmatpush.bf16.msra.mxu0 %v1870
  %2207 = vmatpush.bf16.msra.mxu0 %v1868
  %2208 = vmatpush.bf16.msra.mxu0 %v1866
  %2209 = vmatpush.bf16.msra.mxu0 %v1864
  %2210 = vmatmul.bf16.gmra.mxu0 %v1233
  %v2211 = vpop.f32.mrf.mxu0
  %v2212 = vadd.f32 %v2199, %v2211
  %v2213 = vpop.f32.mrf.mxu0
  %2214 = vdwg.mxu0
  %v2215 = vmax.f32 %v2108, 0.0
  %v2216 = vmax.f32 %v2212, 0.0
  %v2217 = vpack.c.bf16 %v2215, %v2215
  %v2218 = vpack.c.bf16 %v2216, %v2216
  %v2219 = vld [vmem:[%s5] sm:$0xf]
  %v2220 = vld [vmem:[%s5 + $0x4] sm:$0xf]
  %v2221 = vld [vmem:[%s5 + $0x8] sm:$0xf]
  %v2222 = vld [vmem:[%s5 + $0xc] sm:$0xf]
  %v2223 = vld [vmem:[%s5 + $0x10] sm:$0xf]
  %v2224 = vld [vmem:[%s5 + $0x14] sm:$0xf]
  %v2225 = vld [vmem:[%s5 + $0x18] sm:$0xf]
  %v2226 = vld [vmem:[%s5 + $0x1c] sm:$0xf]
  %v2227 = vld [vmem:[%s5 + $0x20] sm:$0xf]
  %v2228 = vld [vmem:[%s5 + $0x24] sm:$0xf]
  %v2229 = vld [vmem:[%s5 + $0x28] sm:$0xf]
  %v2230 = vld [vmem:[%s5 + $0x2c] sm:$0xf]
  %v2231 = vld [vmem:[%s5 + $0x30] sm:$0xf]
  %v2232 = vld [vmem:[%s5 + $0x34] sm:$0xf]
  %v2233 = vld [vmem:[%s5 + $0x38] sm:$0xf]
  %v2234 = vld [vmem:[%s5 + $0x3c] sm:$0xf]
  %v2235 = vld [vmem:[%s5 + $0x40] sm:$0xf]
  %v2236 = vld [vmem:[%s5 + $0x44] sm:$0xf]
  %v2237 = vld [vmem:[%s5 + $0x48] sm:$0xf]
  %v2238 = vld [vmem:[%s5 + $0x4c] sm:$0xf]
  %v2239 = vld [vmem:[%s5 + $0x50] sm:$0xf]
  %v2240 = vld [vmem:[%s5 + $0x54] sm:$0xf]
  %v2241 = vld [vmem:[%s5 + $0x58] sm:$0xf]
  %v2242 = vld [vmem:[%s5 + $0x5c] sm:$0xf]
  %v2243 = vld [vmem:[#allocation2 + $0x20] sm:$0xff]
  %v2244 = vld [vmem:[#allocation2 + $0x28] sm:$0xff]
  %v2245 = vld [vmem:[#allocation2 + $0x30] sm:$0xff]
  %v2246 = vld [vmem:[#allocation2 + $0x38] sm:$0xff]
  %v2247 = vld [vmem:[#allocation2 + $0x40] sm:$0xff]
  %v2248 = vld [vmem:[#allocation2 + $0x48] sm:$0xff]
  %v2249 = vld [vmem:[#allocation2 + $0x50] sm:$0xff]
  %v2250 = vld [vmem:[#allocation2 + $0x58] sm:$0xff]
  %v2251 = vpack.c.bf16 %v2243, %v2243
  %v2252 = vpack.c.bf16 %v2244, %v2244
  %v2253 = vpack.c.bf16 %v2245, %v2245
  %v2254 = vpack.c.bf16 %v2246, %v2246
  %v2255 = vpack.c.bf16 %v2247, %v2247
  %v2256 = vpack.c.bf16 %v2248, %v2248
  %v2257 = vpack.c.bf16 %v2249, %v2249
  %v2258 = vpack.c.bf16 %v2250, %v2250
  %2259 = vmatpush.bf16.msra.mxu0 %v1765
  %2260 = vmatpush.bf16.msra.mxu0 %v1763
  %2261 = vmatpush.bf16.msra.mxu0 %v1761
  %2262 = vmatpush.bf16.msra.mxu0 %v1759
  %2263 = vmatpush.bf16.msra.mxu0 %v1757
  %2264 = vmatpush.bf16.msra.mxu0 %v1755
  %2265 = vmatpush.bf16.msra.mxu0 %v1753
  %2266 = vmatpush.bf16.msra.mxu0 %v1751
  %2267 = vmatmul.bf16.gmra.mxu0 %v2251
  %v2268 = vpop.f32.mrf.mxu0
  %v2269 = vadd.f32 %v1363, %v2268
  %v2270 = vpop.f32.mrf.mxu0
  %2271 = vdwg.mxu0
  %2272 = vmatpush.bf16.msra.mxu0 %v1781
  %2273 = vmatpush.bf16.msra.mxu0 %v1779
  %2274 = vmatpush.bf16.msra.mxu0 %v1777
  %2275 = vmatpush.bf16.msra.mxu0 %v1775
  %2276 = vmatpush.bf16.msra.mxu0 %v1773
  %2277 = vmatpush.bf16.msra.mxu0 %v1771
  %2278 = vmatpush.bf16.msra.mxu0 %v1769
  %2279 = vmatpush.bf16.msra.mxu0 %v1767
  %2280 = vmatmul.bf16.gmra.mxu0 %v2252
  %v2281 = vpop.f32.mrf.mxu0
  %v2282 = vadd.f32 %v2269, %v2281
  %v2283 = vpop.f32.mrf.mxu0
  %2284 = vdwg.mxu0
  %2285 = vmatpush.bf16.msra.mxu0 %v1797
  %2286 = vmatpush.bf16.msra.mxu0 %v1795
  %2287 = vmatpush.bf16.msra.mxu0 %v1793
  %2288 = vmatpush.bf16.msra.mxu0 %v1791
  %2289 = vmatpush.bf16.msra.mxu0 %v1789
  %2290 = vmatpush.bf16.msra.mxu0 %v1787
  %2291 = vmatpush.bf16.msra.mxu0 %v1785
  %2292 = vmatpush.bf16.msra.mxu0 %v1783
  %2293 = vmatmul.bf16.gmra.mxu0 %v2253
  %v2294 = vpop.f32.mrf.mxu0
  %v2295 = vadd.f32 %v2282, %v2294
  %v2296 = vpop.f32.mrf.mxu0
  %2297 = vdwg.mxu0
  %2298 = vmatpush.bf16.msra.mxu0 %v1813
  %2299 = vmatpush.bf16.msra.mxu0 %v1811
  %2300 = vmatpush.bf16.msra.mxu0 %v1809
  %2301 = vmatpush.bf16.msra.mxu0 %v1807
  %2302 = vmatpush.bf16.msra.mxu0 %v1805
  %2303 = vmatpush.bf16.msra.mxu0 %v1803
  %2304 = vmatpush.bf16.msra.mxu0 %v1801
  %2305 = vmatpush.bf16.msra.mxu0 %v1799
  %2306 = vmatmul.bf16.gmra.mxu0 %v2254
  %v2307 = vpop.f32.mrf.mxu0
  %v2308 = vadd.f32 %v2295, %v2307
  %v2309 = vpop.f32.mrf.mxu0
  %2310 = vdwg.mxu0
  %2311 = vmatpush.bf16.msra.mxu0 %v1829
  %2312 = vmatpush.bf16.msra.mxu0 %v1827
  %2313 = vmatpush.bf16.msra.mxu0 %v1825
  %2314 = vmatpush.bf16.msra.mxu0 %v1823
  %2315 = vmatpush.bf16.msra.mxu0 %v1821
  %2316 = vmatpush.bf16.msra.mxu0 %v1819
  %2317 = vmatpush.bf16.msra.mxu0 %v1817
  %2318 = vmatpush.bf16.msra.mxu0 %v1815
  %2319 = vmatmul.bf16.gmra.mxu0 %v2255
  %v2320 = vpop.f32.mrf.mxu0
  %v2321 = vadd.f32 %v2308, %v2320
  %v2322 = vpop.f32.mrf.mxu0
  %2323 = vdwg.mxu0
  %2324 = vmatpush.bf16.msra.mxu0 %v1845
  %2325 = vmatpush.bf16.msra.mxu0 %v1843
  %2326 = vmatpush.bf16.msra.mxu0 %v1841
  %2327 = vmatpush.bf16.msra.mxu0 %v1839
  %2328 = vmatpush.bf16.msra.mxu0 %v1837
  %2329 = vmatpush.bf16.msra.mxu0 %v1835
  %2330 = vmatpush.bf16.msra.mxu0 %v1833
  %2331 = vmatpush.bf16.msra.mxu0 %v1831
  %2332 = vmatmul.bf16.gmra.mxu0 %v2256
  %v2333 = vpop.f32.mrf.mxu0
  %v2334 = vadd.f32 %v2321, %v2333
  %v2335 = vpop.f32.mrf.mxu0
  %2336 = vdwg.mxu0
  %2337 = vmatpush.bf16.msra.mxu0 %v1861
  %2338 = vmatpush.bf16.msra.mxu0 %v1859
  %2339 = vmatpush.bf16.msra.mxu0 %v1857
  %2340 = vmatpush.bf16.msra.mxu0 %v1855
  %2341 = vmatpush.bf16.msra.mxu0 %v1853
  %2342 = vmatpush.bf16.msra.mxu0 %v1851
  %2343 = vmatpush.bf16.msra.mxu0 %v1849
  %2344 = vmatpush.bf16.msra.mxu0 %v1847
  %2345 = vmatmul.bf16.gmra.mxu0 %v2257
  %v2346 = vpop.f32.mrf.mxu0
  %v2347 = vadd.f32 %v2334, %v2346
  %v2348 = vpop.f32.mrf.mxu0
  %2349 = vdwg.mxu0
  %2350 = vmatpush.bf16.msra.mxu0 %v1877
  %2351 = vmatpush.bf16.msra.mxu0 %v1875
  %2352 = vmatpush.bf16.msra.mxu0 %v1873
  %2353 = vmatpush.bf16.msra.mxu0 %v1871
  %2354 = vmatpush.bf16.msra.mxu0 %v1869
  %2355 = vmatpush.bf16.msra.mxu0 %v1867
  %2356 = vmatpush.bf16.msra.mxu0 %v1865
  %2357 = vmatpush.bf16.msra.mxu0 %v1863
  %2358 = vmatmul.bf16.gmra.mxu0 %v2258
  %v2359 = vpop.f32.mrf.mxu0
  %v2360 = vadd.f32 %v2347, %v2359
  %v2361 = vpop.f32.mrf.mxu0
  %2362 = vdwg.mxu0
  %2363 = vmatpush.bf16.msra.mxu0 %v1766
  %2364 = vmatpush.bf16.msra.mxu0 %v1764
  %2365 = vmatpush.bf16.msra.mxu0 %v1762
  %2366 = vmatpush.bf16.msra.mxu0 %v1760
  %2367 = vmatpush.bf16.msra.mxu0 %v1758
  %2368 = vmatpush.bf16.msra.mxu0 %v1756
  %2369 = vmatpush.bf16.msra.mxu0 %v1754
  %2370 = vmatpush.bf16.msra.mxu0 %v1752
  %2371 = vmatmul.bf16.gmra.mxu0 %v2251
  %v2372 = vpop.f32.mrf.mxu0
  %v2373 = vadd.f32 %v1364, %v2372
  %v2374 = vpop.f32.mrf.mxu0
  %2375 = vdwg.mxu0
  %2376 = vmatpush.bf16.msra.mxu0 %v1782
  %2377 = vmatpush.bf16.msra.mxu0 %v1780
  %2378 = vmatpush.bf16.msra.mxu0 %v1778
  %2379 = vmatpush.bf16.msra.mxu0 %v1776
  %2380 = vmatpush.bf16.msra.mxu0 %v1774
  %2381 = vmatpush.bf16.msra.mxu0 %v1772
  %2382 = vmatpush.bf16.msra.mxu0 %v1770
  %2383 = vmatpush.bf16.msra.mxu0 %v1768
  %2384 = vmatmul.bf16.gmra.mxu0 %v2252
  %v2385 = vpop.f32.mrf.mxu0
  %v2386 = vadd.f32 %v2373, %v2385
  %v2387 = vpop.f32.mrf.mxu0
  %2388 = vdwg.mxu0
  %2389 = vmatpush.bf16.msra.mxu0 %v1798
  %2390 = vmatpush.bf16.msra.mxu0 %v1796
  %2391 = vmatpush.bf16.msra.mxu0 %v1794
  %2392 = vmatpush.bf16.msra.mxu0 %v1792
  %2393 = vmatpush.bf16.msra.mxu0 %v1790
  %2394 = vmatpush.bf16.msra.mxu0 %v1788
  %2395 = vmatpush.bf16.msra.mxu0 %v1786
  %2396 = vmatpush.bf16.msra.mxu0 %v1784
  %2397 = vmatmul.bf16.gmra.mxu0 %v2253
  %v2398 = vpop.f32.mrf.mxu0
  %v2399 = vadd.f32 %v2386, %v2398
  %v2400 = vpop.f32.mrf.mxu0
  %2401 = vdwg.mxu0
  %2402 = vmatpush.bf16.msra.mxu0 %v1814
  %2403 = vmatpush.bf16.msra.mxu0 %v1812
  %2404 = vmatpush.bf16.msra.mxu0 %v1810
  %2405 = vmatpush.bf16.msra.mxu0 %v1808
  %2406 = vmatpush.bf16.msra.mxu0 %v1806
  %2407 = vmatpush.bf16.msra.mxu0 %v1804
  %2408 = vmatpush.bf16.msra.mxu0 %v1802
  %2409 = vmatpush.bf16.msra.mxu0 %v1800
  %2410 = vmatmul.bf16.gmra.mxu0 %v2254
  %v2411 = vpop.f32.mrf.mxu0
  %v2412 = vadd.f32 %v2399, %v2411
  %v2413 = vpop.f32.mrf.mxu0
  %2414 = vdwg.mxu0
  %2415 = vmatpush.bf16.msra.mxu0 %v1830
  %2416 = vmatpush.bf16.msra.mxu0 %v1828
  %2417 = vmatpush.bf16.msra.mxu0 %v1826
  %2418 = vmatpush.bf16.msra.mxu0 %v1824
  %2419 = vmatpush.bf16.msra.mxu0 %v1822
  %2420 = vmatpush.bf16.msra.mxu0 %v1820
  %2421 = vmatpush.bf16.msra.mxu0 %v1818
  %2422 = vmatpush.bf16.msra.mxu0 %v1816
  %2423 = vmatmul.bf16.gmra.mxu0 %v2255
  %v2424 = vpop.f32.mrf.mxu0
  %v2425 = vadd.f32 %v2412, %v2424
  %v2426 = vpop.f32.mrf.mxu0
  %2427 = vdwg.mxu0
  %2428 = vmatpush.bf16.msra.mxu0 %v1846
  %2429 = vmatpush.bf16.msra.mxu0 %v1844
  %2430 = vmatpush.bf16.msra.mxu0 %v1842
  %2431 = vmatpush.bf16.msra.mxu0 %v1840
  %2432 = vmatpush.bf16.msra.mxu0 %v1838
  %2433 = vmatpush.bf16.msra.mxu0 %v1836
  %2434 = vmatpush.bf16.msra.mxu0 %v1834
  %2435 = vmatpush.bf16.msra.mxu0 %v1832
  %2436 = vmatmul.bf16.gmra.mxu0 %v2256
  %v2437 = vpop.f32.mrf.mxu0
  %v2438 = vadd.f32 %v2425, %v2437
  %v2439 = vpop.f32.mrf.mxu0
  %2440 = vdwg.mxu0
  %2441 = vmatpush.bf16.msra.mxu0 %v1862
  %2442 = vmatpush.bf16.msra.mxu0 %v1860
  %2443 = vmatpush.bf16.msra.mxu0 %v1858
  %2444 = vmatpush.bf16.msra.mxu0 %v1856
  %2445 = vmatpush.bf16.msra.mxu0 %v1854
  %2446 = vmatpush.bf16.msra.mxu0 %v1852
  %2447 = vmatpush.bf16.msra.mxu0 %v1850
  %2448 = vmatpush.bf16.msra.mxu0 %v1848
  %2449 = vmatmul.bf16.gmra.mxu0 %v2257
  %v2450 = vpop.f32.mrf.mxu0
  %v2451 = vadd.f32 %v2438, %v2450
  %v2452 = vpop.f32.mrf.mxu0
  %2453 = vdwg.mxu0
  %2454 = vmatpush.bf16.msra.mxu0 %v1878
  %2455 = vmatpush.bf16.msra.mxu0 %v1876
  %2456 = vmatpush.bf16.msra.mxu0 %v1874
  %2457 = vmatpush.bf16.msra.mxu0 %v1872
  %2458 = vmatpush.bf16.msra.mxu0 %v1870
  %2459 = vmatpush.bf16.msra.mxu0 %v1868
  %2460 = vmatpush.bf16.msra.mxu0 %v1866
  %2461 = vmatpush.bf16.msra.mxu0 %v1864
  %2462 = vmatmul.bf16.gmra.mxu0 %v2258
  %v2463 = vpop.f32.mrf.mxu0
  %v2464 = vadd.f32 %v2451, %v2463
  %v2465 = vpop.f32.mrf.mxu0
  %2466 = vdwg.mxu0
  %v2467 = vmax.f32 %v2360, 0.0
  %v2468 = vmax.f32 %v2464, 0.0
  %v2469 = vpack.c.bf16 %v2467, %v2467
  %v2470 = vpack.c.bf16 %v2468, %v2468
  %s2471 = scalar_lea.vmem %s5, 96
  %v2472 = vld [vmem:[%s2471] sm:$0xf]
  %v2473 = vld [vmem:[%s2471 + $0x4] sm:$0xf]
  %v2474 = vld [vmem:[%s2471 + $0x8] sm:$0xf]
  %v2475 = vld [vmem:[%s2471 + $0xc] sm:$0xf]
  %v2476 = vld [vmem:[%s2471 + $0x10] sm:$0xf]
  %v2477 = vld [vmem:[%s2471 + $0x14] sm:$0xf]
  %v2478 = vld [vmem:[%s2471 + $0x18] sm:$0xf]
  %v2479 = vld [vmem:[%s2471 + $0x1c] sm:$0xf]
  %v2480 = vld [vmem:[%s2471 + $0x20] sm:$0xf]
  %v2481 = vld [vmem:[%s2471 + $0x24] sm:$0xf]
  %v2482 = vld [vmem:[%s2471 + $0x28] sm:$0xf]
  %v2483 = vld [vmem:[%s2471 + $0x2c] sm:$0xf]
  %v2484 = vld [vmem:[%s2471 + $0x30] sm:$0xf]
  %v2485 = vld [vmem:[%s2471 + $0x34] sm:$0xf]
  %v2486 = vld [vmem:[%s2471 + $0x38] sm:$0xf]
  %v2487 = vld [vmem:[%s2471 + $0x3c] sm:$0xf]
  %v2488 = vld [vmem:[%s2471 + $0x40] sm:$0xf]
  %v2489 = vld [vmem:[%s2471 + $0x44] sm:$0xf]
  %v2490 = vld [vmem:[%s2471 + $0x48] sm:$0xf]
  %v2491 = vld [vmem:[%s2471 + $0x4c] sm:$0xf]
  %v2492 = vld [vmem:[%s2471 + $0x50] sm:$0xf]
  %v2493 = vld [vmem:[%s2471 + $0x54] sm:$0xf]
  %v2494 = vld [vmem:[%s2471 + $0x58] sm:$0xf]
  %v2495 = vld [vmem:[%s2471 + $0x5c] sm:$0xf]
  %v2520 = vunpack.c.l.b16 %v2472
  %v2521 = vunpack.c.l.b16 %v2473
  %v2522 = vunpack.c.l.b16 %v2474
  %v2523 = vunpack.c.l.b16 %v2475
  %v2524 = vunpack.c.l.b16 %v2476
  %v2525 = vunpack.c.l.b16 %v2477
  %v2526 = vunpack.c.l.b16 %v2478
  %v2527 = vunpack.c.l.b16 %v2479
  %v2528 = vunpack.c.l.b16 %v2480
  %v2529 = vunpack.c.l.b16 %v2481
  %v2530 = vunpack.c.l.b16 %v2482
  %v2531 = vunpack.c.l.b16 %v2483
  %v2532 = vunpack.c.l.b16 %v2484
  %v2533 = vunpack.c.l.b16 %v2485
  %v2534 = vunpack.c.l.b16 %v2486
  %v2535 = vunpack.c.l.b16 %v2487
  %v2536 = vunpack.c.l.b16 %v2488
  %v2537 = vunpack.c.l.b16 %v2489
  %v2538 = vunpack.c.l.b16 %v2490
  %v2539 = vunpack.c.l.b16 %v2491
  %v2540 = vunpack.c.l.b16 %v2492
  %v2541 = vunpack.c.l.b16 %v2493
  %v2542 = vunpack.c.l.b16 %v2494
  %v2543 = vunpack.c.l.b16 %v2495
  %v2544 = vpack.c.b16 %v2521, %v2520
  %v2545 = vpack.c.b16 %v2523, %v2522
  %v2546 = vpack.c.b16 %v2525, %v2524
  %v2547 = vpack.c.b16 %v2527, %v2526
  %v2548 = vpack.c.b16 %v2529, %v2528
  %v2549 = vpack.c.b16 %v2531, %v2530
  %v2550 = vpack.c.b16 %v2533, %v2532
  %v2551 = vpack.c.b16 %v2535, %v2534
  %v2552 = vpack.c.b16 %v2537, %v2536
  %v2553 = vpack.c.b16 %v2539, %v2538
  %v2554 = vpack.c.b16 %v2541, %v2540
  %v2555 = vpack.c.b16 %v2543, %v2542
  %v2569 = vsel %vm971, %v2470, 0
  %2571 = vmatpush.bf16.msra.mxu0 %v2551
  %2572 = vmatpush.bf16.msra.mxu0 %v2550
  %2573 = vmatpush.bf16.msra.mxu0 %v2549
  %2574 = vmatpush.bf16.msra.mxu0 %v2548
  %2575 = vmatpush.bf16.msra.mxu0 %v2547
  %2576 = vmatpush.bf16.msra.mxu0 %v2546
  %2577 = vmatpush.bf16.msra.mxu0 %v2545
  %2578 = vmatpush.bf16.msra.mxu0 %v2544
  %2579 = vmatmul.bf16.gmra.mxu0 %v2469
  %v2580 = vpop.f32.mrf.mxu0
  %v2581 = vadd.f32 0.0, %v2580
  %v2582 = vpop.f32.mrf.mxu0
  %2583 = vdwg.mxu0
  %2584 = vmatpush.bf16.msra.mxu0 0
  %2585 = vmatpush.bf16.msra.mxu0 0
  %2586 = vmatpush.bf16.msra.mxu0 0
  %2587 = vmatpush.bf16.msra.mxu0 0
  %2588 = vmatpush.bf16.msra.mxu0 %v2555
  %2589 = vmatpush.bf16.msra.mxu0 %v2554
  %2590 = vmatpush.bf16.msra.mxu0 %v2553
  %2591 = vmatpush.bf16.msra.mxu0 %v2552
  %2592 = vmatmul.bf16.gmra.mxu0 %v2569
  %v2593 = vpop.f32.mrf.mxu0
  %v2594 = vadd.f32 %v2581, %v2593
  %v2595 = vpop.f32.mrf.mxu0
  %2596 = vdwg.mxu0
  %v2621 = vunpack.c.l.b16 %v2219
  %v2622 = vunpack.c.l.b16 %v2220
  %v2623 = vunpack.c.l.b16 %v2221
  %v2624 = vunpack.c.l.b16 %v2222
  %v2625 = vunpack.c.l.b16 %v2223
  %v2626 = vunpack.c.l.b16 %v2224
  %v2627 = vunpack.c.l.b16 %v2225
  %v2628 = vunpack.c.l.b16 %v2226
  %v2629 = vunpack.c.l.b16 %v2227
  %v2630 = vunpack.c.l.b16 %v2228
  %v2631 = vunpack.c.l.b16 %v2229
  %v2632 = vunpack.c.l.b16 %v2230
  %v2633 = vunpack.c.l.b16 %v2231
  %v2634 = vunpack.c.l.b16 %v2232
  %v2635 = vunpack.c.l.b16 %v2233
  %v2636 = vunpack.c.l.b16 %v2234
  %v2637 = vunpack.c.l.b16 %v2235
  %v2638 = vunpack.c.l.b16 %v2236
  %v2639 = vunpack.c.l.b16 %v2237
  %v2640 = vunpack.c.l.b16 %v2238
  %v2641 = vunpack.c.l.b16 %v2239
  %v2642 = vunpack.c.l.b16 %v2240
  %v2643 = vunpack.c.l.b16 %v2241
  %v2644 = vunpack.c.l.b16 %v2242
  %v2645 = vpack.c.b16 %v2622, %v2621
  %v2646 = vpack.c.b16 %v2624, %v2623
  %v2647 = vpack.c.b16 %v2626, %v2625
  %v2648 = vpack.c.b16 %v2628, %v2627
  %v2649 = vpack.c.b16 %v2630, %v2629
  %v2650 = vpack.c.b16 %v2632, %v2631
  %v2651 = vpack.c.b16 %v2634, %v2633
  %v2652 = vpack.c.b16 %v2636, %v2635
  %v2653 = vpack.c.b16 %v2638, %v2637
  %v2654 = vpack.c.b16 %v2640, %v2639
  %v2655 = vpack.c.b16 %v2642, %v2641
  %v2656 = vpack.c.b16 %v2644, %v2643
  %v2670 = vsel %vm971, %v2218, 0
  %2672 = vmatpush.bf16.msra.mxu0 %v2652
  %2673 = vmatpush.bf16.msra.mxu0 %v2651
  %2674 = vmatpush.bf16.msra.mxu0 %v2650
  %2675 = vmatpush.bf16.msra.mxu0 %v2649
  %2676 = vmatpush.bf16.msra.mxu0 %v2648
  %2677 = vmatpush.bf16.msra.mxu0 %v2647
  %2678 = vmatpush.bf16.msra.mxu0 %v2646
  %2679 = vmatpush.bf16.msra.mxu0 %v2645
  %2680 = vmatmul.bf16.gmra.mxu0 %v2217
  %v2681 = vpop.f32.mrf.mxu0
  %v2682 = vadd.f32 %v2594, %v2681
  %v2683 = vpop.f32.mrf.mxu0
  %2684 = vdwg.mxu0
  %2685 = vmatpush.bf16.msra.mxu0 0
  %2686 = vmatpush.bf16.msra.mxu0 0
  %2687 = vmatpush.bf16.msra.mxu0 0
  %2688 = vmatpush.bf16.msra.mxu0 0
  %2689 = vmatpush.bf16.msra.mxu0 %v2656
  %2690 = vmatpush.bf16.msra.mxu0 %v2655
  %2691 = vmatpush.bf16.msra.mxu0 %v2654
  %2692 = vmatpush.bf16.msra.mxu0 %v2653
  %2693 = vmatmul.bf16.gmra.mxu0 %v2670
  %v2694 = vpop.f32.mrf.mxu0
  %v2695 = vadd.f32 %v2682, %v2694
  %v2696 = vpop.f32.mrf.mxu0
  %2697 = vdwg.mxu0
  %v2698 = vld [vmem:[#allocation2 + $0x40] sm:$0xff]
  %v2699 = vld [vmem:[#allocation2 + $0x48] sm:$0xff]
  %v2700 = vld [vmem:[#allocation2 + $0x50] sm:$0xff]
  %v2701 = vld [vmem:[#allocation2 + $0x58] sm:$0xff]
  %v2702 = vld [vmem:[#allocation2 + $0x60] sm:$0xff]
  %v2703 = vld [vmem:[#allocation2 + $0x68] sm:$0xff]
  %v2704 = vld [vmem:[#allocation2 + $0x70] sm:$0xff]
  %v2705 = vld [vmem:[#allocation2 + $0x78] sm:$0xff]
  %v2706 = vpack.c.bf16 %v2698, %v2698
  %v2707 = vpack.c.bf16 %v2699, %v2699
  %v2708 = vpack.c.bf16 %v2700, %v2700
  %v2709 = vpack.c.bf16 %v2701, %v2701
  %v2710 = vpack.c.bf16 %v2702, %v2702
  %v2711 = vpack.c.bf16 %v2703, %v2703
  %v2712 = vpack.c.bf16 %v2704, %v2704
  %v2713 = vpack.c.bf16 %v2705, %v2705
  %2714 = vmatpush.bf16.msra.mxu0 %v1765
  %2715 = vmatpush.bf16.msra.mxu0 %v1763
  %2716 = vmatpush.bf16.msra.mxu0 %v1761
  %2717 = vmatpush.bf16.msra.mxu0 %v1759
  %2718 = vmatpush.bf16.msra.mxu0 %v1757
  %2719 = vmatpush.bf16.msra.mxu0 %v1755
  %2720 = vmatpush.bf16.msra.mxu0 %v1753
  %2721 = vmatpush.bf16.msra.mxu0 %v1751
  %2722 = vmatmul.bf16.gmra.mxu0 %v2706
  %v2723 = vpop.f32.mrf.mxu0
  %v2724 = vadd.f32 %v1363, %v2723
  %v2725 = vpop.f32.mrf.mxu0
  %2726 = vdwg.mxu0
  %2727 = vmatpush.bf16.msra.mxu0 %v1781
  %2728 = vmatpush.bf16.msra.mxu0 %v1779
  %2729 = vmatpush.bf16.msra.mxu0 %v1777
  %2730 = vmatpush.bf16.msra.mxu0 %v1775
  %2731 = vmatpush.bf16.msra.mxu0 %v1773
  %2732 = vmatpush.bf16.msra.mxu0 %v1771
  %2733 = vmatpush.bf16.msra.mxu0 %v1769
  %2734 = vmatpush.bf16.msra.mxu0 %v1767
  %2735 = vmatmul.bf16.gmra.mxu0 %v2707
  %v2736 = vpop.f32.mrf.mxu0
  %v2737 = vadd.f32 %v2724, %v2736
  %v2738 = vpop.f32.mrf.mxu0
  %2739 = vdwg.mxu0
  %2740 = vmatpush.bf16.msra.mxu0 %v1797
  %2741 = vmatpush.bf16.msra.mxu0 %v1795
  %2742 = vmatpush.bf16.msra.mxu0 %v1793
  %2743 = vmatpush.bf16.msra.mxu0 %v1791
  %2744 = vmatpush.bf16.msra.mxu0 %v1789
  %2745 = vmatpush.bf16.msra.mxu0 %v1787
  %2746 = vmatpush.bf16.msra.mxu0 %v1785
  %2747 = vmatpush.bf16.msra.mxu0 %v1783
  %2748 = vmatmul.bf16.gmra.mxu0 %v2708
  %v2749 = vpop.f32.mrf.mxu0
  %v2750 = vadd.f32 %v2737, %v2749
  %v2751 = vpop.f32.mrf.mxu0
  %2752 = vdwg.mxu0
  %2753 = vmatpush.bf16.msra.mxu0 %v1813
  %2754 = vmatpush.bf16.msra.mxu0 %v1811
  %2755 = vmatpush.bf16.msra.mxu0 %v1809
  %2756 = vmatpush.bf16.msra.mxu0 %v1807
  %2757 = vmatpush.bf16.msra.mxu0 %v1805
  %2758 = vmatpush.bf16.msra.mxu0 %v1803
  %2759 = vmatpush.bf16.msra.mxu0 %v1801
  %2760 = vmatpush.bf16.msra.mxu0 %v1799
  %2761 = vmatmul.bf16.gmra.mxu0 %v2709
  %v2762 = vpop.f32.mrf.mxu0
  %v2763 = vadd.f32 %v2750, %v2762
  %v2764 = vpop.f32.mrf.mxu0
  %2765 = vdwg.mxu0
  %2766 = vmatpush.bf16.msra.mxu0 %v1829
  %2767 = vmatpush.bf16.msra.mxu0 %v1827
  %2768 = vmatpush.bf16.msra.mxu0 %v1825
  %2769 = vmatpush.bf16.msra.mxu0 %v1823
  %2770 = vmatpush.bf16.msra.mxu0 %v1821
  %2771 = vmatpush.bf16.msra.mxu0 %v1819
  %2772 = vmatpush.bf16.msra.mxu0 %v1817
  %2773 = vmatpush.bf16.msra.mxu0 %v1815
  %2774 = vmatmul.bf16.gmra.mxu0 %v2710
  %v2775 = vpop.f32.mrf.mxu0
  %v2776 = vadd.f32 %v2763, %v2775
  %v2777 = vpop.f32.mrf.mxu0
  %2778 = vdwg.mxu0
  %2779 = vmatpush.bf16.msra.mxu0 %v1845
  %2780 = vmatpush.bf16.msra.mxu0 %v1843
  %2781 = vmatpush.bf16.msra.mxu0 %v1841
  %2782 = vmatpush.bf16.msra.mxu0 %v1839
  %2783 = vmatpush.bf16.msra.mxu0 %v1837
  %2784 = vmatpush.bf16.msra.mxu0 %v1835
  %2785 = vmatpush.bf16.msra.mxu0 %v1833
  %2786 = vmatpush.bf16.msra.mxu0 %v1831
  %2787 = vmatmul.bf16.gmra.mxu0 %v2711
  %v2788 = vpop.f32.mrf.mxu0
  %v2789 = vadd.f32 %v2776, %v2788
  %v2790 = vpop.f32.mrf.mxu0
  %2791 = vdwg.mxu0
  %2792 = vmatpush.bf16.msra.mxu0 %v1861
  %2793 = vmatpush.bf16.msra.mxu0 %v1859
  %2794 = vmatpush.bf16.msra.mxu0 %v1857
  %2795 = vmatpush.bf16.msra.mxu0 %v1855
  %2796 = vmatpush.bf16.msra.mxu0 %v1853
  %2797 = vmatpush.bf16.msra.mxu0 %v1851
  %2798 = vmatpush.bf16.msra.mxu0 %v1849
  %2799 = vmatpush.bf16.msra.mxu0 %v1847
  %2800 = vmatmul.bf16.gmra.mxu0 %v2712
  %v2801 = vpop.f32.mrf.mxu0
  %v2802 = vadd.f32 %v2789, %v2801
  %v2803 = vpop.f32.mrf.mxu0
  %2804 = vdwg.mxu0
  %2805 = vmatpush.bf16.msra.mxu0 %v1877
  %2806 = vmatpush.bf16.msra.mxu0 %v1875
  %2807 = vmatpush.bf16.msra.mxu0 %v1873
  %2808 = vmatpush.bf16.msra.mxu0 %v1871
  %2809 = vmatpush.bf16.msra.mxu0 %v1869
  %2810 = vmatpush.bf16.msra.mxu0 %v1867
  %2811 = vmatpush.bf16.msra.mxu0 %v1865
  %2812 = vmatpush.bf16.msra.mxu0 %v1863
  %2813 = vmatmul.bf16.gmra.mxu0 %v2713
  %v2814 = vpop.f32.mrf.mxu0
  %v2815 = vadd.f32 %v2802, %v2814
  %v2816 = vpop.f32.mrf.mxu0
  %2817 = vdwg.mxu0
  %2818 = vmatpush.bf16.msra.mxu0 %v1766
  %2819 = vmatpush.bf16.msra.mxu0 %v1764
  %2820 = vmatpush.bf16.msra.mxu0 %v1762
  %2821 = vmatpush.bf16.msra.mxu0 %v1760
  %2822 = vmatpush.bf16.msra.mxu0 %v1758
  %2823 = vmatpush.bf16.msra.mxu0 %v1756
  %2824 = vmatpush.bf16.msra.mxu0 %v1754
  %2825 = vmatpush.bf16.msra.mxu0 %v1752
  %2826 = vmatmul.bf16.gmra.mxu0 %v2706
  %v2827 = vpop.f32.mrf.mxu0
  %v2828 = vadd.f32 %v1364, %v2827
  %v2829 = vpop.f32.mrf.mxu0
  %2830 = vdwg.mxu0
  %2831 = vmatpush.bf16.msra.mxu0 %v1782
  %2832 = vmatpush.bf16.msra.mxu0 %v1780
  %2833 = vmatpush.bf16.msra.mxu0 %v1778
  %2834 = vmatpush.bf16.msra.mxu0 %v1776
  %2835 = vmatpush.bf16.msra.mxu0 %v1774
  %2836 = vmatpush.bf16.msra.mxu0 %v1772
  %2837 = vmatpush.bf16.msra.mxu0 %v1770
  %2838 = vmatpush.bf16.msra.mxu0 %v1768
  %2839 = vmatmul.bf16.gmra.mxu0 %v2707
  %v2840 = vpop.f32.mrf.mxu0
  %v2841 = vadd.f32 %v2828, %v2840
  %v2842 = vpop.f32.mrf.mxu0
  %2843 = vdwg.mxu0
  %2844 = vmatpush.bf16.msra.mxu0 %v1798
  %2845 = vmatpush.bf16.msra.mxu0 %v1796
  %2846 = vmatpush.bf16.msra.mxu0 %v1794
  %2847 = vmatpush.bf16.msra.mxu0 %v1792
  %2848 = vmatpush.bf16.msra.mxu0 %v1790
  %2849 = vmatpush.bf16.msra.mxu0 %v1788
  %2850 = vmatpush.bf16.msra.mxu0 %v1786
  %2851 = vmatpush.bf16.msra.mxu0 %v1784
  %2852 = vmatmul.bf16.gmra.mxu0 %v2708
  %v2853 = vpop.f32.mrf.mxu0
  %v2854 = vadd.f32 %v2841, %v2853
  %v2855 = vpop.f32.mrf.mxu0
  %2856 = vdwg.mxu0
  %2857 = vmatpush.bf16.msra.mxu0 %v1814
  %2858 = vmatpush.bf16.msra.mxu0 %v1812
  %2859 = vmatpush.bf16.msra.mxu0 %v1810
  %2860 = vmatpush.bf16.msra.mxu0 %v1808
  %2861 = vmatpush.bf16.msra.mxu0 %v1806
  %2862 = vmatpush.bf16.msra.mxu0 %v1804
  %2863 = vmatpush.bf16.msra.mxu0 %v1802
  %2864 = vmatpush.bf16.msra.mxu0 %v1800
  %2865 = vmatmul.bf16.gmra.mxu0 %v2709
  %v2866 = vpop.f32.mrf.mxu0
  %v2867 = vadd.f32 %v2854, %v2866
  %v2868 = vpop.f32.mrf.mxu0
  %2869 = vdwg.mxu0
  %2870 = vmatpush.bf16.msra.mxu0 %v1830
  %2871 = vmatpush.bf16.msra.mxu0 %v1828
  %2872 = vmatpush.bf16.msra.mxu0 %v1826
  %2873 = vmatpush.bf16.msra.mxu0 %v1824
  %2874 = vmatpush.bf16.msra.mxu0 %v1822
  %2875 = vmatpush.bf16.msra.mxu0 %v1820
  %2876 = vmatpush.bf16.msra.mxu0 %v1818
  %2877 = vmatpush.bf16.msra.mxu0 %v1816
  %2878 = vmatmul.bf16.gmra.mxu0 %v2710
  %v2879 = vpop.f32.mrf.mxu0
  %v2880 = vadd.f32 %v2867, %v2879
  %v2881 = vpop.f32.mrf.mxu0
  %2882 = vdwg.mxu0
  %2883 = vmatpush.bf16.msra.mxu0 %v1846
  %2884 = vmatpush.bf16.msra.mxu0 %v1844
  %2885 = vmatpush.bf16.msra.mxu0 %v1842
  %2886 = vmatpush.bf16.msra.mxu0 %v1840
  %2887 = vmatpush.bf16.msra.mxu0 %v1838
  %2888 = vmatpush.bf16.msra.mxu0 %v1836
  %2889 = vmatpush.bf16.msra.mxu0 %v1834
  %2890 = vmatpush.bf16.msra.mxu0 %v1832
  %2891 = vmatmul.bf16.gmra.mxu0 %v2711
  %v2892 = vpop.f32.mrf.mxu0
  %v2893 = vadd.f32 %v2880, %v2892
  %v2894 = vpop.f32.mrf.mxu0
  %2895 = vdwg.mxu0
  %2896 = vmatpush.bf16.msra.mxu0 %v1862
  %2897 = vmatpush.bf16.msra.mxu0 %v1860
  %2898 = vmatpush.bf16.msra.mxu0 %v1858
  %2899 = vmatpush.bf16.msra.mxu0 %v1856
  %2900 = vmatpush.bf16.msra.mxu0 %v1854
  %2901 = vmatpush.bf16.msra.mxu0 %v1852
  %2902 = vmatpush.bf16.msra.mxu0 %v1850
  %2903 = vmatpush.bf16.msra.mxu0 %v1848
  %2904 = vmatmul.bf16.gmra.mxu0 %v2712
  %v2905 = vpop.f32.mrf.mxu0
  %v2906 = vadd.f32 %v2893, %v2905
  %v2907 = vpop.f32.mrf.mxu0
  %2908 = vdwg.mxu0
  %2909 = vmatpush.bf16.msra.mxu0 %v1878
  %2910 = vmatpush.bf16.msra.mxu0 %v1876
  %2911 = vmatpush.bf16.msra.mxu0 %v1874
  %2912 = vmatpush.bf16.msra.mxu0 %v1872
  %2913 = vmatpush.bf16.msra.mxu0 %v1870
  %2914 = vmatpush.bf16.msra.mxu0 %v1868
  %2915 = vmatpush.bf16.msra.mxu0 %v1866
  %2916 = vmatpush.bf16.msra.mxu0 %v1864
  %2917 = vmatmul.bf16.gmra.mxu0 %v2713
  %v2918 = vpop.f32.mrf.mxu0
  %v2919 = vadd.f32 %v2906, %v2918
  %v2920 = vpop.f32.mrf.mxu0
  %2921 = vdwg.mxu0
  %v2922 = vmax.f32 %v2815, 0.0
  %v2923 = vmax.f32 %v2919, 0.0
  %v2924 = vpack.c.bf16 %v2922, %v2922
  %v2925 = vpack.c.bf16 %v2923, %v2923
  %s2926 = scalar_lea.vmem %s5, 192
  %v2927 = vld [vmem:[%s2926] sm:$0xf]
  %v2928 = vld [vmem:[%s2926 + $0x4] sm:$0xf]
  %v2929 = vld [vmem:[%s2926 + $0x8] sm:$0xf]
  %v2930 = vld [vmem:[%s2926 + $0xc] sm:$0xf]
  %v2931 = vld [vmem:[%s2926 + $0x10] sm:$0xf]
  %v2932 = vld [vmem:[%s2926 + $0x14] sm:$0xf]
  %v2933 = vld [vmem:[%s2926 + $0x18] sm:$0xf]
  %v2934 = vld [vmem:[%s2926 + $0x1c] sm:$0xf]
  %v2935 = vld [vmem:[%s2926 + $0x20] sm:$0xf]
  %v2936 = vld [vmem:[%s2926 + $0x24] sm:$0xf]
  %v2937 = vld [vmem:[%s2926 + $0x28] sm:$0xf]
  %v2938 = vld [vmem:[%s2926 + $0x2c] sm:$0xf]
  %v2939 = vld [vmem:[%s2926 + $0x30] sm:$0xf]
  %v2940 = vld [vmem:[%s2926 + $0x34] sm:$0xf]
  %v2941 = vld [vmem:[%s2926 + $0x38] sm:$0xf]
  %v2942 = vld [vmem:[%s2926 + $0x3c] sm:$0xf]
  %v2943 = vld [vmem:[%s2926 + $0x40] sm:$0xf]
  %v2944 = vld [vmem:[%s2926 + $0x44] sm:$0xf]
  %v2945 = vld [vmem:[%s2926 + $0x48] sm:$0xf]
  %v2946 = vld [vmem:[%s2926 + $0x4c] sm:$0xf]
  %v2947 = vld [vmem:[%s2926 + $0x50] sm:$0xf]
  %v2948 = vld [vmem:[%s2926 + $0x54] sm:$0xf]
  %v2949 = vld [vmem:[%s2926 + $0x58] sm:$0xf]
  %v2950 = vld [vmem:[%s2926 + $0x5c] sm:$0xf]
  %v2975 = vunpack.c.l.b16 %v2927
  %v2976 = vunpack.c.l.b16 %v2928
  %v2977 = vunpack.c.l.b16 %v2929
  %v2978 = vunpack.c.l.b16 %v2930
  %v2979 = vunpack.c.l.b16 %v2931
  %v2980 = vunpack.c.l.b16 %v2932
  %v2981 = vunpack.c.l.b16 %v2933
  %v2982 = vunpack.c.l.b16 %v2934
  %v2983 = vunpack.c.l.b16 %v2935
  %v2984 = vunpack.c.l.b16 %v2936
  %v2985 = vunpack.c.l.b16 %v2937
  %v2986 = vunpack.c.l.b16 %v2938
  %v2987 = vunpack.c.l.b16 %v2939
  %v2988 = vunpack.c.l.b16 %v2940
  %v2989 = vunpack.c.l.b16 %v2941
  %v2990 = vunpack.c.l.b16 %v2942
  %v2991 = vunpack.c.l.b16 %v2943
  %v2992 = vunpack.c.l.b16 %v2944
  %v2993 = vunpack.c.l.b16 %v2945
  %v2994 = vunpack.c.l.b16 %v2946
  %v2995 = vunpack.c.l.b16 %v2947
  %v2996 = vunpack.c.l.b16 %v2948
  %v2997 = vunpack.c.l.b16 %v2949
  %v2998 = vunpack.c.l.b16 %v2950
  %v2999 = vpack.c.b16 %v2976, %v2975
  %v3000 = vpack.c.b16 %v2978, %v2977
  %v3001 = vpack.c.b16 %v2980, %v2979
  %v3002 = vpack.c.b16 %v2982, %v2981
  %v3003 = vpack.c.b16 %v2984, %v2983
  %v3004 = vpack.c.b16 %v2986, %v2985
  %v3005 = vpack.c.b16 %v2988, %v2987
  %v3006 = vpack.c.b16 %v2990, %v2989
  %v3007 = vpack.c.b16 %v2992, %v2991
  %v3008 = vpack.c.b16 %v2994, %v2993
  %v3009 = vpack.c.b16 %v2996, %v2995
  %v3010 = vpack.c.b16 %v2998, %v2997
  %v3024 = vsel %vm971, %v2925, 0
  %3026 = vmatpush.bf16.msra.mxu0 %v3006
  %3027 = vmatpush.bf16.msra.mxu0 %v3005
  %3028 = vmatpush.bf16.msra.mxu0 %v3004
  %3029 = vmatpush.bf16.msra.mxu0 %v3003
  %3030 = vmatpush.bf16.msra.mxu0 %v3002
  %3031 = vmatpush.bf16.msra.mxu0 %v3001
  %3032 = vmatpush.bf16.msra.mxu0 %v3000
  %3033 = vmatpush.bf16.msra.mxu0 %v2999
  %3034 = vmatmul.bf16.gmra.mxu0 %v2924
  %v3035 = vpop.f32.mrf.mxu0
  %v3036 = vadd.f32 0.0, %v3035
  %v3037 = vpop.f32.mrf.mxu0
  %3038 = vdwg.mxu0
  %3039 = vmatpush.bf16.msra.mxu0 0
  %3040 = vmatpush.bf16.msra.mxu0 0
  %3041 = vmatpush.bf16.msra.mxu0 0
  %3042 = vmatpush.bf16.msra.mxu0 0
  %3043 = vmatpush.bf16.msra.mxu0 %v3010
  %3044 = vmatpush.bf16.msra.mxu0 %v3009
  %3045 = vmatpush.bf16.msra.mxu0 %v3008
  %3046 = vmatpush.bf16.msra.mxu0 %v3007
  %3047 = vmatmul.bf16.gmra.mxu0 %v3024
  %v3048 = vpop.f32.mrf.mxu0
  %v3049 = vadd.f32 %v3036, %v3048
  %v3050 = vpop.f32.mrf.mxu0
  %3051 = vdwg.mxu0
  %v3052 = vadd.f32 %v2695, %v3049
  %v3054 = vperm.slane %v1217, 0
  %v3056 = vadd.f32 %v3052, %v3054
  %v3057 = vmax.f32 %v3056, 0.0
  %v3058 = vpack.c.bf16 %v3057, %v3057
  %v3059 = vld [vmem:[%s7] sm:$0xff]
  %v3060 = vld [vmem:[%s7 + $0x8] sm:$0xff]
  %v3061 = vld [vmem:[%s7 + $0x10] sm:$0xff]
  %v3062 = vld [vmem:[%s7 + $0x18] sm:$0xff]
  %v3063 = vld [vmem:[%s7 + $0x20] sm:$0xff]
  %v3064 = vld [vmem:[%s7 + $0x28] sm:$0xff]
  %v3065 = vld [vmem:[%s7 + $0x30] sm:$0xff]
  %v3066 = vld [vmem:[%s7 + $0x38] sm:$0xff]
  %v3067 = vld [vmem:[%s7 + $0x40] sm:$0xff]
  %v3068 = vld [vmem:[%s7 + $0x48] sm:$0xff]
  %v3069 = vld [vmem:[%s7 + $0x50] sm:$0xff]
  %v3070 = vld [vmem:[%s7 + $0x58] sm:$0xff]
  %v3071 = vld [vmem:[%s7 + $0x60] sm:$0xff]
  %v3072 = vld [vmem:[%s7 + $0x68] sm:$0xff]
  %v3073 = vld [vmem:[%s7 + $0x70] sm:$0xff]
  %v3074 = vld [vmem:[%s7 + $0x78] sm:$0xff]
  %v3075 = vld [vmem:[%s7 + $0x80] sm:$0xff]
  %v3076 = vld [vmem:[%s7 + $0x88] sm:$0xff]
  %v3077 = vld [vmem:[%s7 + $0x90] sm:$0xff]
  %v3078 = vld [vmem:[%s7 + $0x98] sm:$0xff]
  %v3079 = vld [vmem:[%s7 + $0xa0] sm:$0xff]
  %v3080 = vld [vmem:[%s7 + $0xa8] sm:$0xff]
  %v3081 = vld [vmem:[%s7 + $0xb0] sm:$0xff]
  %v3082 = vld [vmem:[%s7 + $0xb8] sm:$0xff]
  %v3083 = vld [vmem:[%s7 + $0xc0] sm:$0xff]
  %v3084 = vld [vmem:[%s7 + $0xc8] sm:$0xff]
  %v3085 = vld [vmem:[%s7 + $0xd0] sm:$0xff]
  %v3086 = vld [vmem:[%s7 + $0xd8] sm:$0xff]
  %v3087 = vld [vmem:[%s7 + $0xe0] sm:$0xff]
  %v3088 = vld [vmem:[%s7 + $0xe8] sm:$0xff]
  %v3089 = vld [vmem:[%s7 + $0xf0] sm:$0xff]
  %v3090 = vld [vmem:[%s7 + $0xf8] sm:$0xff]
  %v3091 = vld [vmem:[%s8] sm:$0xff]
  %v3093 = vperm.slane %v3091, 0
  %v3094 = vperm.slane %v3091, 1
  %v3095 = vperm.slane %v3091, 2
  %v3096 = vperm.slane %v3091, 3
  %v3097 = vperm.slane %v3091, 4
  %v3098 = vperm.slane %v3091, 5
  %v3099 = vperm.slane %v3091, 6
  %v3100 = vperm.slane %v3091, 7
  %v3141 = vunpack.c.l.b16 %v3059
  %v3142 = vunpack.c.h.b16 %v3059
  %v3143 = vunpack.c.l.b16 %v3060
  %v3144 = vunpack.c.h.b16 %v3060
  %v3145 = vunpack.c.l.b16 %v3061
  %v3146 = vunpack.c.h.b16 %v3061
  %v3147 = vunpack.c.l.b16 %v3062
  %v3148 = vunpack.c.h.b16 %v3062
  %v3149 = vunpack.c.l.b16 %v3063
  %v3150 = vunpack.c.h.b16 %v3063
  %v3151 = vunpack.c.l.b16 %v3064
  %v3152 = vunpack.c.h.b16 %v3064
  %v3153 = vunpack.c.l.b16 %v3065
  %v3154 = vunpack.c.h.b16 %v3065
  %v3155 = vunpack.c.l.b16 %v3066
  %v3156 = vunpack.c.h.b16 %v3066
  %v3157 = vunpack.c.l.b16 %v3067
  %v3158 = vunpack.c.h.b16 %v3067
  %v3159 = vunpack.c.l.b16 %v3068
  %v3160 = vunpack.c.h.b16 %v3068
  %v3161 = vunpack.c.l.b16 %v3069
  %v3162 = vunpack.c.h.b16 %v3069
  %v3163 = vunpack.c.l.b16 %v3070
  %v3164 = vunpack.c.h.b16 %v3070
  %v3165 = vunpack.c.l.b16 %v3071
  %v3166 = vunpack.c.h.b16 %v3071
  %v3167 = vunpack.c.l.b16 %v3072
  %v3168 = vunpack.c.h.b16 %v3072
  %v3169 = vunpack.c.l.b16 %v3073
  %v3170 = vunpack.c.h.b16 %v3073
  %v3171 = vunpack.c.l.b16 %v3074
  %v3172 = vunpack.c.h.b16 %v3074
  %v3173 = vunpack.c.l.b16 %v3075
  %v3174 = vunpack.c.h.b16 %v3075
  %v3175 = vunpack.c.l.b16 %v3076
  %v3176 = vunpack.c.h.b16 %v3076
  %v3177 = vunpack.c.l.b16 %v3077
  %v3178 = vunpack.c.h.b16 %v3077
  %v3179 = vunpack.c.l.b16 %v3078
  %v3180 = vunpack.c.h.b16 %v3078
  %v3181 = vunpack.c.l.b16 %v3079
  %v3182 = vunpack.c.h.b16 %v3079
  %v3183 = vunpack.c.l.b16 %v3080
  %v3184 = vunpack.c.h.b16 %v3080
  %v3185 = vunpack.c.l.b16 %v3081
  %v3186 = vunpack.c.h.b16 %v3081
  %v3187 = vunpack.c.l.b16 %v3082
  %v3188 = vunpack.c.h.b16 %v3082
  %v3189 = vunpack.c.l.b16 %v3083
  %v3190 = vunpack.c.h.b16 %v3083
  %v3191 = vunpack.c.l.b16 %v3084
  %v3192 = vunpack.c.h.b16 %v3084
  %v3193 = vunpack.c.l.b16 %v3085
  %v3194 = vunpack.c.h.b16 %v3085
  %v3195 = vunpack.c.l.b16 %v3086
  %v3196 = vunpack.c.h.b16 %v3086
  %v3197 = vunpack.c.l.b16 %v3087
  %v3198 = vunpack.c.h.b16 %v3087
  %v3199 = vunpack.c.l.b16 %v3088
  %v3200 = vunpack.c.h.b16 %v3088
  %v3201 = vunpack.c.l.b16 %v3089
  %v3202 = vunpack.c.h.b16 %v3089
  %v3203 = vunpack.c.l.b16 %v3090
  %v3204 = vunpack.c.h.b16 %v3090
  %v3205 = vpack.c.b16 %v3149, %v3141
  %v3206 = vpack.c.b16 %v3150, %v3142
  %v3207 = vpack.c.b16 %v3151, %v3143
  %v3208 = vpack.c.b16 %v3152, %v3144
  %v3209 = vpack.c.b16 %v3153, %v3145
  %v3210 = vpack.c.b16 %v3154, %v3146
  %v3211 = vpack.c.b16 %v3155, %v3147
  %v3212 = vpack.c.b16 %v3156, %v3148
  %v3213 = vpack.c.b16 %v3165, %v3157
  %v3214 = vpack.c.b16 %v3166, %v3158
  %v3215 = vpack.c.b16 %v3167, %v3159
  %v3216 = vpack.c.b16 %v3168, %v3160
  %v3217 = vpack.c.b16 %v3169, %v3161
  %v3218 = vpack.c.b16 %v3170, %v3162
  %v3219 = vpack.c.b16 %v3171, %v3163
  %v3220 = vpack.c.b16 %v3172, %v3164
  %v3221 = vpack.c.b16 %v3181, %v3173
  %v3222 = vpack.c.b16 %v3182, %v3174
  %v3223 = vpack.c.b16 %v3183, %v3175
  %v3224 = vpack.c.b16 %v3184, %v3176
  %v3225 = vpack.c.b16 %v3185, %v3177
  %v3226 = vpack.c.b16 %v3186, %v3178
  %v3227 = vpack.c.b16 %v3187, %v3179
  %v3228 = vpack.c.b16 %v3188, %v3180
  %v3229 = vpack.c.b16 %v3197, %v3189
  %v3230 = vpack.c.b16 %v3198, %v3190
  %v3231 = vpack.c.b16 %v3199, %v3191
  %v3232 = vpack.c.b16 %v3200, %v3192
  %v3233 = vpack.c.b16 %v3201, %v3193
  %v3234 = vpack.c.b16 %v3202, %v3194
  %v3235 = vpack.c.b16 %v3203, %v3195
  %v3236 = vpack.c.b16 %v3204, %v3196
  %v3270 = vsel %vm971, %v3058, 0
  %3272 = vmatpush.bf16.msra.mxu0 0
  %3273 = vmatpush.bf16.msra.mxu0 0
  %3274 = vmatpush.bf16.msra.mxu0 0
  %3275 = vmatpush.bf16.msra.mxu0 0
  %3276 = vmatpush.bf16.msra.mxu0 %v3229
  %3277 = vmatpush.bf16.msra.mxu0 %v3221
  %3278 = vmatpush.bf16.msra.mxu0 %v3213
  %3279 = vmatpush.bf16.msra.mxu0 %v3205
  %3280 = vmatmul.bf16.gmra.mxu0 %v3270
  %v3281 = vpop.f32.mrf.mxu0
  %v3282 = vadd.f32 %v3093, %v3281
  %v3283 = vpop.f32.mrf.mxu0
  %3284 = vdwg.mxu0
  %3285 = vmatpush.bf16.msra.mxu0 0
  %3286 = vmatpush.bf16.msra.mxu0 0
  %3287 = vmatpush.bf16.msra.mxu0 0
  %3288 = vmatpush.bf16.msra.mxu0 0
  %3289 = vmatpush.bf16.msra.mxu0 %v3230
  %3290 = vmatpush.bf16.msra.mxu0 %v3222
  %3291 = vmatpush.bf16.msra.mxu0 %v3214
  %3292 = vmatpush.bf16.msra.mxu0 %v3206
  %3293 = vmatmul.bf16.gmra.mxu0 %v3270
  %v3294 = vpop.f32.mrf.mxu0
  %v3295 = vadd.f32 %v3094, %v3294
  %v3296 = vpop.f32.mrf.mxu0
  %3297 = vdwg.mxu0
  %3298 = vmatpush.bf16.msra.mxu0 0
  %3299 = vmatpush.bf16.msra.mxu0 0
  %3300 = vmatpush.bf16.msra.mxu0 0
  %3301 = vmatpush.bf16.msra.mxu0 0
  %3302 = vmatpush.bf16.msra.mxu0 %v3231
  %3303 = vmatpush.bf16.msra.mxu0 %v3223
  %3304 = vmatpush.bf16.msra.mxu0 %v3215
  %3305 = vmatpush.bf16.msra.mxu0 %v3207
  %3306 = vmatmul.bf16.gmra.mxu0 %v3270
  %v3307 = vpop.f32.mrf.mxu0
  %v3308 = vadd.f32 %v3095, %v3307
  %v3309 = vpop.f32.mrf.mxu0
  %3310 = vdwg.mxu0
  %3311 = vmatpush.bf16.msra.mxu0 0
  %3312 = vmatpush.bf16.msra.mxu0 0
  %3313 = vmatpush.bf16.msra.mxu0 0
  %3314 = vmatpush.bf16.msra.mxu0 0
  %3315 = vmatpush.bf16.msra.mxu0 %v3232
  %3316 = vmatpush.bf16.msra.mxu0 %v3224
  %3317 = vmatpush.bf16.msra.mxu0 %v3216
  %3318 = vmatpush.bf16.msra.mxu0 %v3208
  %3319 = vmatmul.bf16.gmra.mxu0 %v3270
  %v3320 = vpop.f32.mrf.mxu0
  %v3321 = vadd.f32 %v3096, %v3320
  %v3322 = vpop.f32.mrf.mxu0
  %3323 = vdwg.mxu0
  %3324 = vmatpush.bf16.msra.mxu0 0
  %3325 = vmatpush.bf16.msra.mxu0 0
  %3326 = vmatpush.bf16.msra.mxu0 0
  %3327 = vmatpush.bf16.msra.mxu0 0
  %3328 = vmatpush.bf16.msra.mxu0 %v3233
  %3329 = vmatpush.bf16.msra.mxu0 %v3225
  %3330 = vmatpush.bf16.msra.mxu0 %v3217
  %3331 = vmatpush.bf16.msra.mxu0 %v3209
  %3332 = vmatmul.bf16.gmra.mxu0 %v3270
  %v3333 = vpop.f32.mrf.mxu0
  %v3334 = vadd.f32 %v3097, %v3333
  %v3335 = vpop.f32.mrf.mxu0
  %3336 = vdwg.mxu0
  %3337 = vmatpush.bf16.msra.mxu0 0
  %3338 = vmatpush.bf16.msra.mxu0 0
  %3339 = vmatpush.bf16.msra.mxu0 0
  %3340 = vmatpush.bf16.msra.mxu0 0
  %3341 = vmatpush.bf16.msra.mxu0 %v3234
  %3342 = vmatpush.bf16.msra.mxu0 %v3226
  %3343 = vmatpush.bf16.msra.mxu0 %v3218
  %3344 = vmatpush.bf16.msra.mxu0 %v3210
  %3345 = vmatmul.bf16.gmra.mxu0 %v3270
  %v3346 = vpop.f32.mrf.mxu0
  %v3347 = vadd.f32 %v3098, %v3346
  %v3348 = vpop.f32.mrf.mxu0
  %3349 = vdwg.mxu0
  %3350 = vmatpush.bf16.msra.mxu0 0
  %3351 = vmatpush.bf16.msra.mxu0 0
  %3352 = vmatpush.bf16.msra.mxu0 0
  %3353 = vmatpush.bf16.msra.mxu0 0
  %3354 = vmatpush.bf16.msra.mxu0 %v3235
  %3355 = vmatpush.bf16.msra.mxu0 %v3227
  %3356 = vmatpush.bf16.msra.mxu0 %v3219
  %3357 = vmatpush.bf16.msra.mxu0 %v3211
  %3358 = vmatmul.bf16.gmra.mxu0 %v3270
  %v3359 = vpop.f32.mrf.mxu0
  %v3360 = vadd.f32 %v3099, %v3359
  %v3361 = vpop.f32.mrf.mxu0
  %3362 = vdwg.mxu0
  %3363 = vmatpush.bf16.msra.mxu0 0
  %3364 = vmatpush.bf16.msra.mxu0 0
  %3365 = vmatpush.bf16.msra.mxu0 0
  %3366 = vmatpush.bf16.msra.mxu0 0
  %3367 = vmatpush.bf16.msra.mxu0 %v3236
  %3368 = vmatpush.bf16.msra.mxu0 %v3228
  %3369 = vmatpush.bf16.msra.mxu0 %v3220
  %3370 = vmatpush.bf16.msra.mxu0 %v3212
  %3371 = vmatmul.bf16.gmra.mxu0 %v3270
  %v3372 = vpop.f32.mrf.mxu0
  %v3373 = vadd.f32 %v3100, %v3372
  %v3374 = vpop.f32.mrf.mxu0
  %3375 = vdwg.mxu0
  %v3376 = vmax.f32 %v3282, 0.0
  %v3377 = vmax.f32 %v3295, 0.0
  %v3378 = vmax.f32 %v3308, 0.0
  %v3379 = vmax.f32 %v3321, 0.0
  %v3380 = vmax.f32 %v3334, 0.0
  %v3381 = vmax.f32 %v3347, 0.0
  %v3382 = vmax.f32 %v3360, 0.0
  %v3383 = vmax.f32 %v3373, 0.0
  %v3384 = vpack.c.bf16 %v3376, %v3376
  %v3385 = vpack.c.bf16 %v3377, %v3377
  %v3386 = vpack.c.bf16 %v3378, %v3378
  %v3387 = vpack.c.bf16 %v3379, %v3379
  %v3388 = vpack.c.bf16 %v3380, %v3380
  %v3389 = vpack.c.bf16 %v3381, %v3381
  %v3390 = vpack.c.bf16 %v3382, %v3382
  %v3391 = vpack.c.bf16 %v3383, %v3383
  %v3392 = vld [vmem:[%s9] sm:$0xf]
  %v3393 = vld [vmem:[%s9 + $0x4] sm:$0xf]
  %v3394 = vld [vmem:[%s9 + $0x8] sm:$0xf]
  %v3395 = vld [vmem:[%s9 + $0xc] sm:$0xf]
  %v3396 = vld [vmem:[%s9 + $0x10] sm:$0xf]
  %v3397 = vld [vmem:[%s9 + $0x14] sm:$0xf]
  %v3398 = vld [vmem:[%s9 + $0x18] sm:$0xf]
  %v3399 = vld [vmem:[%s9 + $0x1c] sm:$0xf]
  %v3400 = vld [vmem:[%s9 + $0x20] sm:$0xf]
  %v3401 = vld [vmem:[%s9 + $0x24] sm:$0xf]
  %v3402 = vld [vmem:[%s9 + $0x28] sm:$0xf]
  %v3403 = vld [vmem:[%s9 + $0x2c] sm:$0xf]
  %v3404 = vld [vmem:[%s9 + $0x30] sm:$0xf]
  %v3405 = vld [vmem:[%s9 + $0x34] sm:$0xf]
  %v3406 = vld [vmem:[%s9 + $0x38] sm:$0xf]
  %v3407 = vld [vmem:[%s9 + $0x3c] sm:$0xf]
  %v3408 = vld [vmem:[%s9 + $0x40] sm:$0xf]
  %v3409 = vld [vmem:[%s9 + $0x44] sm:$0xf]
  %v3410 = vld [vmem:[%s9 + $0x48] sm:$0xf]
  %v3411 = vld [vmem:[%s9 + $0x4c] sm:$0xf]
  %v3412 = vld [vmem:[%s9 + $0x50] sm:$0xf]
  %v3413 = vld [vmem:[%s9 + $0x54] sm:$0xf]
  %v3414 = vld [vmem:[%s9 + $0x58] sm:$0xf]
  %v3415 = vld [vmem:[%s9 + $0x5c] sm:$0xf]
  %v3416 = vld [vmem:[%s9 + $0x60] sm:$0xf]
  %v3417 = vld [vmem:[%s9 + $0x64] sm:$0xf]
  %v3418 = vld [vmem:[%s9 + $0x68] sm:$0xf]
  %v3419 = vld [vmem:[%s9 + $0x6c] sm:$0xf]
  %v3420 = vld [vmem:[%s9 + $0x70] sm:$0xf]
  %v3421 = vld [vmem:[%s9 + $0x74] sm:$0xf]
  %v3422 = vld [vmem:[%s9 + $0x78] sm:$0xf]
  %v3423 = vld [vmem:[%s9 + $0x7c] sm:$0xf]
  %v3424 = vld [vmem:[%s9 + $0x80] sm:$0xf]
  %v3425 = vld [vmem:[%s9 + $0x84] sm:$0xf]
  %v3426 = vld [vmem:[%s9 + $0x88] sm:$0xf]
  %v3427 = vld [vmem:[%s9 + $0x8c] sm:$0xf]
  %v3428 = vld [vmem:[%s9 + $0x90] sm:$0xf]
  %v3429 = vld [vmem:[%s9 + $0x94] sm:$0xf]
  %v3430 = vld [vmem:[%s9 + $0x98] sm:$0xf]
  %v3431 = vld [vmem:[%s9 + $0x9c] sm:$0xf]
  %v3432 = vld [vmem:[%s9 + $0xa0] sm:$0xf]
  %v3433 = vld [vmem:[%s9 + $0xa4] sm:$0xf]
  %v3434 = vld [vmem:[%s9 + $0xa8] sm:$0xf]
  %v3435 = vld [vmem:[%s9 + $0xac] sm:$0xf]
  %v3436 = vld [vmem:[%s9 + $0xb0] sm:$0xf]
  %v3437 = vld [vmem:[%s9 + $0xb4] sm:$0xf]
  %v3438 = vld [vmem:[%s9 + $0xb8] sm:$0xf]
  %v3439 = vld [vmem:[%s9 + $0xbc] sm:$0xf]
  %v3440 = vld [vmem:[%s9 + $0xc0] sm:$0xf]
  %v3441 = vld [vmem:[%s9 + $0xc4] sm:$0xf]
  %v3442 = vld [vmem:[%s9 + $0xc8] sm:$0xf]
  %v3443 = vld [vmem:[%s9 + $0xcc] sm:$0xf]
  %v3444 = vld [vmem:[%s9 + $0xd0] sm:$0xf]
  %v3445 = vld [vmem:[%s9 + $0xd4] sm:$0xf]
  %v3446 = vld [vmem:[%s9 + $0xd8] sm:$0xf]
  %v3447 = vld [vmem:[%s9 + $0xdc] sm:$0xf]
  %v3448 = vld [vmem:[%s9 + $0xe0] sm:$0xf]
  %v3449 = vld [vmem:[%s9 + $0xe4] sm:$0xf]
  %v3450 = vld [vmem:[%s9 + $0xe8] sm:$0xf]
  %v3451 = vld [vmem:[%s9 + $0xec] sm:$0xf]
  %v3452 = vld [vmem:[%s9 + $0xf0] sm:$0xf]
  %v3453 = vld [vmem:[%s9 + $0xf4] sm:$0xf]
  %v3454 = vld [vmem:[%s9 + $0xf8] sm:$0xf]
  %v3455 = vld [vmem:[%s9 + $0xfc] sm:$0xf]
  %v3456 = vld [vmem:[%s9 + $0x100] sm:$0xf]
  %v3457 = vld [vmem:[%s9 + $0x104] sm:$0xf]
  %v3458 = vld [vmem:[%s9 + $0x108] sm:$0xf]
  %v3459 = vld [vmem:[%s9 + $0x10c] sm:$0xf]
  %v3460 = vld [vmem:[%s9 + $0x110] sm:$0xf]
  %v3461 = vld [vmem:[%s9 + $0x114] sm:$0xf]
  %v3462 = vld [vmem:[%s9 + $0x118] sm:$0xf]
  %v3463 = vld [vmem:[%s9 + $0x11c] sm:$0xf]
  %v3464 = vld [vmem:[%s9 + $0x120] sm:$0xf]
  %v3465 = vld [vmem:[%s9 + $0x124] sm:$0xf]
  %v3466 = vld [vmem:[%s9 + $0x128] sm:$0xf]
  %v3467 = vld [vmem:[%s9 + $0x12c] sm:$0xf]
  %v3468 = vld [vmem:[%s9 + $0x130] sm:$0xf]
  %v3469 = vld [vmem:[%s9 + $0x134] sm:$0xf]
  %v3470 = vld [vmem:[%s9 + $0x138] sm:$0xf]
  %v3471 = vld [vmem:[%s9 + $0x13c] sm:$0xf]
  %v3472 = vld [vmem:[%s9 + $0x140] sm:$0xf]
  %v3473 = vld [vmem:[%s9 + $0x144] sm:$0xf]
  %v3474 = vld [vmem:[%s9 + $0x148] sm:$0xf]
  %v3475 = vld [vmem:[%s9 + $0x14c] sm:$0xf]
  %v3476 = vld [vmem:[%s9 + $0x150] sm:$0xf]
  %v3477 = vld [vmem:[%s9 + $0x154] sm:$0xf]
  %v3478 = vld [vmem:[%s9 + $0x158] sm:$0xf]
  %v3479 = vld [vmem:[%s9 + $0x15c] sm:$0xf]
  %v3480 = vld [vmem:[%s9 + $0x160] sm:$0xf]
  %v3481 = vld [vmem:[%s9 + $0x164] sm:$0xf]
  %v3482 = vld [vmem:[%s9 + $0x168] sm:$0xf]
  %v3483 = vld [vmem:[%s9 + $0x16c] sm:$0xf]
  %v3484 = vld [vmem:[%s9 + $0x170] sm:$0xf]
  %v3485 = vld [vmem:[%s9 + $0x174] sm:$0xf]
  %v3486 = vld [vmem:[%s9 + $0x178] sm:$0xf]
  %v3487 = vld [vmem:[%s9 + $0x17c] sm:$0xf]
  %v3488 = vld [vmem:[%s9 + $0x180] sm:$0xf]
  %v3489 = vld [vmem:[%s9 + $0x184] sm:$0xf]
  %v3490 = vld [vmem:[%s9 + $0x188] sm:$0xf]
  %v3491 = vld [vmem:[%s9 + $0x18c] sm:$0xf]
  %v3492 = vld [vmem:[%s9 + $0x190] sm:$0xf]
  %v3493 = vld [vmem:[%s9 + $0x194] sm:$0xf]
  %v3494 = vld [vmem:[%s9 + $0x198] sm:$0xf]
  %v3495 = vld [vmem:[%s9 + $0x19c] sm:$0xf]
  %v3496 = vld [vmem:[%s9 + $0x1a0] sm:$0xf]
  %v3497 = vld [vmem:[%s9 + $0x1a4] sm:$0xf]
  %v3498 = vld [vmem:[%s9 + $0x1a8] sm:$0xf]
  %v3499 = vld [vmem:[%s9 + $0x1ac] sm:$0xf]
  %v3500 = vld [vmem:[%s9 + $0x1b0] sm:$0xf]
  %v3501 = vld [vmem:[%s9 + $0x1b4] sm:$0xf]
  %v3502 = vld [vmem:[%s9 + $0x1b8] sm:$0xf]
  %v3503 = vld [vmem:[%s9 + $0x1bc] sm:$0xf]
  %v3504 = vld [vmem:[%s9 + $0x1c0] sm:$0xf]
  %v3505 = vld [vmem:[%s9 + $0x1c4] sm:$0xf]
  %v3506 = vld [vmem:[%s9 + $0x1c8] sm:$0xf]
  %v3507 = vld [vmem:[%s9 + $0x1cc] sm:$0xf]
  %v3508 = vld [vmem:[%s9 + $0x1d0] sm:$0xf]
  %v3509 = vld [vmem:[%s9 + $0x1d4] sm:$0xf]
  %v3510 = vld [vmem:[%s9 + $0x1d8] sm:$0xf]
  %v3511 = vld [vmem:[%s9 + $0x1dc] sm:$0xf]
  %v3512 = vld [vmem:[%s9 + $0x1e0] sm:$0xf]
  %v3513 = vld [vmem:[%s9 + $0x1e4] sm:$0xf]
  %v3514 = vld [vmem:[%s9 + $0x1e8] sm:$0xf]
  %v3515 = vld [vmem:[%s9 + $0x1ec] sm:$0xf]
  %v3516 = vld [vmem:[%s9 + $0x1f0] sm:$0xf]
  %v3517 = vld [vmem:[%s9 + $0x1f4] sm:$0xf]
  %v3518 = vld [vmem:[%s9 + $0x1f8] sm:$0xf]
  %v3519 = vld [vmem:[%s9 + $0x1fc] sm:$0xf]
  %v3520 = vld [vmem:[%s10] sm:$0x1]
  %v3522 = vperm.slane %v3520, 0
  %v3652 = vunpack.c.l.b16 %v3392
  %v3653 = vunpack.c.l.b16 %v3393
  %v3654 = vunpack.c.l.b16 %v3394
  %v3655 = vunpack.c.l.b16 %v3395
  %v3656 = vunpack.c.l.b16 %v3396
  %v3657 = vunpack.c.l.b16 %v3397
  %v3658 = vunpack.c.l.b16 %v3398
  %v3659 = vunpack.c.l.b16 %v3399
  %v3660 = vunpack.c.l.b16 %v3400
  %v3661 = vunpack.c.l.b16 %v3401
  %v3662 = vunpack.c.l.b16 %v3402
  %v3663 = vunpack.c.l.b16 %v3403
  %v3664 = vunpack.c.l.b16 %v3404
  %v3665 = vunpack.c.l.b16 %v3405
  %v3666 = vunpack.c.l.b16 %v3406
  %v3667 = vunpack.c.l.b16 %v3407
  %v3668 = vunpack.c.l.b16 %v3408
  %v3669 = vunpack.c.l.b16 %v3409
  %v3670 = vunpack.c.l.b16 %v3410
  %v3671 = vunpack.c.l.b16 %v3411
  %v3672 = vunpack.c.l.b16 %v3412
  %v3673 = vunpack.c.l.b16 %v3413
  %v3674 = vunpack.c.l.b16 %v3414
  %v3675 = vunpack.c.l.b16 %v3415
  %v3676 = vunpack.c.l.b16 %v3416
  %v3677 = vunpack.c.l.b16 %v3417
  %v3678 = vunpack.c.l.b16 %v3418
  %v3679 = vunpack.c.l.b16 %v3419
  %v3680 = vunpack.c.l.b16 %v3420
  %v3681 = vunpack.c.l.b16 %v3421
  %v3682 = vunpack.c.l.b16 %v3422
  %v3683 = vunpack.c.l.b16 %v3423
  %v3684 = vunpack.c.l.b16 %v3424
  %v3685 = vunpack.c.l.b16 %v3425
  %v3686 = vunpack.c.l.b16 %v3426
  %v3687 = vunpack.c.l.b16 %v3427
  %v3688 = vunpack.c.l.b16 %v3428
  %v3689 = vunpack.c.l.b16 %v3429
  %v3690 = vunpack.c.l.b16 %v3430
  %v3691 = vunpack.c.l.b16 %v3431
  %v3692 = vunpack.c.l.b16 %v3432
  %v3693 = vunpack.c.l.b16 %v3433
  %v3694 = vunpack.c.l.b16 %v3434
  %v3695 = vunpack.c.l.b16 %v3435
  %v3696 = vunpack.c.l.b16 %v3436
  %v3697 = vunpack.c.l.b16 %v3437
  %v3698 = vunpack.c.l.b16 %v3438
  %v3699 = vunpack.c.l.b16 %v3439
  %v3700 = vunpack.c.l.b16 %v3440
  %v3701 = vunpack.c.l.b16 %v3441
  %v3702 = vunpack.c.l.b16 %v3442
  %v3703 = vunpack.c.l.b16 %v3443
  %v3704 = vunpack.c.l.b16 %v3444
  %v3705 = vunpack.c.l.b16 %v3445
  %v3706 = vunpack.c.l.b16 %v3446
  %v3707 = vunpack.c.l.b16 %v3447
  %v3708 = vunpack.c.l.b16 %v3448
  %v3709 = vunpack.c.l.b16 %v3449
  %v3710 = vunpack.c.l.b16 %v3450
  %v3711 = vunpack.c.l.b16 %v3451
  %v3712 = vunpack.c.l.b16 %v3452
  %v3713 = vunpack.c.l.b16 %v3453
  %v3714 = vunpack.c.l.b16 %v3454
  %v3715 = vunpack.c.l.b16 %v3455
  %v3716 = vunpack.c.l.b16 %v3456
  %v3717 = vunpack.c.l.b16 %v3457
  %v3718 = vunpack.c.l.b16 %v3458
  %v3719 = vunpack.c.l.b16 %v3459
  %v3720 = vunpack.c.l.b16 %v3460
  %v3721 = vunpack.c.l.b16 %v3461
  %v3722 = vunpack.c.l.b16 %v3462
  %v3723 = vunpack.c.l.b16 %v3463
  %v3724 = vunpack.c.l.b16 %v3464
  %v3725 = vunpack.c.l.b16 %v3465
  %v3726 = vunpack.c.l.b16 %v3466
  %v3727 = vunpack.c.l.b16 %v3467
  %v3728 = vunpack.c.l.b16 %v3468
  %v3729 = vunpack.c.l.b16 %v3469
  %v3730 = vunpack.c.l.b16 %v3470
  %v3731 = vunpack.c.l.b16 %v3471
  %v3732 = vunpack.c.l.b16 %v3472
  %v3733 = vunpack.c.l.b16 %v3473
  %v3734 = vunpack.c.l.b16 %v3474
  %v3735 = vunpack.c.l.b16 %v3475
  %v3736 = vunpack.c.l.b16 %v3476
  %v3737 = vunpack.c.l.b16 %v3477
  %v3738 = vunpack.c.l.b16 %v3478
  %v3739 = vunpack.c.l.b16 %v3479
  %v3740 = vunpack.c.l.b16 %v3480
  %v3741 = vunpack.c.l.b16 %v3481
  %v3742 = vunpack.c.l.b16 %v3482
  %v3743 = vunpack.c.l.b16 %v3483
  %v3744 = vunpack.c.l.b16 %v3484
  %v3745 = vunpack.c.l.b16 %v3485
  %v3746 = vunpack.c.l.b16 %v3486
  %v3747 = vunpack.c.l.b16 %v3487
  %v3748 = vunpack.c.l.b16 %v3488
  %v3749 = vunpack.c.l.b16 %v3489
  %v3750 = vunpack.c.l.b16 %v3490
  %v3751 = vunpack.c.l.b16 %v3491
  %v3752 = vunpack.c.l.b16 %v3492
  %v3753 = vunpack.c.l.b16 %v3493
  %v3754 = vunpack.c.l.b16 %v3494
  %v3755 = vunpack.c.l.b16 %v3495
  %v3756 = vunpack.c.l.b16 %v3496
  %v3757 = vunpack.c.l.b16 %v3497
  %v3758 = vunpack.c.l.b16 %v3498
  %v3759 = vunpack.c.l.b16 %v3499
  %v3760 = vunpack.c.l.b16 %v3500
  %v3761 = vunpack.c.l.b16 %v3501
  %v3762 = vunpack.c.l.b16 %v3502
  %v3763 = vunpack.c.l.b16 %v3503
  %v3764 = vunpack.c.l.b16 %v3504
  %v3765 = vunpack.c.l.b16 %v3505
  %v3766 = vunpack.c.l.b16 %v3506
  %v3767 = vunpack.c.l.b16 %v3507
  %v3768 = vunpack.c.l.b16 %v3508
  %v3769 = vunpack.c.l.b16 %v3509
  %v3770 = vunpack.c.l.b16 %v3510
  %v3771 = vunpack.c.l.b16 %v3511
  %v3772 = vunpack.c.l.b16 %v3512
  %v3773 = vunpack.c.l.b16 %v3513
  %v3774 = vunpack.c.l.b16 %v3514
  %v3775 = vunpack.c.l.b16 %v3515
  %v3776 = vunpack.c.l.b16 %v3516
  %v3777 = vunpack.c.l.b16 %v3517
  %v3778 = vunpack.c.l.b16 %v3518
  %v3779 = vunpack.c.l.b16 %v3519
  %v3780 = vpack.c.b16 %v3653, %v3652
  %v3781 = vpack.c.b16 %v3655, %v3654
  %v3782 = vpack.c.b16 %v3657, %v3656
  %v3783 = vpack.c.b16 %v3659, %v3658
  %v3784 = vpack.c.b16 %v3661, %v3660
  %v3785 = vpack.c.b16 %v3663, %v3662
  %v3786 = vpack.c.b16 %v3665, %v3664
  %v3787 = vpack.c.b16 %v3667, %v3666
  %v3788 = vpack.c.b16 %v3669, %v3668
  %v3789 = vpack.c.b16 %v3671, %v3670
  %v3790 = vpack.c.b16 %v3673, %v3672
  %v3791 = vpack.c.b16 %v3675, %v3674
  %v3792 = vpack.c.b16 %v3677, %v3676
  %v3793 = vpack.c.b16 %v3679, %v3678
  %v3794 = vpack.c.b16 %v3681, %v3680
  %v3795 = vpack.c.b16 %v3683, %v3682
  %v3796 = vpack.c.b16 %v3685, %v3684
  %v3797 = vpack.c.b16 %v3687, %v3686
  %v3798 = vpack.c.b16 %v3689, %v3688
  %v3799 = vpack.c.b16 %v3691, %v3690
  %v3800 = vpack.c.b16 %v3693, %v3692
  %v3801 = vpack.c.b16 %v3695, %v3694
  %v3802 = vpack.c.b16 %v3697, %v3696
  %v3803 = vpack.c.b16 %v3699, %v3698
  %v3804 = vpack.c.b16 %v3701, %v3700
  %v3805 = vpack.c.b16 %v3703, %v3702
  %v3806 = vpack.c.b16 %v3705, %v3704
  %v3807 = vpack.c.b16 %v3707, %v3706
  %v3808 = vpack.c.b16 %v3709, %v3708
  %v3809 = vpack.c.b16 %v3711, %v3710
  %v3810 = vpack.c.b16 %v3713, %v3712
  %v3811 = vpack.c.b16 %v3715, %v3714
  %v3812 = vpack.c.b16 %v3717, %v3716
  %v3813 = vpack.c.b16 %v3719, %v3718
  %v3814 = vpack.c.b16 %v3721, %v3720
  %v3815 = vpack.c.b16 %v3723, %v3722
  %v3816 = vpack.c.b16 %v3725, %v3724
  %v3817 = vpack.c.b16 %v3727, %v3726
  %v3818 = vpack.c.b16 %v3729, %v3728
  %v3819 = vpack.c.b16 %v3731, %v3730
  %v3820 = vpack.c.b16 %v3733, %v3732
  %v3821 = vpack.c.b16 %v3735, %v3734
  %v3822 = vpack.c.b16 %v3737, %v3736
  %v3823 = vpack.c.b16 %v3739, %v3738
  %v3824 = vpack.c.b16 %v3741, %v3740
  %v3825 = vpack.c.b16 %v3743, %v3742
  %v3826 = vpack.c.b16 %v3745, %v3744
  %v3827 = vpack.c.b16 %v3747, %v3746
  %v3828 = vpack.c.b16 %v3749, %v3748
  %v3829 = vpack.c.b16 %v3751, %v3750
  %v3830 = vpack.c.b16 %v3753, %v3752
  %v3831 = vpack.c.b16 %v3755, %v3754
  %v3832 = vpack.c.b16 %v3757, %v3756
  %v3833 = vpack.c.b16 %v3759, %v3758
  %v3834 = vpack.c.b16 %v3761, %v3760
  %v3835 = vpack.c.b16 %v3763, %v3762
  %v3836 = vpack.c.b16 %v3765, %v3764
  %v3837 = vpack.c.b16 %v3767, %v3766
  %v3838 = vpack.c.b16 %v3769, %v3768
  %v3839 = vpack.c.b16 %v3771, %v3770
  %v3840 = vpack.c.b16 %v3773, %v3772
  %v3841 = vpack.c.b16 %v3775, %v3774
  %v3842 = vpack.c.b16 %v3777, %v3776
  %v3843 = vpack.c.b16 %v3779, %v3778
  %3908 = vmatpush.bf16.msra.mxu0 %v3787
  %3909 = vmatpush.bf16.msra.mxu0 %v3786
  %3910 = vmatpush.bf16.msra.mxu0 %v3785
  %3911 = vmatpush.bf16.msra.mxu0 %v3784
  %3912 = vmatpush.bf16.msra.mxu0 %v3783
  %3913 = vmatpush.bf16.msra.mxu0 %v3782
  %3914 = vmatpush.bf16.msra.mxu0 %v3781
  %3915 = vmatpush.bf16.msra.mxu0 %v3780
  %3916 = vmatmul.bf16.gmra.mxu0 %v3384
  %v3917 = vpop.f32.mrf.mxu0
  %v3918 = vadd.f32 %v3522, %v3917
  %v3919 = vpop.f32.mrf.mxu0
  %3920 = vdwg.mxu0
  %3921 = vmatpush.bf16.msra.mxu0 %v3795
  %3922 = vmatpush.bf16.msra.mxu0 %v3794
  %3923 = vmatpush.bf16.msra.mxu0 %v3793
  %3924 = vmatpush.bf16.msra.mxu0 %v3792
  %3925 = vmatpush.bf16.msra.mxu0 %v3791
  %3926 = vmatpush.bf16.msra.mxu0 %v3790
  %3927 = vmatpush.bf16.msra.mxu0 %v3789
  %3928 = vmatpush.bf16.msra.mxu0 %v3788
  %3929 = vmatmul.bf16.gmra.mxu0 %v3385
  %v3930 = vpop.f32.mrf.mxu0
  %v3931 = vadd.f32 %v3918, %v3930
  %v3932 = vpop.f32.mrf.mxu0
  %3933 = vdwg.mxu0
  %3934 = vmatpush.bf16.msra.mxu0 %v3803
  %3935 = vmatpush.bf16.msra.mxu0 %v3802
  %3936 = vmatpush.bf16.msra.mxu0 %v3801
  %3937 = vmatpush.bf16.msra.mxu0 %v3800
  %3938 = vmatpush.bf16.msra.mxu0 %v3799
  %3939 = vmatpush.bf16.msra.mxu0 %v3798
  %3940 = vmatpush.bf16.msra.mxu0 %v3797
  %3941 = vmatpush.bf16.msra.mxu0 %v3796
  %3942 = vmatmul.bf16.gmra.mxu0 %v3386
  %v3943 = vpop.f32.mrf.mxu0
  %v3944 = vadd.f32 %v3931, %v3943
  %v3945 = vpop.f32.mrf.mxu0
  %3946 = vdwg.mxu0
  %3947 = vmatpush.bf16.msra.mxu0 %v3811
  %3948 = vmatpush.bf16.msra.mxu0 %v3810
  %3949 = vmatpush.bf16.msra.mxu0 %v3809
  %3950 = vmatpush.bf16.msra.mxu0 %v3808
  %3951 = vmatpush.bf16.msra.mxu0 %v3807
  %3952 = vmatpush.bf16.msra.mxu0 %v3806
  %3953 = vmatpush.bf16.msra.mxu0 %v3805
  %3954 = vmatpush.bf16.msra.mxu0 %v3804
  %3955 = vmatmul.bf16.gmra.mxu0 %v3387
  %v3956 = vpop.f32.mrf.mxu0
  %v3957 = vadd.f32 %v3944, %v3956
  %v3958 = vpop.f32.mrf.mxu0
  %3959 = vdwg.mxu0
  %3960 = vmatpush.bf16.msra.mxu0 %v3819
  %3961 = vmatpush.bf16.msra.mxu0 %v3818
  %3962 = vmatpush.bf16.msra.mxu0 %v3817
  %3963 = vmatpush.bf16.msra.mxu0 %v3816
  %3964 = vmatpush.bf16.msra.mxu0 %v3815
  %3965 = vmatpush.bf16.msra.mxu0 %v3814
  %3966 = vmatpush.bf16.msra.mxu0 %v3813
  %3967 = vmatpush.bf16.msra.mxu0 %v3812
  %3968 = vmatmul.bf16.gmra.mxu0 %v3388
  %v3969 = vpop.f32.mrf.mxu0
  %v3970 = vadd.f32 %v3957, %v3969
  %v3971 = vpop.f32.mrf.mxu0
  %3972 = vdwg.mxu0
  %3973 = vmatpush.bf16.msra.mxu0 %v3827
  %3974 = vmatpush.bf16.msra.mxu0 %v3826
  %3975 = vmatpush.bf16.msra.mxu0 %v3825
  %3976 = vmatpush.bf16.msra.mxu0 %v3824
  %3977 = vmatpush.bf16.msra.mxu0 %v3823
  %3978 = vmatpush.bf16.msra.mxu0 %v3822
  %3979 = vmatpush.bf16.msra.mxu0 %v3821
  %3980 = vmatpush.bf16.msra.mxu0 %v3820
  %3981 = vmatmul.bf16.gmra.mxu0 %v3389
  %v3982 = vpop.f32.mrf.mxu0
  %v3983 = vadd.f32 %v3970, %v3982
  %v3984 = vpop.f32.mrf.mxu0
  %3985 = vdwg.mxu0
  %3986 = vmatpush.bf16.msra.mxu0 %v3835
  %3987 = vmatpush.bf16.msra.mxu0 %v3834
  %3988 = vmatpush.bf16.msra.mxu0 %v3833
  %3989 = vmatpush.bf16.msra.mxu0 %v3832
  %3990 = vmatpush.bf16.msra.mxu0 %v3831
  %3991 = vmatpush.bf16.msra.mxu0 %v3830
  %3992 = vmatpush.bf16.msra.mxu0 %v3829
  %3993 = vmatpush.bf16.msra.mxu0 %v3828
  %3994 = vmatmul.bf16.gmra.mxu0 %v3390
  %v3995 = vpop.f32.mrf.mxu0
  %v3996 = vadd.f32 %v3983, %v3995
  %v3997 = vpop.f32.mrf.mxu0
  %3998 = vdwg.mxu0
  %3999 = vmatpush.bf16.msra.mxu0 %v3843
  %4000 = vmatpush.bf16.msra.mxu0 %v3842
  %4001 = vmatpush.bf16.msra.mxu0 %v3841
  %4002 = vmatpush.bf16.msra.mxu0 %v3840
  %4003 = vmatpush.bf16.msra.mxu0 %v3839
  %4004 = vmatpush.bf16.msra.mxu0 %v3838
  %4005 = vmatpush.bf16.msra.mxu0 %v3837
  %4006 = vmatpush.bf16.msra.mxu0 %v3836
  %4007 = vmatmul.bf16.gmra.mxu0 %v3391
  %v4008 = vpop.f32.mrf.mxu0
  %v4009 = vadd.f32 %v3996, %v4008
  %v4010 = vpop.f32.mrf.mxu0
  %4011 = vdwg.mxu0
  %4013 = vrot.lane.b32.xlu0 %v4009, 121
  %v4014 = vpop.permute.xlu0 %4013
  %v4016 = vsub.f32 %v4009, %v4014
  %4018 = vset.pattern.permute.xlu0 0
  %4019 = vperm.xlu0 %4018, %v4016
  %v4020 = vpop.permute.xlu0 %4019
  %v4022 = vadd.f32 %v4009, %v4020
  %vm4023 = vcmask 64512
  %4024 = vst.msk [vmem:[%s11] sm:$0xff] %vm4023, %v4022
  // Predicated region
  $region46: #{forward.1} parent=0 // pred_check
    _
  $region47: #{forward.1} parent=0 // pred_check_branch
    %4026 = sbr.rel (0) target = $region49
  $region48: #{forward.1} parent=0 // pred_region
    _
  $region49: #{forward.1} parent=0 // pred_fallthru
    _
  // Predicated region
  $region50: #{forward.1} parent=0 // pred_check
    _
  $region51: #{forward.1} parent=0 // pred_check_branch
    %4028 = sbr.rel (0) target = $region53
  $region52: #{forward.1} parent=0 // pred_region
    _
  $region53: #{forward.1} parent=0 // pred_fallthru
    _

</llo_original>
